<compile_context>
chip_gen: v6e
topology: v6e:2x2x1
jax: 0.10.0
libtpu: 0.0.40
codegen_flags: <defaults>
</compile_context>

<pallas_src>
import math

import numpy as np

import jax
import jax.numpy as jnp
from jax.experimental import pallas as pl
from jax.experimental.pallas import tpu as pltpu


# ---------------------------------------------------------------------------
# Fused kernel
# ---------------------------------------------------------------------------

def _condition_net_kernel(p1_ref, w1_ref, w2_ref, w3_ref, g2_ref, g3_ref,
                          b_ref, o_ref):
    """Fused conv1+conv2+conv3 (bias+ReLU each) + AdaptiveAvgPool2d(1).

    p1_ref: (1, P1, S1)   bf16  conv1 im2col patches for this batch element
    w1_ref: (C, P1)       bf16  folded conv1 weight
    w2_ref: (K*K, C, C)   bf16  conv2 weight, one (C_out, C_in) slab per tap
    w3_ref: (K*K, C, C)   bf16  conv3 weight
    g2_ref: (K*K, S1, S2) bf16  0/1 gather (im2col) matrices for conv2
    g3_ref: (K*K, S2, S3) bf16  0/1 gather matrices for conv3
    b_ref:  (3, C, 1)     f32   biases of the three convs
    o_ref:  (1, C, 1)     f32   pooled output for this batch element
    """
    f32, bf16 = jnp.float32, jnp.bfloat16
    C = w1_ref.shape[0]

    # ---- conv1 + ReLU (im2col done in the wrapper; one MXU matmul) ---------
    acc1 = jnp.dot(w1_ref[...], p1_ref[0], preferred_element_type=f32)
    out1 = jnp.maximum(acc1 + b_ref[0], 0.0).astype(bf16)           # (C, S1)

    # ---- conv2 + ReLU: per-tap gather-as-matmul, f32 accumulation ----------
    S2 = g2_ref.shape[2]
    acc2 = jnp.zeros((C, S2), f32)
    for kk in range(g2_ref.shape[0]):            # static 3x3 = 9 taps
        tap = jnp.dot(out1, g2_ref[kk], preferred_element_type=f32)
        acc2 = acc2 + jnp.dot(w2_ref[kk], tap.astype(bf16),
                              preferred_element_type=f32)
    out2 = jnp.maximum(acc2 + b_ref[1], 0.0).astype(bf16)           # (C, S2)

    # ---- conv3 + ReLU -------------------------------------------------------
    S3 = g3_ref.shape[2]
    acc3 = jnp.zeros((C, S3), f32)
    for kk in range(g3_ref.shape[0]):
        tap = jnp.dot(out2, g3_ref[kk], preferred_element_type=f32)
        acc3 = acc3 + jnp.dot(w3_ref[kk], tap.astype(bf16),
                              preferred_element_type=f32)
    out3 = jnp.maximum(acc3 + b_ref[2], 0.0)                        # (C, S3) f32

    # ---- AdaptiveAvgPool2d(1): mean over the flattened-spatial lane axis ---
    o_ref[0] = jnp.mean(out3, axis=-1, keepdims=True).astype(o_ref.dtype)


# ---------------------------------------------------------------------------
# Wrapper helpers
# ---------------------------------------------------------------------------

def _im2col_nchw(x, ksize, stride, pad):
    """(B, C, H, W) -> (B, K*K*C, OH*OW) patches, (ky, kx, c) ordering."""
    B, C, H, W = x.shape
    xp = jnp.pad(x, ((0, 0), (0, 0), (pad, pad), (pad, pad)))
    OH = (H + 2 * pad - ksize) // stride + 1
    OW = (W + 2 * pad - ksize) // stride + 1
    cols = []
    for ky in range(ksize):
        for kx in range(ksize):
            cols.append(xp[:, :, ky:ky + stride * OH:stride,
                              kx:kx + stride * OW:stride])          # (B,C,OH,OW)
    patches = jnp.stack(cols, axis=1).reshape(B, ksize * ksize * C, OH * OW)
    return patches, OH, OW


def _gather_mats(IH, IW, ksize, stride, pad):
    """0/1 selection matrices G[kk] of shape (S_in, S_out): im2col-as-matmul.

    (act @ G[kk])[c, o] == act_zero_padded[c, stride*oy+ky-pad, stride*ox+kx-pad]
    Built with numpy, so under jit they are small embedded constants (no
    runtime gather / pad / strided-slice needed in-kernel).
    """
    OH = (IH + 2 * pad - ksize) // stride + 1
    OW = (IW + 2 * pad - ksize) // stride + 1
    S_in, S_out = IH * IW, OH * OW
    oy, ox = np.meshgrid(np.arange(OH), np.arange(OW), indexing="ij")
    mats = np.zeros((ksize * ksize, S_in, S_out), np.float32)
    o_idx = np.arange(S_out)
    for ky in range(ksize):
        for kx in range(ksize):
            iy = (stride * oy + ky - pad).reshape(-1)
            ix = (stride * ox + kx - pad).reshape(-1)
            valid = (iy >= 0) & (iy < IH) & (ix >= 0) & (ix < IW)
            src = iy * IW + ix
            mats[ky * ksize + kx, src[valid], o_idx[valid]] = 1.0
    return mats, OH, OW


def condition_net_forward(x, params):
    """ConditionNet forward: one fused Pallas call for the whole network."""
    (w1, b1), (w2, b2), (w3, b3) = params
    B, C_in, H, W = x.shape
    C = w1.shape[0]
    K1, K = w1.shape[2], w2.shape[2]
    bf16 = jnp.bfloat16

    # conv1 im2col in the wrapper (raw input is tiny).
    patches1, OH1, OW1 = _im2col_nchw(x, K1, 2, 1)            # (B, P1, S1)
    P1, S1 = K1 * K1 * C_in, OH1 * OW1

    # Compile-time 0/1 gather matrices for the in-kernel conv2/conv3 im2col.
    g2, OH2, OW2 = _gather_mats(OH1, OW1, K, 2, 1)            # (K*K, S1, S2)
    g3, OH3, OW3 = _gather_mats(OH2, OW2, K, 2, 1)            # (K*K, S2, S3)
    S2, S3 = OH2 * OW2, OH3 * OW3

    # bf16 matmul operands (f32 accumulation happens in-kernel); f32 biases.
    p1 = patches1.astype(bf16)
    w1f = jnp.transpose(w1, (0, 2, 3, 1)).reshape(C, P1).astype(bf16)
    w2s = jnp.transpose(w2, (2, 3, 0, 1)).reshape(K * K, C, C).astype(bf16)
    w3s = jnp.transpose(w3, (2, 3, 0, 1)).reshape(K * K, C, C).astype(bf16)
    bias = jnp.stack([b1, b2, b3], axis=0).reshape(3, C, 1).astype(jnp.float32)
    g2b = jnp.asarray(g2, bf16)
    g3b = jnp.asarray(g3, bf16)

    flops = 2 * B * (C * P1 * S1
                     + K * K * (C * S1 * S2 + C * C * S2)
                     + K * K * (C * S2 * S3 + C * C * S3))
    bytes_accessed = (2 * (B * P1 * S1 + C * P1 + 2 * K * K * C * C
                           + K * K * S1 * S2 + K * K * S2 * S3)
                      + 4 * (3 * C + B * C))
    cost = pl.CostEstimate(flops=int(flops), transcendentals=0,
                           bytes_accessed=int(bytes_accessed))

    out = pl.pallas_call(
        _condition_net_kernel,
        out_shape=jax.ShapeDtypeStruct((B, C, 1), jnp.float32),
        grid_spec=pltpu.PrefetchScalarGridSpec(
            num_scalar_prefetch=0,
            grid=(B,),                       # B >= 2 keeps both v7x TCs busy
            in_specs=[
                pl.BlockSpec((1, P1, S1), lambda b: (b, 0, 0)),
                pl.BlockSpec((C, P1), lambda b: (0, 0)),
                pl.BlockSpec((K * K, C, C), lambda b: (0, 0, 0)),
                pl.BlockSpec((K * K, C, C), lambda b: (0, 0, 0)),
                pl.BlockSpec((K * K, S1, S2), lambda b: (0, 0, 0)),
                pl.BlockSpec((K * K, S2, S3), lambda b: (0, 0, 0)),
                pl.BlockSpec((3, C, 1), lambda b: (0, 0, 0)),
            ],
            out_specs=pl.BlockSpec((1, C, 1), lambda b: (b, 0, 0)),
        ),
        compiler_params=pltpu.CompilerParams(
            dimension_semantics=("parallel",)),
        cost_estimate=cost,
    )(p1, w1f, w2s, w3s, g2b, g3b, bias)

    return out.reshape(B, C, 1, 1).astype(x.dtype)


# ---------------------------------------------------------------------------
# Params + pure-JAX reference
# ---------------------------------------------------------------------------

def init_condition_net_params(key, in_ch=3, nf=32, dtype=jnp.float32):
    """PyTorch-style Conv2d default init: uniform(+-1/sqrt(fan_in))."""
    def conv_init(k, cin, cout, ksz):
        kw, kb = jax.random.split(k)
        bound = 1.0 / math.sqrt(cin * ksz * ksz)
        w = jax.random.uniform(kw, (cout, cin, ksz, ksz), dtype, -bound, bound)
        b_ = jax.random.uniform(kb, (cout,), dtype, -bound, bound)
        return w, b_
    k1, k2, k3 = jax.random.split(key, 3)
    return (conv_init(k1, in_ch, nf, 7),
            conv_init(k2, nf, nf, 3),
            conv_init(k3, nf, nf, 3))


def condition_net_reference(x, params):
    """Pure-JAX (XLA conv, f32 HIGHEST) reference for the correctness check."""
    def conv_relu(inp, w, b_, stride, pad):
        out = jax.lax.conv_general_dilated(
            inp, w, window_strides=(stride, stride),
            padding=((pad, pad), (pad, pad)),
            dimension_numbers=('NCHW', 'OIHW', 'NCHW'),
            precision=jax.lax.Precision.HIGHEST)
        return jnp.maximum(out + b_[None, :, None, None], 0.0)
    (w1, b1), (w2, b2), (w3, b3) = params
    out = conv_relu(x, w1, b1, 2, 1)
    out = conv_relu(out, w2, b2, 2, 1)
    out = conv_relu(out, w3, b3, 2, 1)
    return jnp.mean(out, axis=(2, 3), keepdims=True)


if __name__ == "__main__":
    B, in_ch, nf, H, W = 2, 3, 32, 32, 32

    key = jax.random.PRNGKey(0)
    kx, kp = jax.random.split(key)
    x = jax.random.normal(kx, (B, in_ch, H, W), jnp.float32)
    params = init_condition_net_params(kp, in_ch=in_ch, nf=nf)

    fwd = jax.jit(condition_net_forward)
    cond = jax.block_until_ready(fwd(x, params))

    ref = jax.block_until_ready(condition_net_reference(x, params))
    assert cond.shape == (B, nf, 1, 1), cond.shape
    max_err = float(jnp.max(jnp.abs(cond - ref)))
    # bf16 matmul operands (f32 accumulation) -> relaxed vs. the f32 check.
    assert jnp.allclose(cond, ref, atol=2e-2, rtol=2e-2), max_err

    print("KERNEL_OK")
</pallas_src>

<mosaic_0001>
module attributes {stable_mosaic.version = 11 : i64} {
  func.func @_condition_net_kernel(%arg0: i32, %arg1: memref<1x147x196xbf16, #tpu.memory_space<vmem>>, %arg2: memref<32x147xbf16, #tpu.memory_space<vmem>>, %arg3: memref<9x32x32xbf16, #tpu.memory_space<vmem>>, %arg4: memref<9x32x32xbf16, #tpu.memory_space<vmem>>, %arg5: memref<9x196x49xbf16, #tpu.memory_space<vmem>>, %arg6: memref<9x49x16xbf16, #tpu.memory_space<vmem>>, %arg7: memref<3x32x1xf32, #tpu.memory_space<vmem>>, %arg8: memref<1x32x1xf32, #tpu.memory_space<vmem>>) attributes {dimension_semantics = [#tpu.dimension_semantics<parallel>], iteration_bounds = array<i64: 2>, scalar_prefetch = 0 : i64, scratch_operands = 0 : i64, tpu.core_type = #tpu.core_type<tc>, window_params = [{transform_indices = @transform_0, window_bounds = array<i64: 1, 147, 196>}, {pipeline_mode = #tpu.pipeline_mode<synchronous>, transform_indices = @transform_1, window_bounds = array<i64: 32, 147>}, {pipeline_mode = #tpu.pipeline_mode<synchronous>, transform_indices = @transform_2, window_bounds = array<i64: 9, 32, 32>}, {pipeline_mode = #tpu.pipeline_mode<synchronous>, transform_indices = @transform_3, window_bounds = array<i64: 9, 32, 32>}, {pipeline_mode = #tpu.pipeline_mode<synchronous>, transform_indices = @transform_4, window_bounds = array<i64: 9, 196, 49>}, {pipeline_mode = #tpu.pipeline_mode<synchronous>, transform_indices = @transform_5, window_bounds = array<i64: 9, 49, 16>}, {pipeline_mode = #tpu.pipeline_mode<synchronous>, transform_indices = @transform_6, window_bounds = array<i64: 3, 32, 1>}, {transform_indices = @transform_7, window_bounds = array<i64: 1, 32, 1>}]} {
    %c0 = arith.constant 0 : index
    %c0_0 = arith.constant 0 : index
    %0 = vector.load %arg2[%c0, %c0_0] : memref<32x147xbf16, #tpu.memory_space<vmem>>, vector<32x147xbf16>
    %c0_1 = arith.constant 0 : index
    %c0_2 = arith.constant 0 : index
    %c0_3 = arith.constant 0 : index
    %1 = vector.load %arg1[%c0_1, %c0_2, %c0_3] : memref<1x147x196xbf16, #tpu.memory_space<vmem>>, vector<1x147x196xbf16>
    %2 = vector.shape_cast %1 : vector<1x147x196xbf16> to vector<147x196xbf16>
    %cst = arith.constant dense<0.000000e+00> : vector<32x196xf32>
    %3 = tpu.matmul %0, %2, %cst {dimension_numbers = #tpu.dot_dimension_numbers<[1], [0], [0], [1], [0, 0, 1, 1], [], []>} : vector<32x147xbf16>, vector<147x196xbf16>, vector<32x196xf32> -> vector<32x196xf32>
    %c0_4 = arith.constant 0 : index
    %c0_5 = arith.constant 0 : index
    %c0_6 = arith.constant 0 : index
    %4 = vector.load %arg7[%c0_4, %c0_5, %c0_6] : memref<3x32x1xf32, #tpu.memory_space<vmem>>, vector<1x32x1xf32>
    %5 = vector.shape_cast %4 : vector<1x32x1xf32> to vector<32x1xf32>
    %6 = vector.broadcast %5 : vector<32x1xf32> to vector<32x196xf32>
    %7 = arith.addf %3, %6 : vector<32x196xf32>
    %cst_7 = arith.constant 0.000000e+00 : f32
    %8 = vector.broadcast %cst_7 : f32 to vector<32x196xf32>
    %9 = arith.maximumf %7, %8 : vector<32x196xf32>
    %10 = arith.truncf %9 : vector<32x196xf32> to vector<32x196xbf16>
    %cst_8 = arith.constant 0.000000e+00 : f32
    %11 = vector.broadcast %cst_8 : f32 to vector<32x49xf32>
    %c0_9 = arith.constant 0 : index
    %c0_10 = arith.constant 0 : index
    %c0_11 = arith.constant 0 : index
    %12 = vector.load %arg5[%c0_9, %c0_10, %c0_11] : memref<9x196x49xbf16, #tpu.memory_space<vmem>>, vector<1x196x49xbf16>
    %13 = vector.shape_cast %12 : vector<1x196x49xbf16> to vector<196x49xbf16>
    %cst_12 = arith.constant dense<0.000000e+00> : vector<32x49xf32>
    %14 = tpu.matmul %10, %13, %cst_12 {dimension_numbers = #tpu.dot_dimension_numbers<[1], [0], [0], [1], [0, 0, 1, 1], [], []>} : vector<32x196xbf16>, vector<196x49xbf16>, vector<32x49xf32> -> vector<32x49xf32>
    %c0_13 = arith.constant 0 : index
    %c0_14 = arith.constant 0 : index
    %c0_15 = arith.constant 0 : index
    %15 = vector.load %arg3[%c0_13, %c0_14, %c0_15] : memref<9x32x32xbf16, #tpu.memory_space<vmem>>, vector<1x32x32xbf16>
    %16 = vector.shape_cast %15 : vector<1x32x32xbf16> to vector<32x32xbf16>
    %17 = arith.truncf %14 : vector<32x49xf32> to vector<32x49xbf16>
    %cst_16 = arith.constant dense<0.000000e+00> : vector<32x49xf32>
    %18 = tpu.matmul %16, %17, %cst_16 {dimension_numbers = #tpu.dot_dimension_numbers<[1], [0], [0], [1], [0, 0, 1, 1], [], []>} : vector<32x32xbf16>, vector<32x49xbf16>, vector<32x49xf32> -> vector<32x49xf32>
    %19 = arith.addf %11, %18 : vector<32x49xf32>
    %c1 = arith.constant 1 : index
    %c0_17 = arith.constant 0 : index
    %c0_18 = arith.constant 0 : index
    %20 = vector.load %arg5[%c1, %c0_17, %c0_18] : memref<9x196x49xbf16, #tpu.memory_space<vmem>>, vector<1x196x49xbf16>
    %21 = vector.shape_cast %20 : vector<1x196x49xbf16> to vector<196x49xbf16>
    %cst_19 = arith.constant dense<0.000000e+00> : vector<32x49xf32>
    %22 = tpu.matmul %10, %21, %cst_19 {dimension_numbers = #tpu.dot_dimension_numbers<[1], [0], [0], [1], [0, 0, 1, 1], [], []>} : vector<32x196xbf16>, vector<196x49xbf16>, vector<32x49xf32> -> vector<32x49xf32>
    %c1_20 = arith.constant 1 : index
    %c0_21 = arith.constant 0 : index
    %c0_22 = arith.constant 0 : index
    %23 = vector.load %arg3[%c1_20, %c0_21, %c0_22] : memref<9x32x32xbf16, #tpu.memory_space<vmem>>, vector<1x32x32xbf16>
    %24 = vector.shape_cast %23 : vector<1x32x32xbf16> to vector<32x32xbf16>
    %25 = arith.truncf %22 : vector<32x49xf32> to vector<32x49xbf16>
    %cst_23 = arith.constant dense<0.000000e+00> : vector<32x49xf32>
    %26 = tpu.matmul %24, %25, %cst_23 {dimension_numbers = #tpu.dot_dimension_numbers<[1], [0], [0], [1], [0, 0, 1, 1], [], []>} : vector<32x32xbf16>, vector<32x49xbf16>, vector<32x49xf32> -> vector<32x49xf32>
    %27 = arith.addf %19, %26 : vector<32x49xf32>
    %c2 = arith.constant 2 : index
    %c0_24 = arith.constant 0 : index
    %c0_25 = arith.constant 0 : index
    %28 = vector.load %arg5[%c2, %c0_24, %c0_25] : memref<9x196x49xbf16, #tpu.memory_space<vmem>>, vector<1x196x49xbf16>
    %29 = vector.shape_cast %28 : vector<1x196x49xbf16> to vector<196x49xbf16>
    %cst_26 = arith.constant dense<0.000000e+00> : vector<32x49xf32>
    %30 = tpu.matmul %10, %29, %cst_26 {dimension_numbers = #tpu.dot_dimension_numbers<[1], [0], [0], [1], [0, 0, 1, 1], [], []>} : vector<32x196xbf16>, vector<196x49xbf16>, vector<32x49xf32> -> vector<32x49xf32>
    %c2_27 = arith.constant 2 : index
    %c0_28 = arith.constant 0 : index
    %c0_29 = arith.constant 0 : index
    %31 = vector.load %arg3[%c2_27, %c0_28, %c0_29] : memref<9x32x32xbf16, #tpu.memory_space<vmem>>, vector<1x32x32xbf16>
    %32 = vector.shape_cast %31 : vector<1x32x32xbf16> to vector<32x32xbf16>
    %33 = arith.truncf %30 : vector<32x49xf32> to vector<32x49xbf16>
    %cst_30 = arith.constant dense<0.000000e+00> : vector<32x49xf32>
    %34 = tpu.matmul %32, %33, %cst_30 {dimension_numbers = #tpu.dot_dimension_numbers<[1], [0], [0], [1], [0, 0, 1, 1], [], []>} : vector<32x32xbf16>, vector<32x49xbf16>, vector<32x49xf32> -> vector<32x49xf32>
    %35 = arith.addf %27, %34 : vector<32x49xf32>
    %c3 = arith.constant 3 : index
    %c0_31 = arith.constant 0 : index
    %c0_32 = arith.constant 0 : index
    %36 = vector.load %arg5[%c3, %c0_31, %c0_32] : memref<9x196x49xbf16, #tpu.memory_space<vmem>>, vector<1x196x49xbf16>
    %37 = vector.shape_cast %36 : vector<1x196x49xbf16> to vector<196x49xbf16>
    %cst_33 = arith.constant dense<0.000000e+00> : vector<32x49xf32>
    %38 = tpu.matmul %10, %37, %cst_33 {dimension_numbers = #tpu.dot_dimension_numbers<[1], [0], [0], [1], [0, 0, 1, 1], [], []>} : vector<32x196xbf16>, vector<196x49xbf16>, vector<32x49xf32> -> vector<32x49xf32>
    %c3_34 = arith.constant 3 : index
    %c0_35 = arith.constant 0 : index
    %c0_36 = arith.constant 0 : index
    %39 = vector.load %arg3[%c3_34, %c0_35, %c0_36] : memref<9x32x32xbf16, #tpu.memory_space<vmem>>, vector<1x32x32xbf16>
    %40 = vector.shape_cast %39 : vector<1x32x32xbf16> to vector<32x32xbf16>
    %41 = arith.truncf %38 : vector<32x49xf32> to vector<32x49xbf16>
    %cst_37 = arith.constant dense<0.000000e+00> : vector<32x49xf32>
    %42 = tpu.matmul %40, %41, %cst_37 {dimension_numbers = #tpu.dot_dimension_numbers<[1], [0], [0], [1], [0, 0, 1, 1], [], []>} : vector<32x32xbf16>, vector<32x49xbf16>, vector<32x49xf32> -> vector<32x49xf32>
    %43 = arith.addf %35, %42 : vector<32x49xf32>
    %c4 = arith.constant 4 : index
    %c0_38 = arith.constant 0 : index
    %c0_39 = arith.constant 0 : index
    %44 = vector.load %arg5[%c4, %c0_38, %c0_39] : memref<9x196x49xbf16, #tpu.memory_space<vmem>>, vector<1x196x49xbf16>
    %45 = vector.shape_cast %44 : vector<1x196x49xbf16> to vector<196x49xbf16>
    %cst_40 = arith.constant dense<0.000000e+00> : vector<32x49xf32>
    %46 = tpu.matmul %10, %45, %cst_40 {dimension_numbers = #tpu.dot_dimension_numbers<[1], [0], [0], [1], [0, 0, 1, 1], [], []>} : vector<32x196xbf16>, vector<196x49xbf16>, vector<32x49xf32> -> vector<32x49xf32>
    %c4_41 = arith.constant 4 : index
    %c0_42 = arith.constant 0 : index
    %c0_43 = arith.constant 0 : index
    %47 = vector.load %arg3[%c4_41, %c0_42, %c0_43] : memref<9x32x32xbf16, #tpu.memory_space<vmem>>, vector<1x32x32xbf16>
    %48 = vector.shape_cast %47 : vector<1x32x32xbf16> to vector<32x32xbf16>
    %49 = arith.truncf %46 : vector<32x49xf32> to vector<32x49xbf16>
    %cst_44 = arith.constant dense<0.000000e+00> : vector<32x49xf32>
    %50 = tpu.matmul %48, %49, %cst_44 {dimension_numbers = #tpu.dot_dimension_numbers<[1], [0], [0], [1], [0, 0, 1, 1], [], []>} : vector<32x32xbf16>, vector<32x49xbf16>, vector<32x49xf32> -> vector<32x49xf32>
    %51 = arith.addf %43, %50 : vector<32x49xf32>
    %c5 = arith.constant 5 : index
    %c0_45 = arith.constant 0 : index
    %c0_46 = arith.constant 0 : index
    %52 = vector.load %arg5[%c5, %c0_45, %c0_46] : memref<9x196x49xbf16, #tpu.memory_space<vmem>>, vector<1x196x49xbf16>
    %53 = vector.shape_cast %52 : vector<1x196x49xbf16> to vector<196x49xbf16>
    %cst_47 = arith.constant dense<0.000000e+00> : vector<32x49xf32>
    %54 = tpu.matmul %10, %53, %cst_47 {dimension_numbers = #tpu.dot_dimension_numbers<[1], [0], [0], [1], [0, 0, 1, 1], [], []>} : vector<32x196xbf16>, vector<196x49xbf16>, vector<32x49xf32> -> vector<32x49xf32>
    %c5_48 = arith.constant 5 : index
    %c0_49 = arith.constant 0 : index
    %c0_50 = arith.constant 0 : index
    %55 = vector.load %arg3[%c5_48, %c0_49, %c0_50] : memref<9x32x32xbf16, #tpu.memory_space<vmem>>, vector<1x32x32xbf16>
    %56 = vector.shape_cast %55 : vector<1x32x32xbf16> to vector<32x32xbf16>
    %57 = arith.truncf %54 : vector<32x49xf32> to vector<32x49xbf16>
    %cst_51 = arith.constant dense<0.000000e+00> : vector<32x49xf32>
    %58 = tpu.matmul %56, %57, %cst_51 {dimension_numbers = #tpu.dot_dimension_numbers<[1], [0], [0], [1], [0, 0, 1, 1], [], []>} : vector<32x32xbf16>, vector<32x49xbf16>, vector<32x49xf32> -> vector<32x49xf32>
    %59 = arith.addf %51, %58 : vector<32x49xf32>
    %c6 = arith.constant 6 : index
    %c0_52 = arith.constant 0 : index
    %c0_53 = arith.constant 0 : index
    %60 = vector.load %arg5[%c6, %c0_52, %c0_53] : memref<9x196x49xbf16, #tpu.memory_space<vmem>>, vector<1x196x49xbf16>
    %61 = vector.shape_cast %60 : vector<1x196x49xbf16> to vector<196x49xbf16>
    %cst_54 = arith.constant dense<0.000000e+00> : vector<32x49xf32>
    %62 = tpu.matmul %10, %61, %cst_54 {dimension_numbers = #tpu.dot_dimension_numbers<[1], [0], [0], [1], [0, 0, 1, 1], [], []>} : vector<32x196xbf16>, vector<196x49xbf16>, vector<32x49xf32> -> vector<32x49xf32>
    %c6_55 = arith.constant 6 : index
    %c0_56 = arith.constant 0 : index
    %c0_57 = arith.constant 0 : index
    %63 = vector.load %arg3[%c6_55, %c0_56, %c0_57] : memref<9x32x32xbf16, #tpu.memory_space<vmem>>, vector<1x32x32xbf16>
    %64 = vector.shape_cast %63 : vector<1x32x32xbf16> to vector<32x32xbf16>
    %65 = arith.truncf %62 : vector<32x49xf32> to vector<32x49xbf16>
    %cst_58 = arith.constant dense<0.000000e+00> : vector<32x49xf32>
    %66 = tpu.matmul %64, %65, %cst_58 {dimension_numbers = #tpu.dot_dimension_numbers<[1], [0], [0], [1], [0, 0, 1, 1], [], []>} : vector<32x32xbf16>, vector<32x49xbf16>, vector<32x49xf32> -> vector<32x49xf32>
    %67 = arith.addf %59, %66 : vector<32x49xf32>
    %c7 = arith.constant 7 : index
    %c0_59 = arith.constant 0 : index
    %c0_60 = arith.constant 0 : index
    %68 = vector.load %arg5[%c7, %c0_59, %c0_60] : memref<9x196x49xbf16, #tpu.memory_space<vmem>>, vector<1x196x49xbf16>
    %69 = vector.shape_cast %68 : vector<1x196x49xbf16> to vector<196x49xbf16>
    %cst_61 = arith.constant dense<0.000000e+00> : vector<32x49xf32>
    %70 = tpu.matmul %10, %69, %cst_61 {dimension_numbers = #tpu.dot_dimension_numbers<[1], [0], [0], [1], [0, 0, 1, 1], [], []>} : vector<32x196xbf16>, vector<196x49xbf16>, vector<32x49xf32> -> vector<32x49xf32>
    %c7_62 = arith.constant 7 : index
    %c0_63 = arith.constant 0 : index
    %c0_64 = arith.constant 0 : index
    %71 = vector.load %arg3[%c7_62, %c0_63, %c0_64] : memref<9x32x32xbf16, #tpu.memory_space<vmem>>, vector<1x32x32xbf16>
    %72 = vector.shape_cast %71 : vector<1x32x32xbf16> to vector<32x32xbf16>
    %73 = arith.truncf %70 : vector<32x49xf32> to vector<32x49xbf16>
    %cst_65 = arith.constant dense<0.000000e+00> : vector<32x49xf32>
    %74 = tpu.matmul %72, %73, %cst_65 {dimension_numbers = #tpu.dot_dimension_numbers<[1], [0], [0], [1], [0, 0, 1, 1], [], []>} : vector<32x32xbf16>, vector<32x49xbf16>, vector<32x49xf32> -> vector<32x49xf32>
    %75 = arith.addf %67, %74 : vector<32x49xf32>
    %c8 = arith.constant 8 : index
    %c0_66 = arith.constant 0 : index
    %c0_67 = arith.constant 0 : index
    %76 = vector.load %arg5[%c8, %c0_66, %c0_67] : memref<9x196x49xbf16, #tpu.memory_space<vmem>>, vector<1x196x49xbf16>
    %77 = vector.shape_cast %76 : vector<1x196x49xbf16> to vector<196x49xbf16>
    %cst_68 = arith.constant dense<0.000000e+00> : vector<32x49xf32>
    %78 = tpu.matmul %10, %77, %cst_68 {dimension_numbers = #tpu.dot_dimension_numbers<[1], [0], [0], [1], [0, 0, 1, 1], [], []>} : vector<32x196xbf16>, vector<196x49xbf16>, vector<32x49xf32> -> vector<32x49xf32>
    %c8_69 = arith.constant 8 : index
    %c0_70 = arith.constant 0 : index
    %c0_71 = arith.constant 0 : index
    %79 = vector.load %arg3[%c8_69, %c0_70, %c0_71] : memref<9x32x32xbf16, #tpu.memory_space<vmem>>, vector<1x32x32xbf16>
    %80 = vector.shape_cast %79 : vector<1x32x32xbf16> to vector<32x32xbf16>
    %81 = arith.truncf %78 : vector<32x49xf32> to vector<32x49xbf16>
    %cst_72 = arith.constant dense<0.000000e+00> : vector<32x49xf32>
    %82 = tpu.matmul %80, %81, %cst_72 {dimension_numbers = #tpu.dot_dimension_numbers<[1], [0], [0], [1], [0, 0, 1, 1], [], []>} : vector<32x32xbf16>, vector<32x49xbf16>, vector<32x49xf32> -> vector<32x49xf32>
    %83 = arith.addf %75, %82 : vector<32x49xf32>
    %c1_73 = arith.constant 1 : index
    %c0_74 = arith.constant 0 : index
    %c0_75 = arith.constant 0 : index
    %84 = vector.load %arg7[%c1_73, %c0_74, %c0_75] : memref<3x32x1xf32, #tpu.memory_space<vmem>>, vector<1x32x1xf32>
    %85 = vector.shape_cast %84 : vector<1x32x1xf32> to vector<32x1xf32>
    %86 = vector.broadcast %85 : vector<32x1xf32> to vector<32x49xf32>
    %87 = arith.addf %83, %86 : vector<32x49xf32>
    %cst_76 = arith.constant 0.000000e+00 : f32
    %88 = vector.broadcast %cst_76 : f32 to vector<32x49xf32>
    %89 = arith.maximumf %87, %88 : vector<32x49xf32>
    %90 = arith.truncf %89 : vector<32x49xf32> to vector<32x49xbf16>
    %cst_77 = arith.constant 0.000000e+00 : f32
    %91 = vector.broadcast %cst_77 : f32 to vector<32x16xf32>
    %c0_78 = arith.constant 0 : index
    %c0_79 = arith.constant 0 : index
    %c0_80 = arith.constant 0 : index
    %92 = vector.load %arg6[%c0_78, %c0_79, %c0_80] : memref<9x49x16xbf16, #tpu.memory_space<vmem>>, vector<1x49x16xbf16>
    %93 = vector.shape_cast %92 : vector<1x49x16xbf16> to vector<49x16xbf16>
    %cst_81 = arith.constant dense<0.000000e+00> : vector<32x16xf32>
    %94 = tpu.matmul %90, %93, %cst_81 {dimension_numbers = #tpu.dot_dimension_numbers<[1], [0], [0], [1], [0, 0, 1, 1], [], []>} : vector<32x49xbf16>, vector<49x16xbf16>, vector<32x16xf32> -> vector<32x16xf32>
    %c0_82 = arith.constant 0 : index
    %c0_83 = arith.constant 0 : index
    %c0_84 = arith.constant 0 : index
    %95 = vector.load %arg4[%c0_82, %c0_83, %c0_84] : memref<9x32x32xbf16, #tpu.memory_space<vmem>>, vector<1x32x32xbf16>
    %96 = vector.shape_cast %95 : vector<1x32x32xbf16> to vector<32x32xbf16>
    %97 = arith.truncf %94 : vector<32x16xf32> to vector<32x16xbf16>
    %cst_85 = arith.constant dense<0.000000e+00> : vector<32x16xf32>
    %98 = tpu.matmul %96, %97, %cst_85 {dimension_numbers = #tpu.dot_dimension_numbers<[1], [0], [0], [1], [0, 0, 1, 1], [], []>} : vector<32x32xbf16>, vector<32x16xbf16>, vector<32x16xf32> -> vector<32x16xf32>
    %99 = arith.addf %91, %98 : vector<32x16xf32>
    %c1_86 = arith.constant 1 : index
    %c0_87 = arith.constant 0 : index
    %c0_88 = arith.constant 0 : index
    %100 = vector.load %arg6[%c1_86, %c0_87, %c0_88] : memref<9x49x16xbf16, #tpu.memory_space<vmem>>, vector<1x49x16xbf16>
    %101 = vector.shape_cast %100 : vector<1x49x16xbf16> to vector<49x16xbf16>
    %cst_89 = arith.constant dense<0.000000e+00> : vector<32x16xf32>
    %102 = tpu.matmul %90, %101, %cst_89 {dimension_numbers = #tpu.dot_dimension_numbers<[1], [0], [0], [1], [0, 0, 1, 1], [], []>} : vector<32x49xbf16>, vector<49x16xbf16>, vector<32x16xf32> -> vector<32x16xf32>
    %c1_90 = arith.constant 1 : index
    %c0_91 = arith.constant 0 : index
    %c0_92 = arith.constant 0 : index
    %103 = vector.load %arg4[%c1_90, %c0_91, %c0_92] : memref<9x32x32xbf16, #tpu.memory_space<vmem>>, vector<1x32x32xbf16>
    %104 = vector.shape_cast %103 : vector<1x32x32xbf16> to vector<32x32xbf16>
    %105 = arith.truncf %102 : vector<32x16xf32> to vector<32x16xbf16>
    %cst_93 = arith.constant dense<0.000000e+00> : vector<32x16xf32>
    %106 = tpu.matmul %104, %105, %cst_93 {dimension_numbers = #tpu.dot_dimension_numbers<[1], [0], [0], [1], [0, 0, 1, 1], [], []>} : vector<32x32xbf16>, vector<32x16xbf16>, vector<32x16xf32> -> vector<32x16xf32>
    %107 = arith.addf %99, %106 : vector<32x16xf32>
    %c2_94 = arith.constant 2 : index
    %c0_95 = arith.constant 0 : index
    %c0_96 = arith.constant 0 : index
    %108 = vector.load %arg6[%c2_94, %c0_95, %c0_96] : memref<9x49x16xbf16, #tpu.memory_space<vmem>>, vector<1x49x16xbf16>
    %109 = vector.shape_cast %108 : vector<1x49x16xbf16> to vector<49x16xbf16>
    %cst_97 = arith.constant dense<0.000000e+00> : vector<32x16xf32>
    %110 = tpu.matmul %90, %109, %cst_97 {dimension_numbers = #tpu.dot_dimension_numbers<[1], [0], [0], [1], [0, 0, 1, 1], [], []>} : vector<32x49xbf16>, vector<49x16xbf16>, vector<32x16xf32> -> vector<32x16xf32>
    %c2_98 = arith.constant 2 : index
    %c0_99 = arith.constant 0 : index
    %c0_100 = arith.constant 0 : index
    %111 = vector.load %arg4[%c2_98, %c0_99, %c0_100] : memref<9x32x32xbf16, #tpu.memory_space<vmem>>, vector<1x32x32xbf16>
    %112 = vector.shape_cast %111 : vector<1x32x32xbf16> to vector<32x32xbf16>
    %113 = arith.truncf %110 : vector<32x16xf32> to vector<32x16xbf16>
    %cst_101 = arith.constant dense<0.000000e+00> : vector<32x16xf32>
    %114 = tpu.matmul %112, %113, %cst_101 {dimension_numbers = #tpu.dot_dimension_numbers<[1], [0], [0], [1], [0, 0, 1, 1], [], []>} : vector<32x32xbf16>, vector<32x16xbf16>, vector<32x16xf32> -> vector<32x16xf32>
    %115 = arith.addf %107, %114 : vector<32x16xf32>
    %c3_102 = arith.constant 3 : index
    %c0_103 = arith.constant 0 : index
    %c0_104 = arith.constant 0 : index
    %116 = vector.load %arg6[%c3_102, %c0_103, %c0_104] : memref<9x49x16xbf16, #tpu.memory_space<vmem>>, vector<1x49x16xbf16>
    %117 = vector.shape_cast %116 : vector<1x49x16xbf16> to vector<49x16xbf16>
    %cst_105 = arith.constant dense<0.000000e+00> : vector<32x16xf32>
    %118 = tpu.matmul %90, %117, %cst_105 {dimension_numbers = #tpu.dot_dimension_numbers<[1], [0], [0], [1], [0, 0, 1, 1], [], []>} : vector<32x49xbf16>, vector<49x16xbf16>, vector<32x16xf32> -> vector<32x16xf32>
    %c3_106 = arith.constant 3 : index
    %c0_107 = arith.constant 0 : index
    %c0_108 = arith.constant 0 : index
    %119 = vector.load %arg4[%c3_106, %c0_107, %c0_108] : memref<9x32x32xbf16, #tpu.memory_space<vmem>>, vector<1x32x32xbf16>
    %120 = vector.shape_cast %119 : vector<1x32x32xbf16> to vector<32x32xbf16>
    %121 = arith.truncf %118 : vector<32x16xf32> to vector<32x16xbf16>
    %cst_109 = arith.constant dense<0.000000e+00> : vector<32x16xf32>
    %122 = tpu.matmul %120, %121, %cst_109 {dimension_numbers = #tpu.dot_dimension_numbers<[1], [0], [0], [1], [0, 0, 1, 1], [], []>} : vector<32x32xbf16>, vector<32x16xbf16>, vector<32x16xf32> -> vector<32x16xf32>
    %123 = arith.addf %115, %122 : vector<32x16xf32>
    %c4_110 = arith.constant 4 : index
    %c0_111 = arith.constant 0 : index
    %c0_112 = arith.constant 0 : index
    %124 = vector.load %arg6[%c4_110, %c0_111, %c0_112] : memref<9x49x16xbf16, #tpu.memory_space<vmem>>, vector<1x49x16xbf16>
    %125 = vector.shape_cast %124 : vector<1x49x16xbf16> to vector<49x16xbf16>
    %cst_113 = arith.constant dense<0.000000e+00> : vector<32x16xf32>
    %126 = tpu.matmul %90, %125, %cst_113 {dimension_numbers = #tpu.dot_dimension_numbers<[1], [0], [0], [1], [0, 0, 1, 1], [], []>} : vector<32x49xbf16>, vector<49x16xbf16>, vector<32x16xf32> -> vector<32x16xf32>
    %c4_114 = arith.constant 4 : index
    %c0_115 = arith.constant 0 : index
    %c0_116 = arith.constant 0 : index
    %127 = vector.load %arg4[%c4_114, %c0_115, %c0_116] : memref<9x32x32xbf16, #tpu.memory_space<vmem>>, vector<1x32x32xbf16>
    %128 = vector.shape_cast %127 : vector<1x32x32xbf16> to vector<32x32xbf16>
    %129 = arith.truncf %126 : vector<32x16xf32> to vector<32x16xbf16>
    %cst_117 = arith.constant dense<0.000000e+00> : vector<32x16xf32>
    %130 = tpu.matmul %128, %129, %cst_117 {dimension_numbers = #tpu.dot_dimension_numbers<[1], [0], [0], [1], [0, 0, 1, 1], [], []>} : vector<32x32xbf16>, vector<32x16xbf16>, vector<32x16xf32> -> vector<32x16xf32>
    %131 = arith.addf %123, %130 : vector<32x16xf32>
    %c5_118 = arith.constant 5 : index
    %c0_119 = arith.constant 0 : index
    %c0_120 = arith.constant 0 : index
    %132 = vector.load %arg6[%c5_118, %c0_119, %c0_120] : memref<9x49x16xbf16, #tpu.memory_space<vmem>>, vector<1x49x16xbf16>
    %133 = vector.shape_cast %132 : vector<1x49x16xbf16> to vector<49x16xbf16>
    %cst_121 = arith.constant dense<0.000000e+00> : vector<32x16xf32>
    %134 = tpu.matmul %90, %133, %cst_121 {dimension_numbers = #tpu.dot_dimension_numbers<[1], [0], [0], [1], [0, 0, 1, 1], [], []>} : vector<32x49xbf16>, vector<49x16xbf16>, vector<32x16xf32> -> vector<32x16xf32>
    %c5_122 = arith.constant 5 : index
    %c0_123 = arith.constant 0 : index
    %c0_124 = arith.constant 0 : index
    %135 = vector.load %arg4[%c5_122, %c0_123, %c0_124] : memref<9x32x32xbf16, #tpu.memory_space<vmem>>, vector<1x32x32xbf16>
    %136 = vector.shape_cast %135 : vector<1x32x32xbf16> to vector<32x32xbf16>
    %137 = arith.truncf %134 : vector<32x16xf32> to vector<32x16xbf16>
    %cst_125 = arith.constant dense<0.000000e+00> : vector<32x16xf32>
    %138 = tpu.matmul %136, %137, %cst_125 {dimension_numbers = #tpu.dot_dimension_numbers<[1], [0], [0], [1], [0, 0, 1, 1], [], []>} : vector<32x32xbf16>, vector<32x16xbf16>, vector<32x16xf32> -> vector<32x16xf32>
    %139 = arith.addf %131, %138 : vector<32x16xf32>
    %c6_126 = arith.constant 6 : index
    %c0_127 = arith.constant 0 : index
    %c0_128 = arith.constant 0 : index
    %140 = vector.load %arg6[%c6_126, %c0_127, %c0_128] : memref<9x49x16xbf16, #tpu.memory_space<vmem>>, vector<1x49x16xbf16>
    %141 = vector.shape_cast %140 : vector<1x49x16xbf16> to vector<49x16xbf16>
    %cst_129 = arith.constant dense<0.000000e+00> : vector<32x16xf32>
    %142 = tpu.matmul %90, %141, %cst_129 {dimension_numbers = #tpu.dot_dimension_numbers<[1], [0], [0], [1], [0, 0, 1, 1], [], []>} : vector<32x49xbf16>, vector<49x16xbf16>, vector<32x16xf32> -> vector<32x16xf32>
    %c6_130 = arith.constant 6 : index
    %c0_131 = arith.constant 0 : index
    %c0_132 = arith.constant 0 : index
    %143 = vector.load %arg4[%c6_130, %c0_131, %c0_132] : memref<9x32x32xbf16, #tpu.memory_space<vmem>>, vector<1x32x32xbf16>
    %144 = vector.shape_cast %143 : vector<1x32x32xbf16> to vector<32x32xbf16>
    %145 = arith.truncf %142 : vector<32x16xf32> to vector<32x16xbf16>
    %cst_133 = arith.constant dense<0.000000e+00> : vector<32x16xf32>
    %146 = tpu.matmul %144, %145, %cst_133 {dimension_numbers = #tpu.dot_dimension_numbers<[1], [0], [0], [1], [0, 0, 1, 1], [], []>} : vector<32x32xbf16>, vector<32x16xbf16>, vector<32x16xf32> -> vector<32x16xf32>
    %147 = arith.addf %139, %146 : vector<32x16xf32>
    %c7_134 = arith.constant 7 : index
    %c0_135 = arith.constant 0 : index
    %c0_136 = arith.constant 0 : index
    %148 = vector.load %arg6[%c7_134, %c0_135, %c0_136] : memref<9x49x16xbf16, #tpu.memory_space<vmem>>, vector<1x49x16xbf16>
    %149 = vector.shape_cast %148 : vector<1x49x16xbf16> to vector<49x16xbf16>
    %cst_137 = arith.constant dense<0.000000e+00> : vector<32x16xf32>
    %150 = tpu.matmul %90, %149, %cst_137 {dimension_numbers = #tpu.dot_dimension_numbers<[1], [0], [0], [1], [0, 0, 1, 1], [], []>} : vector<32x49xbf16>, vector<49x16xbf16>, vector<32x16xf32> -> vector<32x16xf32>
    %c7_138 = arith.constant 7 : index
    %c0_139 = arith.constant 0 : index
    %c0_140 = arith.constant 0 : index
    %151 = vector.load %arg4[%c7_138, %c0_139, %c0_140] : memref<9x32x32xbf16, #tpu.memory_space<vmem>>, vector<1x32x32xbf16>
    %152 = vector.shape_cast %151 : vector<1x32x32xbf16> to vector<32x32xbf16>
    %153 = arith.truncf %150 : vector<32x16xf32> to vector<32x16xbf16>
    %cst_141 = arith.constant dense<0.000000e+00> : vector<32x16xf32>
    %154 = tpu.matmul %152, %153, %cst_141 {dimension_numbers = #tpu.dot_dimension_numbers<[1], [0], [0], [1], [0, 0, 1, 1], [], []>} : vector<32x32xbf16>, vector<32x16xbf16>, vector<32x16xf32> -> vector<32x16xf32>
    %155 = arith.addf %147, %154 : vector<32x16xf32>
    %c8_142 = arith.constant 8 : index
    %c0_143 = arith.constant 0 : index
    %c0_144 = arith.constant 0 : index
    %156 = vector.load %arg6[%c8_142, %c0_143, %c0_144] : memref<9x49x16xbf16, #tpu.memory_space<vmem>>, vector<1x49x16xbf16>
    %157 = vector.shape_cast %156 : vector<1x49x16xbf16> to vector<49x16xbf16>
    %cst_145 = arith.constant dense<0.000000e+00> : vector<32x16xf32>
    %158 = tpu.matmul %90, %157, %cst_145 {dimension_numbers = #tpu.dot_dimension_numbers<[1], [0], [0], [1], [0, 0, 1, 1], [], []>} : vector<32x49xbf16>, vector<49x16xbf16>, vector<32x16xf32> -> vector<32x16xf32>
    %c8_146 = arith.constant 8 : index
    %c0_147 = arith.constant 0 : index
    %c0_148 = arith.constant 0 : index
    %159 = vector.load %arg4[%c8_146, %c0_147, %c0_148] : memref<9x32x32xbf16, #tpu.memory_space<vmem>>, vector<1x32x32xbf16>
    %160 = vector.shape_cast %159 : vector<1x32x32xbf16> to vector<32x32xbf16>
    %161 = arith.truncf %158 : vector<32x16xf32> to vector<32x16xbf16>
    %cst_149 = arith.constant dense<0.000000e+00> : vector<32x16xf32>
    %162 = tpu.matmul %160, %161, %cst_149 {dimension_numbers = #tpu.dot_dimension_numbers<[1], [0], [0], [1], [0, 0, 1, 1], [], []>} : vector<32x32xbf16>, vector<32x16xbf16>, vector<32x16xf32> -> vector<32x16xf32>
    %163 = arith.addf %155, %162 : vector<32x16xf32>
    %c2_150 = arith.constant 2 : index
    %c0_151 = arith.constant 0 : index
    %c0_152 = arith.constant 0 : index
    %164 = vector.load %arg7[%c2_150, %c0_151, %c0_152] : memref<3x32x1xf32, #tpu.memory_space<vmem>>, vector<1x32x1xf32>
    %165 = vector.shape_cast %164 : vector<1x32x1xf32> to vector<32x1xf32>
    %166 = vector.broadcast %165 : vector<32x1xf32> to vector<32x16xf32>
    %167 = arith.addf %163, %166 : vector<32x16xf32>
    %cst_153 = arith.constant 0.000000e+00 : f32
    %168 = vector.broadcast %cst_153 : f32 to vector<32x16xf32>
    %169 = arith.maximumf %167, %168 : vector<32x16xf32>
    %cst_154 = arith.constant dense<0.000000e+00> : vector<32xf32>
    %170 = vector.multi_reduction <add>, %169, %cst_154 [1] : vector<32x16xf32> to vector<32xf32>
    %171 = vector.shape_cast %170 : vector<32xf32> to vector<32x1xf32>
    %cst_155 = arith.constant 1.600000e+01 : f32
    %172 = vector.broadcast %cst_155 : f32 to vector<32x1xf32>
    %173 = arith.divf %171, %172 : vector<32x1xf32>
    %c0_156 = arith.constant 0 : index
    %c0_157 = arith.constant 0 : index
    %c0_158 = arith.constant 0 : index
    %174 = vector.load %arg8[%c0_156, %c0_157, %c0_158] : memref<1x32x1xf32, #tpu.memory_space<vmem>>, vector<1x32x1xf32>
    %175 = vector.shape_cast %174 : vector<1x32x1xf32> to vector<32x1xf32>
    %176 = vector.shape_cast %173 : vector<32x1xf32> to vector<1x32x1xf32>
    tpu.vector_store %arg8[%c0_156, %c0_157, %c0_158], %176 {strides = array<i32>} : memref<1x32x1xf32, #tpu.memory_space<vmem>>, vector<1x32x1xf32>,
    return
  }
  func.func @transform_0(%arg0: i32) -> (i32, i32, i32) {
    %c0_i32 = arith.constant 0 : i32
    %c0_i32_0 = arith.constant 0 : i32
    %c0_i32_1 = arith.constant 0 : i32
    return %arg0, %c0_i32, %c0_i32_0 : i32, i32, i32
  }
  func.func @transform_1(%arg0: i32) -> (i32, i32) {
    %c0_i32 = arith.constant 0 : i32
    %c0_i32_0 = arith.constant 0 : i32
    %c0_i32_1 = arith.constant 0 : i32
    return %c0_i32, %c0_i32_0 : i32, i32
  }
  func.func @transform_2(%arg0: i32) -> (i32, i32, i32) {
    %c0_i32 = arith.constant 0 : i32
    %c0_i32_0 = arith.constant 0 : i32
    %c0_i32_1 = arith.constant 0 : i32
    %c0_i32_2 = arith.constant 0 : i32
    return %c0_i32, %c0_i32_0, %c0_i32_1 : i32, i32, i32
  }
  func.func @transform_3(%arg0: i32) -> (i32, i32, i32) {
    %c0_i32 = arith.constant 0 : i32
    %c0_i32_0 = arith.constant 0 : i32
    %c0_i32_1 = arith.constant 0 : i32
    %c0_i32_2 = arith.constant 0 : i32
    return %c0_i32, %c0_i32_0, %c0_i32_1 : i32, i32, i32
  }
  func.func @transform_4(%arg0: i32) -> (i32, i32, i32) {
    %c0_i32 = arith.constant 0 : i32
    %c0_i32_0 = arith.constant 0 : i32
    %c0_i32_1 = arith.constant 0 : i32
    %c0_i32_2 = arith.constant 0 : i32
    return %c0_i32, %c0_i32_0, %c0_i32_1 : i32, i32, i32
  }
  func.func @transform_5(%arg0: i32) -> (i32, i32, i32) {
    %c0_i32 = arith.constant 0 : i32
    %c0_i32_0 = arith.constant 0 : i32
    %c0_i32_1 = arith.constant 0 : i32
    %c0_i32_2 = arith.constant 0 : i32
    return %c0_i32, %c0_i32_0, %c0_i32_1 : i32, i32, i32
  }
  func.func @transform_6(%arg0: i32) -> (i32, i32, i32) {
    %c0_i32 = arith.constant 0 : i32
    %c0_i32_0 = arith.constant 0 : i32
    %c0_i32_1 = arith.constant 0 : i32
    %c0_i32_2 = arith.constant 0 : i32
    return %c0_i32, %c0_i32_0, %c0_i32_1 : i32, i32, i32
  }
  func.func @transform_7(%arg0: i32) -> (i32, i32, i32) {
    %c0_i32 = arith.constant 0 : i32
    %c0_i32_0 = arith.constant 0 : i32
    %c0_i32_1 = arith.constant 0 : i32
    return %arg0, %c0_i32, %c0_i32_0 : i32, i32, i32
  }
}

</mosaic_0001>

<llo_original>
// kernel: condition_net_forward.1
$region0: #{condition_net_forward.1}
  #allocation0 [shape = 'u32[]', space=smem, size = 0x4, offset = 0x4, fixed_abs, tag = 'smem constant byte address 0x4 - core index']
  #allocation1 [shape = 'u32[144,128]{1,0:T(1,128)}', space=vmem, size = 0x12000, scoped, tag = 'internal scratch']
  %s0 = inlined_call_operand.vmem [shape: bf16[2,147,196], index: 0, kind: input, shape index: {}]
  %s1 = inlined_call_operand.vmem [shape: bf16[32,147], index: 1, kind: input, shape index: {}]
  %s2 = inlined_call_operand.vmem [shape: bf16[9,32,32], index: 2, kind: input, shape index: {}]
  %s3 = inlined_call_operand.vmem [shape: bf16[9,32,32], index: 3, kind: input, shape index: {}]
  %s4 = inlined_call_operand.vmem [shape: bf16[9,196,49], index: 4, kind: input, shape index: {}]
  %s5 = inlined_call_operand.vmem [shape: bf16[9,49,16], index: 5, kind: input, shape index: {}]
  %s6 = inlined_call_operand.vmem [shape: f32[3,32,1], index: 6, kind: input, shape index: {}]
  %s7 = inlined_call_operand.vmem [shape: f32[2,32,1], index: 7, kind: output, shape index: {}]
  %s8 = sld [smem:[#allocation0]]
  $region61: #{condition_net_forward.1} parent=0
    _
  %s10 = ssub.s32 1, %s8
  %s11 = scalar_select 0, %s10, %s8
  loop: start=0, step=1, limit=4
  $region2: #{condition_net_forward.1} parent=0 // loop_pre_header
    _
  $region3: #{condition_net_forward.1} parent=0 // loop_header
    %s13 = sphi 0, %s17
    %p14 = scmp.ge.s32.totalorder %s13, 4
    %s23 = sphi 0, %s25
    %s26 = sphi 0, %s23
    %s27 = sphi 0, %s26
    %s43 = sphi 0, %s27
    %s47 = sphi 0, %s47
    %s49 = sphi 0, %s47
    %s50 = sphi 0, %s49
    %s64 = sphi 0, %s50
    %s68 = sphi 0, %s68
    %s70 = sphi 0, %s68
    %s71 = sphi 0, %s70
    %s85 = sphi 0, %s71
    %s89 = sphi 0, %s89
    %s91 = sphi 0, %s89
    %s92 = sphi 0, %s91
    %s106 = sphi 0, %s92
    %s110 = sphi 0, %s110
    %s112 = sphi 0, %s110
    %s113 = sphi 0, %s112
    %s127 = sphi 0, %s113
    %s131 = sphi 0, %s131
    %s133 = sphi 0, %s131
    %s134 = sphi 0, %s133
    %s148 = sphi 0, %s134
    %s152 = sphi 0, %s152
    %s154 = sphi 0, %s152
    %s155 = sphi 0, %s154
    %s169 = sphi 0, %s155
    %s175 = sphi 0, %s177
    %s178 = sphi 0, %s175
    %s179 = sphi 0, %s178
    %s195 = sphi 0, %s179
  $region4: #{condition_net_forward.1} parent=0 // loop_header_branch
    %16 = sbr.rel (%p14) target = $region8
  $region5: #{condition_net_forward.1} parent=0 // loop_body
    %s18 = ssub.s32 %s13, 1
    %s19 = ssub.s32 %s13, 2
    %s20 = sadd.s32 %s13, 1
    %s21 = ssub.s32 %s13, %s20
    %p22 = scmp.eq.s32.totalorder %s21, 0
    %s24 = sadd.s32 %s23, 1
    %s25 = scalar_select %p22, %s23, %s24
    %p28 = pneg %p22
    %p29 = scmp.eq.s32.totalorder %s13, 1
    %p30 = por %p28, %p29
    %p31 = scmp.ne.s32.totalorder %s23, %s26
    %p32 = scmp.eq.s32.totalorder %s13, 0
    %p33 = por %p31, %p32
    %p34 = scmp.ne.s32.totalorder %s23, %s26
    %p35 = scmp.eq.s32.totalorder %s18, 1
    %p36 = por %p34, %p35
    %p37 = scmp.ne.s32.totalorder %s26, %s27
    %p38 = scmp.eq.s32.totalorder %s18, 0
    %p39 = por %p37, %p38
    %p40 = scmp.ne.s32.totalorder %s26, %s27
    %p41 = scmp.eq.s32.totalorder %s19, 1
    %p42 = por %p40, %p41
    %p44 = scmp.ne.s32.totalorder %s27, %s43
    %p45 = scmp.eq.s32.totalorder %s19, 0
    %p46 = por %p44, %p45
    %s48 = sadd.s32 %s47, 1
    %p51 = scmp.eq.s32.totalorder %s13, 1
    %p52 = scmp.ne.s32.totalorder %s47, %s49
    %p53 = scmp.eq.s32.totalorder %s13, 0
    %p54 = por %p52, %p53
    %p55 = scmp.ne.s32.totalorder %s47, %s49
    %p56 = scmp.eq.s32.totalorder %s18, 1
    %p57 = por %p55, %p56
    %p58 = scmp.ne.s32.totalorder %s49, %s50
    %p59 = scmp.eq.s32.totalorder %s18, 0
    %p60 = por %p58, %p59
    %p61 = scmp.ne.s32.totalorder %s49, %s50
    %p62 = scmp.eq.s32.totalorder %s19, 1
    %p63 = por %p61, %p62
    %p65 = scmp.ne.s32.totalorder %s50, %s64
    %p66 = scmp.eq.s32.totalorder %s19, 0
    %p67 = por %p65, %p66
    %s69 = sadd.s32 %s68, 1
    %p72 = scmp.eq.s32.totalorder %s13, 1
    %p73 = scmp.ne.s32.totalorder %s68, %s70
    %p74 = scmp.eq.s32.totalorder %s13, 0
    %p75 = por %p73, %p74
    %p76 = scmp.ne.s32.totalorder %s68, %s70
    %p77 = scmp.eq.s32.totalorder %s18, 1
    %p78 = por %p76, %p77
    %p79 = scmp.ne.s32.totalorder %s70, %s71
    %p80 = scmp.eq.s32.totalorder %s18, 0
    %p81 = por %p79, %p80
    %p82 = scmp.ne.s32.totalorder %s70, %s71
    %p83 = scmp.eq.s32.totalorder %s19, 1
    %p84 = por %p82, %p83
    %p86 = scmp.ne.s32.totalorder %s71, %s85
    %p87 = scmp.eq.s32.totalorder %s19, 0
    %p88 = por %p86, %p87
    %s90 = sadd.s32 %s89, 1
    %p93 = scmp.eq.s32.totalorder %s13, 1
    %p94 = scmp.ne.s32.totalorder %s89, %s91
    %p95 = scmp.eq.s32.totalorder %s13, 0
    %p96 = por %p94, %p95
    %p97 = scmp.ne.s32.totalorder %s89, %s91
    %p98 = scmp.eq.s32.totalorder %s18, 1
    %p99 = por %p97, %p98
    %p100 = scmp.ne.s32.totalorder %s91, %s92
    %p101 = scmp.eq.s32.totalorder %s18, 0
    %p102 = por %p100, %p101
    %p103 = scmp.ne.s32.totalorder %s91, %s92
    %p104 = scmp.eq.s32.totalorder %s19, 1
    %p105 = por %p103, %p104
    %p107 = scmp.ne.s32.totalorder %s92, %s106
    %p108 = scmp.eq.s32.totalorder %s19, 0
    %p109 = por %p107, %p108
    %s111 = sadd.s32 %s110, 1
    %p114 = scmp.eq.s32.totalorder %s13, 1
    %p115 = scmp.ne.s32.totalorder %s110, %s112
    %p116 = scmp.eq.s32.totalorder %s13, 0
    %p117 = por %p115, %p116
    %p118 = scmp.ne.s32.totalorder %s110, %s112
    %p119 = scmp.eq.s32.totalorder %s18, 1
    %p120 = por %p118, %p119
    %p121 = scmp.ne.s32.totalorder %s112, %s113
    %p122 = scmp.eq.s32.totalorder %s18, 0
    %p123 = por %p121, %p122
    %p124 = scmp.ne.s32.totalorder %s112, %s113
    %p125 = scmp.eq.s32.totalorder %s19, 1
    %p126 = por %p124, %p125
    %p128 = scmp.ne.s32.totalorder %s113, %s127
    %p129 = scmp.eq.s32.totalorder %s19, 0
    %p130 = por %p128, %p129
    %s132 = sadd.s32 %s131, 1
    %p135 = scmp.eq.s32.totalorder %s13, 1
    %p136 = scmp.ne.s32.totalorder %s131, %s133
    %p137 = scmp.eq.s32.totalorder %s13, 0
    %p138 = por %p136, %p137
    %p139 = scmp.ne.s32.totalorder %s131, %s133
    %p140 = scmp.eq.s32.totalorder %s18, 1
    %p141 = por %p139, %p140
    %p142 = scmp.ne.s32.totalorder %s133, %s134
    %p143 = scmp.eq.s32.totalorder %s18, 0
    %p144 = por %p142, %p143
    %p145 = scmp.ne.s32.totalorder %s133, %s134
    %p146 = scmp.eq.s32.totalorder %s19, 1
    %p147 = por %p145, %p146
    %p149 = scmp.ne.s32.totalorder %s134, %s148
    %p150 = scmp.eq.s32.totalorder %s19, 0
    %p151 = por %p149, %p150
    %s153 = sadd.s32 %s152, 1
    %p156 = scmp.eq.s32.totalorder %s13, 1
    %p157 = scmp.ne.s32.totalorder %s152, %s154
    %p158 = scmp.eq.s32.totalorder %s13, 0
    %p159 = por %p157, %p158
    %p160 = scmp.ne.s32.totalorder %s152, %s154
    %p161 = scmp.eq.s32.totalorder %s18, 1
    %p162 = por %p160, %p161
    %p163 = scmp.ne.s32.totalorder %s154, %s155
    %p164 = scmp.eq.s32.totalorder %s18, 0
    %p165 = por %p163, %p164
    %p166 = scmp.ne.s32.totalorder %s154, %s155
    %p167 = scmp.eq.s32.totalorder %s19, 1
    %p168 = por %p166, %p167
    %p170 = scmp.ne.s32.totalorder %s155, %s169
    %p171 = scmp.eq.s32.totalorder %s19, 0
    %p172 = por %p170, %p171
    %s173 = ssub.s32 %s13, %s20
    %p174 = scmp.eq.s32.totalorder %s173, 0
    %s176 = sadd.s32 %s175, 1
    %s177 = scalar_select %p174, %s175, %s176
    %p180 = pneg %p174
    %p181 = scmp.eq.s32.totalorder %s13, 1
    %p182 = por %p180, %p181
    %p183 = scmp.ne.s32.totalorder %s175, %s178
    %p184 = scmp.eq.s32.totalorder %s13, 0
    %p185 = por %p183, %p184
    %p186 = scmp.ne.s32.totalorder %s175, %s178
    %p187 = scmp.eq.s32.totalorder %s18, 1
    %p188 = por %p186, %p187
    %p189 = scmp.ne.s32.totalorder %s178, %s179
    %p190 = scmp.eq.s32.totalorder %s18, 0
    %p191 = por %p189, %p190
    %p192 = scmp.ne.s32.totalorder %s178, %s179
    %p193 = scmp.eq.s32.totalorder %s19, 1
    %p194 = por %p192, %p193
    %p196 = scmp.ne.s32.totalorder %s179, %s195
    %p197 = scmp.eq.s32.totalorder %s19, 0
    %p198 = por %p196, %p197
    %p199 = scmp.le.s32.totalorder 1, %s13
    %p200 = scmp.lt.s32.totalorder %s13, 3
    %p201 = pnand %p199, %p200
    %p202 = pneg %p201
    // Predicated region
    $region9: #{condition_net_forward.1} parent=5 // pred_check
      _
    $region10: #{condition_net_forward.1} parent=5 // pred_check_branch
      %204 = sbr.rel (%p201) target = $region12
    $region11: #{condition_net_forward.1} parent=5 // pred_region
      %s205 = ssub.s32 %s13, 1
      // Predicated region
      $region13: #{condition_net_forward.1} parent=11 // pred_check
        %p206 = pneg %p60
      $region14: #{condition_net_forward.1} parent=11 // pred_check_branch
        %208 = sbr.rel (%p206) target = $region16
      $region15: #{condition_net_forward.1} parent=11 // pred_region
        _
      $region16: #{condition_net_forward.1} parent=11 // pred_fallthru
        _
      // Predicated region
      $region17: #{condition_net_forward.1} parent=11 // pred_check
        %p209 = pneg %p81
      $region18: #{condition_net_forward.1} parent=11 // pred_check_branch
        %211 = sbr.rel (%p209) target = $region20
      $region19: #{condition_net_forward.1} parent=11 // pred_region
        _
      $region20: #{condition_net_forward.1} parent=11 // pred_fallthru
        _
      // Predicated region
      $region21: #{condition_net_forward.1} parent=11 // pred_check
        %p212 = pneg %p102
      $region22: #{condition_net_forward.1} parent=11 // pred_check_branch
        %214 = sbr.rel (%p212) target = $region24
      $region23: #{condition_net_forward.1} parent=11 // pred_region
        _
      $region24: #{condition_net_forward.1} parent=11 // pred_fallthru
        _
      // Predicated region
      $region25: #{condition_net_forward.1} parent=11 // pred_check
        %p215 = pneg %p123
      $region26: #{condition_net_forward.1} parent=11 // pred_check_branch
        %217 = sbr.rel (%p215) target = $region28
      $region27: #{condition_net_forward.1} parent=11 // pred_region
        _
      $region28: #{condition_net_forward.1} parent=11 // pred_fallthru
        _
      // Predicated region
      $region29: #{condition_net_forward.1} parent=11 // pred_check
        %p218 = pneg %p144
      $region30: #{condition_net_forward.1} parent=11 // pred_check_branch
        %220 = sbr.rel (%p218) target = $region32
      $region31: #{condition_net_forward.1} parent=11 // pred_region
        _
      $region32: #{condition_net_forward.1} parent=11 // pred_fallthru
        _
      // Predicated region
      $region33: #{condition_net_forward.1} parent=11 // pred_check
        %p221 = pneg %p165
      $region34: #{condition_net_forward.1} parent=11 // pred_check_branch
        %223 = sbr.rel (%p221) target = $region36
      $region35: #{condition_net_forward.1} parent=11 // pred_region
        _
      $region36: #{condition_net_forward.1} parent=11 // pred_fallthru
        _
    $region12: #{condition_net_forward.1} parent=5 // pred_fallthru
      _
    %p224 = scmp.lt.s32.totalorder %s13, 2
    // Predicated region
    $region37: #{condition_net_forward.1} parent=5 // pred_check
      %p225 = pneg %p224
    $region38: #{condition_net_forward.1} parent=5 // pred_check_branch
      %227 = sbr.rel (%p225) target = $region40
    $region39: #{condition_net_forward.1} parent=5 // pred_region
      // Predicated region
      $region41: #{condition_net_forward.1} parent=39 // pred_check
        %p228 = pneg %p33
      $region42: #{condition_net_forward.1} parent=39 // pred_check_branch
        %230 = sbr.rel (%p228) target = $region44
      $region43: #{condition_net_forward.1} parent=39 // pred_region
        %p231 = scmp.lt.s32.totalorder %s13, 1
        %s232 = scalar_select %p231, %s13, 1
        %s233 = smul.addr %s232, 38
        %s234 = smul.addr %s233, 4
        %s235 = scalar_lea.vmem %s0, %s234
      $region44: #{condition_net_forward.1} parent=39 // pred_fallthru
        _
    $region40: #{condition_net_forward.1} parent=5 // pred_fallthru
      _
    %p236 = scmp.le.s32.totalorder 1, %s13
    %p237 = scmp.lt.s32.totalorder %s13, 3
    %p238 = pnand %p236, %p237
    %p239 = pneg %p238
    // Predicated region
    $region45: #{condition_net_forward.1} parent=5 // pred_check
      _
    $region46: #{condition_net_forward.1} parent=5 // pred_check_branch
      %241 = sbr.rel (%p238) target = $region48
    $region47: #{condition_net_forward.1} parent=5 // pred_region
      %s242 = ssub.s32 %s13, 1
      %p243 = scmp.lt.s32.totalorder %s18, 1
      %s244 = scalar_select %p243, %s18, 1
      %s245 = smul.addr %s244, 38
      %s246 = smul.addr %s245, 4
      %s247 = scalar_lea.vmem %s0, %s246
      %p248 = pneg %p39
      %p249 = pneg %p36
      %p250 = pneg %p60
      %p251 = pneg %p57
      %p252 = pneg %p81
      %p253 = pneg %p78
      %p254 = pneg %p102
      %p255 = pneg %p99
      %p256 = pneg %p123
      %p257 = pneg %p120
      %p258 = pneg %p144
      %p259 = pneg %p141
      %p260 = pneg %p165
      %p261 = pneg %p162
      %p262 = pneg %p191
      %p263 = pneg %p188
      %p264 = scmp.lt.s32.totalorder %s18, 1
      %s265 = scalar_select %p264, %s18, 1
      %s266 = smul.addr %s265, 4
      %s267 = smul.addr %s266, 8
      %s268 = scalar_lea.vmem %s7, %s267
      %p269 = scmp.lt.s32.totalorder %s18, 1
      %s270 = scalar_select %p269, %s18, 1
      %s271 = smul.addr %s270, 38
      %s272 = smul.addr %s271, 4
      %s273 = scalar_lea.vmem %s0, %s272
      %p274 = scmp.lt.s32.totalorder %s18, 1
      %s275 = scalar_select %p274, %s18, 1
      %s276 = smul.addr %s275, 4
      %s277 = smul.addr %s276, 8
      %s278 = scalar_lea.vmem %s7, %s277
      %v280 = vld [vmem:[%s1] sm:$0xff]
      %v281 = vld [vmem:[%s1 + $0x8] sm:$0xff]
      %v282 = vld [vmem:[%s1 + $0x10] sm:$0xff]
      %v283 = vld [vmem:[%s1 + $0x18] sm:$0xff]
      %v284 = vld [vmem:[%s273] sm:$0xff]
      %v285 = vld [vmem:[%s273 + $0x8] sm:$0xff]
      %v286 = vld [vmem:[%s273 + $0x10] sm:$0xff]
      %v287 = vld [vmem:[%s273 + $0x18] sm:$0xff]
      %v288 = vld [vmem:[%s273 + $0x20] sm:$0xff]
      %v289 = vld [vmem:[%s273 + $0x28] sm:$0xff]
      %v290 = vld [vmem:[%s273 + $0x30] sm:$0xff]
      %v291 = vld [vmem:[%s273 + $0x38] sm:$0xff]
      %v292 = vld [vmem:[%s273 + $0x40] sm:$0xff]
      %v293 = vld [vmem:[%s273 + $0x48] sm:$0xff]
      %v294 = vld [vmem:[%s273 + $0x50] sm:$0xff]
      %v295 = vld [vmem:[%s273 + $0x58] sm:$0xff]
      %v296 = vld [vmem:[%s273 + $0x60] sm:$0xff]
      %v297 = vld [vmem:[%s273 + $0x68] sm:$0xff]
      %v298 = vld [vmem:[%s273 + $0x70] sm:$0xff]
      %v299 = vld [vmem:[%s273 + $0x78] sm:$0xff]
      %v300 = vld [vmem:[%s273 + $0x80] sm:$0xff]
      %v301 = vld [vmem:[%s273 + $0x88] sm:$0xff]
      %v302 = vld [vmem:[%s273 + $0x90] sm:$0x33]
      %v303 = vld [vmem:[%s6] sm:$0xff]
      %v304 = vld [vmem:[%s6 + $0x8] sm:$0xff]
      %v305 = vld [vmem:[%s6 + $0x10] sm:$0xff]
      %v306 = vld [vmem:[%s6 + $0x18] sm:$0xff]
      %308 = vset.pattern.permute.xlu0 0
      %309 = vperm.xlu0 %308, %v303
      %v310 = vpop.permute.xlu0 %309
      %313 = vset.pattern.permute.xlu0 0
      %314 = vperm.xlu0 %313, %v304
      %v315 = vpop.permute.xlu0 %314
      %318 = vset.pattern.permute.xlu0 0
      %319 = vperm.xlu0 %318, %v305
      %v320 = vpop.permute.xlu0 %319
      %323 = vset.pattern.permute.xlu0 0
      %324 = vperm.xlu0 %323, %v306
      %v325 = vpop.permute.xlu0 %324
      %v331 = vunpack.c.l.b16 %v280
      %v332 = vunpack.c.h.b16 %v280
      %v333 = vunpack.c.l.b16 %v281
      %v334 = vunpack.c.h.b16 %v281
      %v335 = vunpack.c.l.b16 %v282
      %v336 = vunpack.c.h.b16 %v282
      %v337 = vunpack.c.l.b16 %v283
      %v338 = vunpack.c.h.b16 %v283
      %v339 = vpack.c.b16 %v333, %v331
      %v340 = vpack.c.b16 %v334, %v332
      %v341 = vpack.c.b16 %v337, %v335
      %v342 = vpack.c.b16 %v338, %v336
      %v364 = vunpack.c.l.b16 %v284
      %v365 = vunpack.c.h.b16 %v284
      %v366 = vunpack.c.l.b16 %v285
      %v367 = vunpack.c.h.b16 %v285
      %v368 = vunpack.c.l.b16 %v286
      %v369 = vunpack.c.h.b16 %v286
      %v370 = vunpack.c.l.b16 %v287
      %v371 = vunpack.c.h.b16 %v287
      %v372 = vunpack.c.l.b16 %v288
      %v373 = vunpack.c.h.b16 %v288
      %v374 = vunpack.c.l.b16 %v289
      %v375 = vunpack.c.h.b16 %v289
      %v376 = vunpack.c.l.b16 %v290
      %v377 = vunpack.c.h.b16 %v290
      %v378 = vunpack.c.l.b16 %v291
      %v379 = vunpack.c.h.b16 %v291
      %v380 = vunpack.c.l.b16 %v292
      %v381 = vunpack.c.h.b16 %v292
      %v382 = vunpack.c.l.b16 %v293
      %v383 = vunpack.c.h.b16 %v293
      %v384 = vunpack.c.l.b16 %v294
      %v385 = vunpack.c.h.b16 %v294
      %v386 = vunpack.c.l.b16 %v295
      %v387 = vunpack.c.h.b16 %v295
      %v388 = vunpack.c.l.b16 %v296
      %v389 = vunpack.c.h.b16 %v296
      %v390 = vunpack.c.l.b16 %v297
      %v391 = vunpack.c.h.b16 %v297
      %v392 = vunpack.c.l.b16 %v298
      %v393 = vunpack.c.h.b16 %v298
      %v394 = vunpack.c.l.b16 %v299
      %v395 = vunpack.c.h.b16 %v299
      %v396 = vunpack.c.l.b16 %v300
      %v397 = vunpack.c.h.b16 %v300
      %v398 = vunpack.c.l.b16 %v301
      %v399 = vunpack.c.h.b16 %v301
      %v400 = vunpack.c.l.b16 %v302
      %v401 = vunpack.c.h.b16 %v302
      %v402 = vpack.c.b16 %v366, %v364
      %v403 = vpack.c.b16 %v367, %v365
      %v404 = vpack.c.b16 %v370, %v368
      %v405 = vpack.c.b16 %v371, %v369
      %v406 = vpack.c.b16 %v374, %v372
      %v407 = vpack.c.b16 %v375, %v373
      %v408 = vpack.c.b16 %v378, %v376
      %v409 = vpack.c.b16 %v379, %v377
      %v410 = vpack.c.b16 %v382, %v380
      %v411 = vpack.c.b16 %v383, %v381
      %v412 = vpack.c.b16 %v386, %v384
      %v413 = vpack.c.b16 %v387, %v385
      %v414 = vpack.c.b16 %v390, %v388
      %v415 = vpack.c.b16 %v391, %v389
      %v416 = vpack.c.b16 %v394, %v392
      %v417 = vpack.c.b16 %v395, %v393
      %v418 = vpack.c.b16 %v398, %v396
      %v419 = vpack.c.b16 %v399, %v397
      %v420 = vpack.c.b16 %v400, %v400
      %v421 = vpack.c.b16 %v401, %v401
      %vm440 = vcmask 154624
      %v442 = vsel %vm440, %v340, 0
      %v445 = vsel %vm440, %v342, 0
      %vm447 = vcmask 1040384
      %vm448 = vcmask 1041408
      %v449 = vsel %vm447, 4294967295, 65535
      %v450 = vsel %vm448, %v449, 0
      %v452 = vand.u32 %v420, %v450
      %v455 = vand.u32 %v421, %v450
      %457 = vmatprep.subr.bf16.mxu0 %v417
      %458 = vmatpush1.bf16.msra.mxu0 %v416
      %459 = vmatprep.subr.bf16.mxu0 %v415
      %460 = vmatpush1.bf16.msra.mxu0 %v414
      %461 = vmatprep.subr.bf16.mxu0 %v413
      %462 = vmatpush1.bf16.msra.mxu0 %v412
      %463 = vmatprep.subr.bf16.mxu0 %v411
      %464 = vmatpush1.bf16.msra.mxu0 %v410
      %465 = vmatprep.subr.bf16.mxu0 %v409
      %466 = vmatpush1.bf16.msra.mxu0 %v408
      %467 = vmatprep.subr.bf16.mxu0 %v407
      %468 = vmatpush1.bf16.msra.mxu0 %v406
      %469 = vmatprep.subr.bf16.mxu0 %v405
      %470 = vmatpush1.bf16.msra.mxu0 %v404
      %471 = vmatprep.subr.bf16.mxu0 %v403
      %472 = vmatpush1.bf16.msra.mxu0 %v402
      %473 = vmatprep.subr.bf16.mxu0 0
      %474 = vmatpush2.bf16.msra.mxu0 0
      %475 = vmatprep.subr.bf16.mxu0 0
      %476 = vmatpush2.bf16.msra.mxu0 0
      %477 = vmatprep.subr.bf16.mxu0 0
      %478 = vmatpush2.bf16.msra.mxu0 0
      %479 = vmatprep.subr.bf16.mxu0 0
      %480 = vmatpush2.bf16.msra.mxu0 0
      %481 = vmatprep.subr.bf16.mxu0 0
      %482 = vmatpush2.bf16.msra.mxu0 0
      %483 = vmatprep.subr.bf16.mxu0 0
      %484 = vmatpush2.bf16.msra.mxu0 0
      %485 = vmatprep.subr.bf16.mxu0 %v455
      %486 = vmatpush2.bf16.msra.mxu0 %v452
      %487 = vmatprep.subr.bf16.mxu0 %v419
      %488 = vmatpush2.bf16.msra.mxu0 %v418
      %489 = vmatprep.mubr.bf16.mxu0 %v442
      %490 = vmatmul.mubr.bf16.gmra.mxu0 %v339
      %v491 = vpop.f32.mrf.mxu0
      %v492 = vadd.f32 %v310, %v491
      %v493 = vpop.f32.mrf.mxu0
      %v494 = vadd.f32 %v310, %v493
      %v495 = vpop.f32.mrf.mxu0
      %v496 = vadd.f32 %v315, %v495
      %v497 = vpop.f32.mrf.mxu0
      %v498 = vadd.f32 %v315, %v497
      %499 = vmatprep.mubr.bf16.mxu0 %v445
      %500 = vmatmul.mubr.bf16.gmra.mxu0 %v341
      %v501 = vpop.f32.mrf.mxu0
      %v502 = vadd.f32 %v320, %v501
      %v503 = vpop.f32.mrf.mxu0
      %v504 = vadd.f32 %v320, %v503
      %v505 = vpop.f32.mrf.mxu0
      %v506 = vadd.f32 %v325, %v505
      %v507 = vpop.f32.mrf.mxu0
      %v508 = vadd.f32 %v325, %v507
      %509 = vdwg.mxu0
      %v510 = vmax.f32 %v492, 0.0
      %v511 = vmax.f32 %v494, 0.0
      %v512 = vmax.f32 %v496, 0.0
      %v513 = vmax.f32 %v498, 0.0
      %v514 = vmax.f32 %v502, 0.0
      %v515 = vmax.f32 %v504, 0.0
      %v516 = vmax.f32 %v506, 0.0
      %v517 = vmax.f32 %v508, 0.0
      %v518 = vpack.c.bf16 %v512, %v510
      %v519 = vpack.c.bf16 %v513, %v511
      %v520 = vpack.c.bf16 %v516, %v514
      %v521 = vpack.c.bf16 %v517, %v515
      %v522 = vld [vmem:[%s4] sm:$0xf]
      %v523 = vld [vmem:[%s4 + $0x4] sm:$0xf]
      %v524 = vld [vmem:[%s4 + $0x8] sm:$0xf]
      %v525 = vld [vmem:[%s4 + $0xc] sm:$0xf]
      %v526 = vld [vmem:[%s4 + $0x10] sm:$0xf]
      %v527 = vld [vmem:[%s4 + $0x14] sm:$0xf]
      %v528 = vld [vmem:[%s4 + $0x18] sm:$0xf]
      %v529 = vld [vmem:[%s4 + $0x1c] sm:$0xf]
      %v530 = vld [vmem:[%s4 + $0x20] sm:$0xf]
      %v531 = vld [vmem:[%s4 + $0x24] sm:$0xf]
      %v532 = vld [vmem:[%s4 + $0x28] sm:$0xf]
      %v533 = vld [vmem:[%s4 + $0x2c] sm:$0xf]
      %v534 = vld [vmem:[%s4 + $0x30] sm:$0xf]
      %v535 = vld [vmem:[%s4 + $0x34] sm:$0xf]
      %v536 = vld [vmem:[%s4 + $0x38] sm:$0xf]
      %v537 = vld [vmem:[%s4 + $0x3c] sm:$0xf]
      %v538 = vld [vmem:[%s4 + $0x40] sm:$0xf]
      %v539 = vld [vmem:[%s4 + $0x44] sm:$0xf]
      %v540 = vld [vmem:[%s4 + $0x48] sm:$0xf]
      %v541 = vld [vmem:[%s4 + $0x4c] sm:$0xf]
      %v542 = vld [vmem:[%s4 + $0x50] sm:$0xf]
      %v543 = vld [vmem:[%s4 + $0x54] sm:$0xf]
      %v544 = vld [vmem:[%s4 + $0x58] sm:$0xf]
      %v545 = vld [vmem:[%s4 + $0x5c] sm:$0xf]
      %v546 = vld [vmem:[%s4 + $0x60] sm:$0x3]
      %v572 = vunpack.c.l.b16 %v522
      %v573 = vunpack.c.l.b16 %v523
      %v574 = vunpack.c.l.b16 %v524
      %v575 = vunpack.c.l.b16 %v525
      %v576 = vunpack.c.l.b16 %v526
      %v577 = vunpack.c.l.b16 %v527
      %v578 = vunpack.c.l.b16 %v528
      %v579 = vunpack.c.l.b16 %v529
      %v580 = vunpack.c.l.b16 %v530
      %v581 = vunpack.c.l.b16 %v531
      %v582 = vunpack.c.l.b16 %v532
      %v583 = vunpack.c.l.b16 %v533
      %v584 = vunpack.c.l.b16 %v534
      %v585 = vunpack.c.l.b16 %v535
      %v586 = vunpack.c.l.b16 %v536
      %v587 = vunpack.c.l.b16 %v537
      %v588 = vunpack.c.l.b16 %v538
      %v589 = vunpack.c.l.b16 %v539
      %v590 = vunpack.c.l.b16 %v540
      %v591 = vunpack.c.l.b16 %v541
      %v592 = vunpack.c.l.b16 %v542
      %v593 = vunpack.c.l.b16 %v543
      %v594 = vunpack.c.l.b16 %v544
      %v595 = vunpack.c.l.b16 %v545
      %v596 = vunpack.c.l.b16 %v546
      %v597 = vpack.c.b16 %v573, %v572
      %v598 = vpack.c.b16 %v575, %v574
      %v599 = vpack.c.b16 %v577, %v576
      %v600 = vpack.c.b16 %v579, %v578
      %v601 = vpack.c.b16 %v581, %v580
      %v602 = vpack.c.b16 %v583, %v582
      %v603 = vpack.c.b16 %v585, %v584
      %v604 = vpack.c.b16 %v587, %v586
      %v605 = vpack.c.b16 %v589, %v588
      %v606 = vpack.c.b16 %v591, %v590
      %v607 = vpack.c.b16 %v593, %v592
      %v608 = vpack.c.b16 %v595, %v594
      %v609 = vpack.c.b16 %v596, %v596
      %vm622 = vcmask 556032
      %v624 = vsel %vm622, %v519, 0
      %v627 = vsel %vm622, %v521, 0
      %v630 = vsel %vm448, %v609, 0
      %632 = vmatprep.subr.bf16.mxu0 0
      %633 = vmatpush1.bf16.msra.mxu0 %v604
      %634 = vmatprep.subr.bf16.mxu0 0
      %635 = vmatpush1.bf16.msra.mxu0 %v603
      %636 = vmatprep.subr.bf16.mxu0 0
      %637 = vmatpush1.bf16.msra.mxu0 %v602
      %638 = vmatprep.subr.bf16.mxu0 0
      %639 = vmatpush1.bf16.msra.mxu0 %v601
      %640 = vmatprep.subr.bf16.mxu0 0
      %641 = vmatpush1.bf16.msra.mxu0 %v600
      %642 = vmatprep.subr.bf16.mxu0 0
      %643 = vmatpush1.bf16.msra.mxu0 %v599
      %644 = vmatprep.subr.bf16.mxu0 0
      %645 = vmatpush1.bf16.msra.mxu0 %v598
      %646 = vmatprep.subr.bf16.mxu0 0
      %647 = vmatpush1.bf16.msra.mxu0 %v597
      %648 = vmatprep.subr.bf16.mxu0 0
      %649 = vmatpush2.bf16.msra.mxu0 0
      %650 = vmatprep.subr.bf16.mxu0 0
      %651 = vmatpush2.bf16.msra.mxu0 0
      %652 = vmatprep.subr.bf16.mxu0 0
      %653 = vmatpush2.bf16.msra.mxu0 0
      %654 = vmatprep.subr.bf16.mxu0 0
      %655 = vmatpush2.bf16.msra.mxu0 %v630
      %656 = vmatprep.subr.bf16.mxu0 0
      %657 = vmatpush2.bf16.msra.mxu0 %v608
      %658 = vmatprep.subr.bf16.mxu0 0
      %659 = vmatpush2.bf16.msra.mxu0 %v607
      %660 = vmatprep.subr.bf16.mxu0 0
      %661 = vmatpush2.bf16.msra.mxu0 %v606
      %662 = vmatprep.subr.bf16.mxu0 0
      %663 = vmatpush2.bf16.msra.mxu0 %v605
      %664 = vmatprep.mubr.bf16.mxu0 %v624
      %665 = vmatmul.mubr.bf16.gmra.mxu0 %v518
      %v666 = vpop.f32.mrf.mxu0
      %v667 = vadd.f32 0.0, %v666
      %v668 = vpop.f32.mrf.mxu0
      %v669 = vpop.f32.mrf.mxu0
      %v670 = vadd.f32 0.0, %v669
      %v671 = vpop.f32.mrf.mxu0
      %672 = vmatprep.mubr.bf16.mxu0 %v627
      %673 = vmatmul.mubr.bf16.gmra.mxu0 %v520
      %v674 = vpop.f32.mrf.mxu0
      %v675 = vadd.f32 0.0, %v674
      %v676 = vpop.f32.mrf.mxu0
      %v677 = vpop.f32.mrf.mxu0
      %v678 = vadd.f32 0.0, %v677
      %v679 = vpop.f32.mrf.mxu0
      %680 = vdwg.mxu0
      %v681 = vld [vmem:[%s2] sm:$0xf]
      %v682 = vld [vmem:[%s2 + $0x4] sm:$0xf]
      %v683 = vld [vmem:[%s2 + $0x8] sm:$0xf]
      %v684 = vld [vmem:[%s2 + $0xc] sm:$0xf]
      %v685 = vpack.c.bf16 %v670, %v667
      %v686 = vpack.c.bf16 %v678, %v675
      %s687 = scalar_lea.vmem %s4, 100
      %v688 = vld [vmem:[%s687] sm:$0xf]
      %v689 = vld [vmem:[%s687 + $0x4] sm:$0xf]
      %v690 = vld [vmem:[%s687 + $0x8] sm:$0xf]
      %v691 = vld [vmem:[%s687 + $0xc] sm:$0xf]
      %v692 = vld [vmem:[%s687 + $0x10] sm:$0xf]
      %v693 = vld [vmem:[%s687 + $0x14] sm:$0xf]
      %v694 = vld [vmem:[%s687 + $0x18] sm:$0xf]
      %v695 = vld [vmem:[%s687 + $0x1c] sm:$0xf]
      %v696 = vld [vmem:[%s687 + $0x20] sm:$0xf]
      %v697 = vld [vmem:[%s687 + $0x24] sm:$0xf]
      %v698 = vld [vmem:[%s687 + $0x28] sm:$0xf]
      %v699 = vld [vmem:[%s687 + $0x2c] sm:$0xf]
      %v700 = vld [vmem:[%s687 + $0x30] sm:$0xf]
      %v701 = vld [vmem:[%s687 + $0x34] sm:$0xf]
      %v702 = vld [vmem:[%s687 + $0x38] sm:$0xf]
      %v703 = vld [vmem:[%s687 + $0x3c] sm:$0xf]
      %v704 = vld [vmem:[%s687 + $0x40] sm:$0xf]
      %v705 = vld [vmem:[%s687 + $0x44] sm:$0xf]
      %v706 = vld [vmem:[%s687 + $0x48] sm:$0xf]
      %v707 = vld [vmem:[%s687 + $0x4c] sm:$0xf]
      %v708 = vld [vmem:[%s687 + $0x50] sm:$0xf]
      %v709 = vld [vmem:[%s687 + $0x54] sm:$0xf]
      %v710 = vld [vmem:[%s687 + $0x58] sm:$0xf]
      %v711 = vld [vmem:[%s687 + $0x5c] sm:$0xf]
      %v712 = vld [vmem:[%s687 + $0x60] sm:$0x3]
      %v738 = vunpack.c.l.b16 %v688
      %v739 = vunpack.c.l.b16 %v689
      %v740 = vunpack.c.l.b16 %v690
      %v741 = vunpack.c.l.b16 %v691
      %v742 = vunpack.c.l.b16 %v692
      %v743 = vunpack.c.l.b16 %v693
      %v744 = vunpack.c.l.b16 %v694
      %v745 = vunpack.c.l.b16 %v695
      %v746 = vunpack.c.l.b16 %v696
      %v747 = vunpack.c.l.b16 %v697
      %v748 = vunpack.c.l.b16 %v698
      %v749 = vunpack.c.l.b16 %v699
      %v750 = vunpack.c.l.b16 %v700
      %v751 = vunpack.c.l.b16 %v701
      %v752 = vunpack.c.l.b16 %v702
      %v753 = vunpack.c.l.b16 %v703
      %v754 = vunpack.c.l.b16 %v704
      %v755 = vunpack.c.l.b16 %v705
      %v756 = vunpack.c.l.b16 %v706
      %v757 = vunpack.c.l.b16 %v707
      %v758 = vunpack.c.l.b16 %v708
      %v759 = vunpack.c.l.b16 %v709
      %v760 = vunpack.c.l.b16 %v710
      %v761 = vunpack.c.l.b16 %v711
      %v762 = vunpack.c.l.b16 %v712
      %v763 = vpack.c.b16 %v739, %v738
      %v764 = vpack.c.b16 %v741, %v740
      %v765 = vpack.c.b16 %v743, %v742
      %v766 = vpack.c.b16 %v745, %v744
      %v767 = vpack.c.b16 %v747, %v746
      %v768 = vpack.c.b16 %v749, %v748
      %v769 = vpack.c.b16 %v751, %v750
      %v770 = vpack.c.b16 %v753, %v752
      %v771 = vpack.c.b16 %v755, %v754
      %v772 = vpack.c.b16 %v757, %v756
      %v773 = vpack.c.b16 %v759, %v758
      %v774 = vpack.c.b16 %v761, %v760
      %v775 = vpack.c.b16 %v762, %v762
      %v789 = vsel %vm448, %v775, 0
      %791 = vmatprep.subr.bf16.mxu0 0
      %792 = vmatpush1.bf16.msra.mxu0 %v770
      %793 = vmatprep.subr.bf16.mxu0 0
      %794 = vmatpush1.bf16.msra.mxu0 %v769
      %795 = vmatprep.subr.bf16.mxu0 0
      %796 = vmatpush1.bf16.msra.mxu0 %v768
      %797 = vmatprep.subr.bf16.mxu0 0
      %798 = vmatpush1.bf16.msra.mxu0 %v767
      %799 = vmatprep.subr.bf16.mxu0 0
      %800 = vmatpush1.bf16.msra.mxu0 %v766
      %801 = vmatprep.subr.bf16.mxu0 0
      %802 = vmatpush1.bf16.msra.mxu0 %v765
      %803 = vmatprep.subr.bf16.mxu0 0
      %804 = vmatpush1.bf16.msra.mxu0 %v764
      %805 = vmatprep.subr.bf16.mxu0 0
      %806 = vmatpush1.bf16.msra.mxu0 %v763
      %807 = vmatprep.subr.bf16.mxu0 0
      %808 = vmatpush2.bf16.msra.mxu0 0
      %809 = vmatprep.subr.bf16.mxu0 0
      %810 = vmatpush2.bf16.msra.mxu0 0
      %811 = vmatprep.subr.bf16.mxu0 0
      %812 = vmatpush2.bf16.msra.mxu0 0
      %813 = vmatprep.subr.bf16.mxu0 0
      %814 = vmatpush2.bf16.msra.mxu0 %v789
      %815 = vmatprep.subr.bf16.mxu0 0
      %816 = vmatpush2.bf16.msra.mxu0 %v774
      %817 = vmatprep.subr.bf16.mxu0 0
      %818 = vmatpush2.bf16.msra.mxu0 %v773
      %819 = vmatprep.subr.bf16.mxu0 0
      %820 = vmatpush2.bf16.msra.mxu0 %v772
      %821 = vmatprep.subr.bf16.mxu0 0
      %822 = vmatpush2.bf16.msra.mxu0 %v771
      %823 = vmatprep.mubr.bf16.mxu0 %v624
      %824 = vmatmul.mubr.bf16.gmra.mxu0 %v518
      %v825 = vpop.f32.mrf.mxu0
      %v826 = vadd.f32 0.0, %v825
      %v827 = vpop.f32.mrf.mxu0
      %v828 = vpop.f32.mrf.mxu0
      %v829 = vadd.f32 0.0, %v828
      %v830 = vpop.f32.mrf.mxu0
      %831 = vmatprep.mubr.bf16.mxu0 %v627
      %832 = vmatmul.mubr.bf16.gmra.mxu0 %v520
      %v833 = vpop.f32.mrf.mxu0
      %v834 = vadd.f32 0.0, %v833
      %v835 = vpop.f32.mrf.mxu0
      %v836 = vpop.f32.mrf.mxu0
      %v837 = vadd.f32 0.0, %v836
      %v838 = vpop.f32.mrf.mxu0
      %839 = vdwg.mxu0
      %s840 = scalar_lea.vmem %s2, 16
      %v841 = vld [vmem:[%s840] sm:$0xf]
      %v842 = vld [vmem:[%s840 + $0x4] sm:$0xf]
      %v843 = vld [vmem:[%s840 + $0x8] sm:$0xf]
      %v844 = vld [vmem:[%s840 + $0xc] sm:$0xf]
      %v845 = vpack.c.bf16 %v829, %v826
      %v846 = vpack.c.bf16 %v837, %v834
      %v851 = vunpack.c.l.b16 %v841
      %v852 = vunpack.c.l.b16 %v842
      %v853 = vunpack.c.l.b16 %v843
      %v854 = vunpack.c.l.b16 %v844
      %v855 = vpack.c.b16 %v852, %v851
      %v856 = vpack.c.b16 %v854, %v853
      %vm857 = vcmask 261120
      %v859 = vsel %vm857, %v855, 0
      %v862 = vsel %vm857, %v856, 0
      %864 = vmatprep.subr.bf16.mxu0 0
      %865 = vmatpush1.bf16.msra.mxu0 0
      %866 = vmatprep.subr.bf16.mxu0 0
      %867 = vmatpush1.bf16.msra.mxu0 0
      %868 = vmatprep.subr.bf16.mxu0 0
      %869 = vmatpush1.bf16.msra.mxu0 0
      %870 = vmatprep.subr.bf16.mxu0 0
      %871 = vmatpush1.bf16.msra.mxu0 0
      %872 = vmatprep.subr.bf16.mxu0 0
      %873 = vmatpush1.bf16.msra.mxu0 0
      %874 = vmatprep.subr.bf16.mxu0 0
      %875 = vmatpush1.bf16.msra.mxu0 0
      %876 = vmatprep.subr.bf16.mxu0 0
      %877 = vmatpush1.bf16.msra.mxu0 %v846
      %878 = vmatprep.subr.bf16.mxu0 0
      %879 = vmatpush1.bf16.msra.mxu0 %v845
      %880 = vmatprep.subr.bf16.mxu0 0
      %881 = vmatpush2.bf16.msra.mxu0 0
      %882 = vmatprep.subr.bf16.mxu0 0
      %883 = vmatpush2.bf16.msra.mxu0 0
      %884 = vmatprep.subr.bf16.mxu0 0
      %885 = vmatpush2.bf16.msra.mxu0 0
      %886 = vmatprep.subr.bf16.mxu0 0
      %887 = vmatpush2.bf16.msra.mxu0 0
      %888 = vmatprep.subr.bf16.mxu0 0
      %889 = vmatpush2.bf16.msra.mxu0 0
      %890 = vmatprep.subr.bf16.mxu0 0
      %891 = vmatpush2.bf16.msra.mxu0 0
      %892 = vmatprep.subr.bf16.mxu0 0
      %893 = vmatpush2.bf16.msra.mxu0 0
      %894 = vmatprep.subr.bf16.mxu0 0
      %895 = vmatpush2.bf16.msra.mxu0 0
      %896 = vmatprep.mubr.bf16.mxu0 0
      %897 = vmatmul.mubr.bf16.gmra.mxu0 %v859
      %v898 = vpop.f32.mrf.mxu0
      %v899 = vadd.f32 0.0, %v898
      %v900 = vpop.f32.mrf.mxu0
      %v901 = vpop.f32.mrf.mxu0
      %v902 = vadd.f32 0.0, %v901
      %v903 = vpop.f32.mrf.mxu0
      %904 = vmatprep.mubr.bf16.mxu0 0
      %905 = vmatmul.mubr.bf16.gmra.mxu0 %v862
      %v906 = vpop.f32.mrf.mxu0
      %v907 = vadd.f32 0.0, %v906
      %v908 = vpop.f32.mrf.mxu0
      %v909 = vpop.f32.mrf.mxu0
      %v910 = vadd.f32 0.0, %v909
      %v911 = vpop.f32.mrf.mxu0
      %912 = vdwg.mxu0
      %v917 = vunpack.c.l.b16 %v681
      %v918 = vunpack.c.l.b16 %v682
      %v919 = vunpack.c.l.b16 %v683
      %v920 = vunpack.c.l.b16 %v684
      %v921 = vpack.c.b16 %v918, %v917
      %v922 = vpack.c.b16 %v920, %v919
      %v924 = vsel %vm857, %v921, 0
      %v927 = vsel %vm857, %v922, 0
      %929 = vmatprep.subr.bf16.mxu0 0
      %930 = vmatpush1.bf16.msra.mxu0 0
      %931 = vmatprep.subr.bf16.mxu0 0
      %932 = vmatpush1.bf16.msra.mxu0 0
      %933 = vmatprep.subr.bf16.mxu0 0
      %934 = vmatpush1.bf16.msra.mxu0 0
      %935 = vmatprep.subr.bf16.mxu0 0
      %936 = vmatpush1.bf16.msra.mxu0 0
      %937 = vmatprep.subr.bf16.mxu0 0
      %938 = vmatpush1.bf16.msra.mxu0 0
      %939 = vmatprep.subr.bf16.mxu0 0
      %940 = vmatpush1.bf16.msra.mxu0 0
      %941 = vmatprep.subr.bf16.mxu0 0
      %942 = vmatpush1.bf16.msra.mxu0 %v686
      %943 = vmatprep.subr.bf16.mxu0 0
      %944 = vmatpush1.bf16.msra.mxu0 %v685
      %945 = vmatprep.subr.bf16.mxu0 0
      %946 = vmatpush2.bf16.msra.mxu0 0
      %947 = vmatprep.subr.bf16.mxu0 0
      %948 = vmatpush2.bf16.msra.mxu0 0
      %949 = vmatprep.subr.bf16.mxu0 0
      %950 = vmatpush2.bf16.msra.mxu0 0
      %951 = vmatprep.subr.bf16.mxu0 0
      %952 = vmatpush2.bf16.msra.mxu0 0
      %953 = vmatprep.subr.bf16.mxu0 0
      %954 = vmatpush2.bf16.msra.mxu0 0
      %955 = vmatprep.subr.bf16.mxu0 0
      %956 = vmatpush2.bf16.msra.mxu0 0
      %957 = vmatprep.subr.bf16.mxu0 0
      %958 = vmatpush2.bf16.msra.mxu0 0
      %959 = vmatprep.subr.bf16.mxu0 0
      %960 = vmatpush2.bf16.msra.mxu0 0
      %961 = vmatprep.mubr.bf16.mxu0 0
      %962 = vmatmul.mubr.bf16.gmra.mxu0 %v924
      %v963 = vpop.f32.mrf.mxu0
      %v964 = vadd.f32 %v899, %v963
      %v965 = vpop.f32.mrf.mxu0
      %v966 = vpop.f32.mrf.mxu0
      %v967 = vadd.f32 %v902, %v966
      %v968 = vpop.f32.mrf.mxu0
      %969 = vmatprep.mubr.bf16.mxu0 0
      %970 = vmatmul.mubr.bf16.gmra.mxu0 %v927
      %v971 = vpop.f32.mrf.mxu0
      %v972 = vadd.f32 %v907, %v971
      %v973 = vpop.f32.mrf.mxu0
      %v974 = vpop.f32.mrf.mxu0
      %v975 = vadd.f32 %v910, %v974
      %v976 = vpop.f32.mrf.mxu0
      %977 = vdwg.mxu0
      %s978 = scalar_lea.vmem %s4, 200
      %v979 = vld [vmem:[%s978] sm:$0xf]
      %v980 = vld [vmem:[%s978 + $0x4] sm:$0xf]
      %v981 = vld [vmem:[%s978 + $0x8] sm:$0xf]
      %v982 = vld [vmem:[%s978 + $0xc] sm:$0xf]
      %v983 = vld [vmem:[%s978 + $0x10] sm:$0xf]
      %v984 = vld [vmem:[%s978 + $0x14] sm:$0xf]
      %v985 = vld [vmem:[%s978 + $0x18] sm:$0xf]
      %v986 = vld [vmem:[%s978 + $0x1c] sm:$0xf]
      %v987 = vld [vmem:[%s978 + $0x20] sm:$0xf]
      %v988 = vld [vmem:[%s978 + $0x24] sm:$0xf]
      %v989 = vld [vmem:[%s978 + $0x28] sm:$0xf]
      %v990 = vld [vmem:[%s978 + $0x2c] sm:$0xf]
      %v991 = vld [vmem:[%s978 + $0x30] sm:$0xf]
      %v992 = vld [vmem:[%s978 + $0x34] sm:$0xf]
      %v993 = vld [vmem:[%s978 + $0x38] sm:$0xf]
      %v994 = vld [vmem:[%s978 + $0x3c] sm:$0xf]
      %v995 = vld [vmem:[%s978 + $0x40] sm:$0xf]
      %v996 = vld [vmem:[%s978 + $0x44] sm:$0xf]
      %v997 = vld [vmem:[%s978 + $0x48] sm:$0xf]
      %v998 = vld [vmem:[%s978 + $0x4c] sm:$0xf]
      %v999 = vld [vmem:[%s978 + $0x50] sm:$0xf]
      %v1000 = vld [vmem:[%s978 + $0x54] sm:$0xf]
      %v1001 = vld [vmem:[%s978 + $0x58] sm:$0xf]
      %v1002 = vld [vmem:[%s978 + $0x5c] sm:$0xf]
      %v1003 = vld [vmem:[%s978 + $0x60] sm:$0x3]
      %v1029 = vunpack.c.l.b16 %v979
      %v1030 = vunpack.c.l.b16 %v980
      %v1031 = vunpack.c.l.b16 %v981
      %v1032 = vunpack.c.l.b16 %v982
      %v1033 = vunpack.c.l.b16 %v983
      %v1034 = vunpack.c.l.b16 %v984
      %v1035 = vunpack.c.l.b16 %v985
      %v1036 = vunpack.c.l.b16 %v986
      %v1037 = vunpack.c.l.b16 %v987
      %v1038 = vunpack.c.l.b16 %v988
      %v1039 = vunpack.c.l.b16 %v989
      %v1040 = vunpack.c.l.b16 %v990
      %v1041 = vunpack.c.l.b16 %v991
      %v1042 = vunpack.c.l.b16 %v992
      %v1043 = vunpack.c.l.b16 %v993
      %v1044 = vunpack.c.l.b16 %v994
      %v1045 = vunpack.c.l.b16 %v995
      %v1046 = vunpack.c.l.b16 %v996
      %v1047 = vunpack.c.l.b16 %v997
      %v1048 = vunpack.c.l.b16 %v998
      %v1049 = vunpack.c.l.b16 %v999
      %v1050 = vunpack.c.l.b16 %v1000
      %v1051 = vunpack.c.l.b16 %v1001
      %v1052 = vunpack.c.l.b16 %v1002
      %v1053 = vunpack.c.l.b16 %v1003
      %v1054 = vpack.c.b16 %v1030, %v1029
      %v1055 = vpack.c.b16 %v1032, %v1031
      %v1056 = vpack.c.b16 %v1034, %v1033
      %v1057 = vpack.c.b16 %v1036, %v1035
      %v1058 = vpack.c.b16 %v1038, %v1037
      %v1059 = vpack.c.b16 %v1040, %v1039
      %v1060 = vpack.c.b16 %v1042, %v1041
      %v1061 = vpack.c.b16 %v1044, %v1043
      %v1062 = vpack.c.b16 %v1046, %v1045
      %v1063 = vpack.c.b16 %v1048, %v1047
      %v1064 = vpack.c.b16 %v1050, %v1049
      %v1065 = vpack.c.b16 %v1052, %v1051
      %v1066 = vpack.c.b16 %v1053, %v1053
      %v1080 = vsel %vm448, %v1066, 0
      %1082 = vmatprep.subr.bf16.mxu0 0
      %1083 = vmatpush1.bf16.msra.mxu0 %v1061
      %1084 = vmatprep.subr.bf16.mxu0 0
      %1085 = vmatpush1.bf16.msra.mxu0 %v1060
      %1086 = vmatprep.subr.bf16.mxu0 0
      %1087 = vmatpush1.bf16.msra.mxu0 %v1059
      %1088 = vmatprep.subr.bf16.mxu0 0
      %1089 = vmatpush1.bf16.msra.mxu0 %v1058
      %1090 = vmatprep.subr.bf16.mxu0 0
      %1091 = vmatpush1.bf16.msra.mxu0 %v1057
      %1092 = vmatprep.subr.bf16.mxu0 0
      %1093 = vmatpush1.bf16.msra.mxu0 %v1056
      %1094 = vmatprep.subr.bf16.mxu0 0
      %1095 = vmatpush1.bf16.msra.mxu0 %v1055
      %1096 = vmatprep.subr.bf16.mxu0 0
      %1097 = vmatpush1.bf16.msra.mxu0 %v1054
      %1098 = vmatprep.subr.bf16.mxu0 0
      %1099 = vmatpush2.bf16.msra.mxu0 0
      %1100 = vmatprep.subr.bf16.mxu0 0
      %1101 = vmatpush2.bf16.msra.mxu0 0
      %1102 = vmatprep.subr.bf16.mxu0 0
      %1103 = vmatpush2.bf16.msra.mxu0 0
      %1104 = vmatprep.subr.bf16.mxu0 0
      %1105 = vmatpush2.bf16.msra.mxu0 %v1080
      %1106 = vmatprep.subr.bf16.mxu0 0
      %1107 = vmatpush2.bf16.msra.mxu0 %v1065
      %1108 = vmatprep.subr.bf16.mxu0 0
      %1109 = vmatpush2.bf16.msra.mxu0 %v1064
      %1110 = vmatprep.subr.bf16.mxu0 0
      %1111 = vmatpush2.bf16.msra.mxu0 %v1063
      %1112 = vmatprep.subr.bf16.mxu0 0
      %1113 = vmatpush2.bf16.msra.mxu0 %v1062
      %1114 = vmatprep.mubr.bf16.mxu0 %v624
      %1115 = vmatmul.mubr.bf16.gmra.mxu0 %v518
      %v1116 = vpop.f32.mrf.mxu0
      %v1117 = vadd.f32 0.0, %v1116
      %v1118 = vpop.f32.mrf.mxu0
      %v1119 = vpop.f32.mrf.mxu0
      %v1120 = vadd.f32 0.0, %v1119
      %v1121 = vpop.f32.mrf.mxu0
      %1122 = vmatprep.mubr.bf16.mxu0 %v627
      %1123 = vmatmul.mubr.bf16.gmra.mxu0 %v520
      %v1124 = vpop.f32.mrf.mxu0
      %v1125 = vadd.f32 0.0, %v1124
      %v1126 = vpop.f32.mrf.mxu0
      %v1127 = vpop.f32.mrf.mxu0
      %v1128 = vadd.f32 0.0, %v1127
      %v1129 = vpop.f32.mrf.mxu0
      %1130 = vdwg.mxu0
      %s1131 = scalar_lea.vmem %s2, 32
      %v1132 = vld [vmem:[%s1131] sm:$0xf]
      %v1133 = vld [vmem:[%s1131 + $0x4] sm:$0xf]
      %v1134 = vld [vmem:[%s1131 + $0x8] sm:$0xf]
      %v1135 = vld [vmem:[%s1131 + $0xc] sm:$0xf]
      %v1136 = vpack.c.bf16 %v1120, %v1117
      %v1137 = vpack.c.bf16 %v1128, %v1125
      %v1142 = vunpack.c.l.b16 %v1132
      %v1143 = vunpack.c.l.b16 %v1133
      %v1144 = vunpack.c.l.b16 %v1134
      %v1145 = vunpack.c.l.b16 %v1135
      %v1146 = vpack.c.b16 %v1143, %v1142
      %v1147 = vpack.c.b16 %v1145, %v1144
      %v1149 = vsel %vm857, %v1146, 0
      %v1152 = vsel %vm857, %v1147, 0
      %1154 = vmatprep.subr.bf16.mxu0 0
      %1155 = vmatpush1.bf16.msra.mxu0 0
      %1156 = vmatprep.subr.bf16.mxu0 0
      %1157 = vmatpush1.bf16.msra.mxu0 0
      %1158 = vmatprep.subr.bf16.mxu0 0
      %1159 = vmatpush1.bf16.msra.mxu0 0
      %1160 = vmatprep.subr.bf16.mxu0 0
      %1161 = vmatpush1.bf16.msra.mxu0 0
      %1162 = vmatprep.subr.bf16.mxu0 0
      %1163 = vmatpush1.bf16.msra.mxu0 0
      %1164 = vmatprep.subr.bf16.mxu0 0
      %1165 = vmatpush1.bf16.msra.mxu0 0
      %1166 = vmatprep.subr.bf16.mxu0 0
      %1167 = vmatpush1.bf16.msra.mxu0 %v1137
      %1168 = vmatprep.subr.bf16.mxu0 0
      %1169 = vmatpush1.bf16.msra.mxu0 %v1136
      %1170 = vmatprep.subr.bf16.mxu0 0
      %1171 = vmatpush2.bf16.msra.mxu0 0
      %1172 = vmatprep.subr.bf16.mxu0 0
      %1173 = vmatpush2.bf16.msra.mxu0 0
      %1174 = vmatprep.subr.bf16.mxu0 0
      %1175 = vmatpush2.bf16.msra.mxu0 0
      %1176 = vmatprep.subr.bf16.mxu0 0
      %1177 = vmatpush2.bf16.msra.mxu0 0
      %1178 = vmatprep.subr.bf16.mxu0 0
      %1179 = vmatpush2.bf16.msra.mxu0 0
      %1180 = vmatprep.subr.bf16.mxu0 0
      %1181 = vmatpush2.bf16.msra.mxu0 0
      %1182 = vmatprep.subr.bf16.mxu0 0
      %1183 = vmatpush2.bf16.msra.mxu0 0
      %1184 = vmatprep.subr.bf16.mxu0 0
      %1185 = vmatpush2.bf16.msra.mxu0 0
      %1186 = vmatprep.mubr.bf16.mxu0 0
      %1187 = vmatmul.mubr.bf16.gmra.mxu0 %v1149
      %v1188 = vpop.f32.mrf.mxu0
      %v1189 = vadd.f32 0.0, %v1188
      %v1190 = vpop.f32.mrf.mxu0
      %v1191 = vpop.f32.mrf.mxu0
      %v1192 = vadd.f32 0.0, %v1191
      %v1193 = vpop.f32.mrf.mxu0
      %1194 = vmatprep.mubr.bf16.mxu0 0
      %1195 = vmatmul.mubr.bf16.gmra.mxu0 %v1152
      %v1196 = vpop.f32.mrf.mxu0
      %v1197 = vadd.f32 0.0, %v1196
      %v1198 = vpop.f32.mrf.mxu0
      %v1199 = vpop.f32.mrf.mxu0
      %v1200 = vadd.f32 0.0, %v1199
      %v1201 = vpop.f32.mrf.mxu0
      %1202 = vdwg.mxu0
      %v1203 = vadd.f32 %v964, %v1189
      %v1204 = vadd.f32 %v967, %v1192
      %v1205 = vadd.f32 %v972, %v1197
      %v1206 = vadd.f32 %v975, %v1200
      %s1207 = scalar_lea.vmem %s4, 300
      %v1208 = vld [vmem:[%s1207] sm:$0xf]
      %v1209 = vld [vmem:[%s1207 + $0x4] sm:$0xf]
      %v1210 = vld [vmem:[%s1207 + $0x8] sm:$0xf]
      %v1211 = vld [vmem:[%s1207 + $0xc] sm:$0xf]
      %v1212 = vld [vmem:[%s1207 + $0x10] sm:$0xf]
      %v1213 = vld [vmem:[%s1207 + $0x14] sm:$0xf]
      %v1214 = vld [vmem:[%s1207 + $0x18] sm:$0xf]
      %v1215 = vld [vmem:[%s1207 + $0x1c] sm:$0xf]
      %v1216 = vld [vmem:[%s1207 + $0x20] sm:$0xf]
      %v1217 = vld [vmem:[%s1207 + $0x24] sm:$0xf]
      %v1218 = vld [vmem:[%s1207 + $0x28] sm:$0xf]
      %v1219 = vld [vmem:[%s1207 + $0x2c] sm:$0xf]
      %v1220 = vld [vmem:[%s1207 + $0x30] sm:$0xf]
      %v1221 = vld [vmem:[%s1207 + $0x34] sm:$0xf]
      %v1222 = vld [vmem:[%s1207 + $0x38] sm:$0xf]
      %v1223 = vld [vmem:[%s1207 + $0x3c] sm:$0xf]
      %v1224 = vld [vmem:[%s1207 + $0x40] sm:$0xf]
      %v1225 = vld [vmem:[%s1207 + $0x44] sm:$0xf]
      %v1226 = vld [vmem:[%s1207 + $0x48] sm:$0xf]
      %v1227 = vld [vmem:[%s1207 + $0x4c] sm:$0xf]
      %v1228 = vld [vmem:[%s1207 + $0x50] sm:$0xf]
      %v1229 = vld [vmem:[%s1207 + $0x54] sm:$0xf]
      %v1230 = vld [vmem:[%s1207 + $0x58] sm:$0xf]
      %v1231 = vld [vmem:[%s1207 + $0x5c] sm:$0xf]
      %v1232 = vld [vmem:[%s1207 + $0x60] sm:$0x3]
      %v1258 = vunpack.c.l.b16 %v1208
      %v1259 = vunpack.c.l.b16 %v1209
      %v1260 = vunpack.c.l.b16 %v1210
      %v1261 = vunpack.c.l.b16 %v1211
      %v1262 = vunpack.c.l.b16 %v1212
      %v1263 = vunpack.c.l.b16 %v1213
      %v1264 = vunpack.c.l.b16 %v1214
      %v1265 = vunpack.c.l.b16 %v1215
      %v1266 = vunpack.c.l.b16 %v1216
      %v1267 = vunpack.c.l.b16 %v1217
      %v1268 = vunpack.c.l.b16 %v1218
      %v1269 = vunpack.c.l.b16 %v1219
      %v1270 = vunpack.c.l.b16 %v1220
      %v1271 = vunpack.c.l.b16 %v1221
      %v1272 = vunpack.c.l.b16 %v1222
      %v1273 = vunpack.c.l.b16 %v1223
      %v1274 = vunpack.c.l.b16 %v1224
      %v1275 = vunpack.c.l.b16 %v1225
      %v1276 = vunpack.c.l.b16 %v1226
      %v1277 = vunpack.c.l.b16 %v1227
      %v1278 = vunpack.c.l.b16 %v1228
      %v1279 = vunpack.c.l.b16 %v1229
      %v1280 = vunpack.c.l.b16 %v1230
      %v1281 = vunpack.c.l.b16 %v1231
      %v1282 = vunpack.c.l.b16 %v1232
      %v1283 = vpack.c.b16 %v1259, %v1258
      %v1284 = vpack.c.b16 %v1261, %v1260
      %v1285 = vpack.c.b16 %v1263, %v1262
      %v1286 = vpack.c.b16 %v1265, %v1264
      %v1287 = vpack.c.b16 %v1267, %v1266
      %v1288 = vpack.c.b16 %v1269, %v1268
      %v1289 = vpack.c.b16 %v1271, %v1270
      %v1290 = vpack.c.b16 %v1273, %v1272
      %v1291 = vpack.c.b16 %v1275, %v1274
      %v1292 = vpack.c.b16 %v1277, %v1276
      %v1293 = vpack.c.b16 %v1279, %v1278
      %v1294 = vpack.c.b16 %v1281, %v1280
      %v1295 = vpack.c.b16 %v1282, %v1282
      %v1309 = vsel %vm448, %v1295, 0
      %1311 = vmatprep.subr.bf16.mxu0 0
      %1312 = vmatpush1.bf16.msra.mxu0 %v1290
      %1313 = vmatprep.subr.bf16.mxu0 0
      %1314 = vmatpush1.bf16.msra.mxu0 %v1289
      %1315 = vmatprep.subr.bf16.mxu0 0
      %1316 = vmatpush1.bf16.msra.mxu0 %v1288
      %1317 = vmatprep.subr.bf16.mxu0 0
      %1318 = vmatpush1.bf16.msra.mxu0 %v1287
      %1319 = vmatprep.subr.bf16.mxu0 0
      %1320 = vmatpush1.bf16.msra.mxu0 %v1286
      %1321 = vmatprep.subr.bf16.mxu0 0
      %1322 = vmatpush1.bf16.msra.mxu0 %v1285
      %1323 = vmatprep.subr.bf16.mxu0 0
      %1324 = vmatpush1.bf16.msra.mxu0 %v1284
      %1325 = vmatprep.subr.bf16.mxu0 0
      %1326 = vmatpush1.bf16.msra.mxu0 %v1283
      %1327 = vmatprep.subr.bf16.mxu0 0
      %1328 = vmatpush2.bf16.msra.mxu0 0
      %1329 = vmatprep.subr.bf16.mxu0 0
      %1330 = vmatpush2.bf16.msra.mxu0 0
      %1331 = vmatprep.subr.bf16.mxu0 0
      %1332 = vmatpush2.bf16.msra.mxu0 0
      %1333 = vmatprep.subr.bf16.mxu0 0
      %1334 = vmatpush2.bf16.msra.mxu0 %v1309
      %1335 = vmatprep.subr.bf16.mxu0 0
      %1336 = vmatpush2.bf16.msra.mxu0 %v1294
      %1337 = vmatprep.subr.bf16.mxu0 0
      %1338 = vmatpush2.bf16.msra.mxu0 %v1293
      %1339 = vmatprep.subr.bf16.mxu0 0
      %1340 = vmatpush2.bf16.msra.mxu0 %v1292
      %1341 = vmatprep.subr.bf16.mxu0 0
      %1342 = vmatpush2.bf16.msra.mxu0 %v1291
      %1343 = vmatprep.mubr.bf16.mxu0 %v624
      %1344 = vmatmul.mubr.bf16.gmra.mxu0 %v518
      %v1345 = vpop.f32.mrf.mxu0
      %v1346 = vadd.f32 0.0, %v1345
      %v1347 = vpop.f32.mrf.mxu0
      %v1348 = vpop.f32.mrf.mxu0
      %v1349 = vadd.f32 0.0, %v1348
      %v1350 = vpop.f32.mrf.mxu0
      %1351 = vmatprep.mubr.bf16.mxu0 %v627
      %1352 = vmatmul.mubr.bf16.gmra.mxu0 %v520
      %v1353 = vpop.f32.mrf.mxu0
      %v1354 = vadd.f32 0.0, %v1353
      %v1355 = vpop.f32.mrf.mxu0
      %v1356 = vpop.f32.mrf.mxu0
      %v1357 = vadd.f32 0.0, %v1356
      %v1358 = vpop.f32.mrf.mxu0
      %1359 = vdwg.mxu0
      %s1360 = scalar_lea.vmem %s2, 48
      %v1361 = vld [vmem:[%s1360] sm:$0xf]
      %v1362 = vld [vmem:[%s1360 + $0x4] sm:$0xf]
      %v1363 = vld [vmem:[%s1360 + $0x8] sm:$0xf]
      %v1364 = vld [vmem:[%s1360 + $0xc] sm:$0xf]
      %v1365 = vpack.c.bf16 %v1349, %v1346
      %v1366 = vpack.c.bf16 %v1357, %v1354
      %v1371 = vunpack.c.l.b16 %v1361
      %v1372 = vunpack.c.l.b16 %v1362
      %v1373 = vunpack.c.l.b16 %v1363
      %v1374 = vunpack.c.l.b16 %v1364
      %v1375 = vpack.c.b16 %v1372, %v1371
      %v1376 = vpack.c.b16 %v1374, %v1373
      %v1378 = vsel %vm857, %v1375, 0
      %v1381 = vsel %vm857, %v1376, 0
      %1383 = vmatprep.subr.bf16.mxu0 0
      %1384 = vmatpush1.bf16.msra.mxu0 0
      %1385 = vmatprep.subr.bf16.mxu0 0
      %1386 = vmatpush1.bf16.msra.mxu0 0
      %1387 = vmatprep.subr.bf16.mxu0 0
      %1388 = vmatpush1.bf16.msra.mxu0 0
      %1389 = vmatprep.subr.bf16.mxu0 0
      %1390 = vmatpush1.bf16.msra.mxu0 0
      %1391 = vmatprep.subr.bf16.mxu0 0
      %1392 = vmatpush1.bf16.msra.mxu0 0
      %1393 = vmatprep.subr.bf16.mxu0 0
      %1394 = vmatpush1.bf16.msra.mxu0 0
      %1395 = vmatprep.subr.bf16.mxu0 0
      %1396 = vmatpush1.bf16.msra.mxu0 %v1366
      %1397 = vmatprep.subr.bf16.mxu0 0
      %1398 = vmatpush1.bf16.msra.mxu0 %v1365
      %1399 = vmatprep.subr.bf16.mxu0 0
      %1400 = vmatpush2.bf16.msra.mxu0 0
      %1401 = vmatprep.subr.bf16.mxu0 0
      %1402 = vmatpush2.bf16.msra.mxu0 0
      %1403 = vmatprep.subr.bf16.mxu0 0
      %1404 = vmatpush2.bf16.msra.mxu0 0
      %1405 = vmatprep.subr.bf16.mxu0 0
      %1406 = vmatpush2.bf16.msra.mxu0 0
      %1407 = vmatprep.subr.bf16.mxu0 0
      %1408 = vmatpush2.bf16.msra.mxu0 0
      %1409 = vmatprep.subr.bf16.mxu0 0
      %1410 = vmatpush2.bf16.msra.mxu0 0
      %1411 = vmatprep.subr.bf16.mxu0 0
      %1412 = vmatpush2.bf16.msra.mxu0 0
      %1413 = vmatprep.subr.bf16.mxu0 0
      %1414 = vmatpush2.bf16.msra.mxu0 0
      %1415 = vmatprep.mubr.bf16.mxu0 0
      %1416 = vmatmul.mubr.bf16.gmra.mxu0 %v1378
      %v1417 = vpop.f32.mrf.mxu0
      %v1418 = vadd.f32 0.0, %v1417
      %v1419 = vpop.f32.mrf.mxu0
      %v1420 = vpop.f32.mrf.mxu0
      %v1421 = vadd.f32 0.0, %v1420
      %v1422 = vpop.f32.mrf.mxu0
      %1423 = vmatprep.mubr.bf16.mxu0 0
      %1424 = vmatmul.mubr.bf16.gmra.mxu0 %v1381
      %v1425 = vpop.f32.mrf.mxu0
      %v1426 = vadd.f32 0.0, %v1425
      %v1427 = vpop.f32.mrf.mxu0
      %v1428 = vpop.f32.mrf.mxu0
      %v1429 = vadd.f32 0.0, %v1428
      %v1430 = vpop.f32.mrf.mxu0
      %1431 = vdwg.mxu0
      %v1432 = vadd.f32 %v1203, %v1418
      %v1433 = vadd.f32 %v1204, %v1421
      %v1434 = vadd.f32 %v1205, %v1426
      %v1435 = vadd.f32 %v1206, %v1429
      %s1436 = scalar_lea.vmem %s4, 400
      %v1437 = vld [vmem:[%s1436] sm:$0xf]
      %v1438 = vld [vmem:[%s1436 + $0x4] sm:$0xf]
      %v1439 = vld [vmem:[%s1436 + $0x8] sm:$0xf]
      %v1440 = vld [vmem:[%s1436 + $0xc] sm:$0xf]
      %v1441 = vld [vmem:[%s1436 + $0x10] sm:$0xf]
      %v1442 = vld [vmem:[%s1436 + $0x14] sm:$0xf]
      %v1443 = vld [vmem:[%s1436 + $0x18] sm:$0xf]
      %v1444 = vld [vmem:[%s1436 + $0x1c] sm:$0xf]
      %v1445 = vld [vmem:[%s1436 + $0x20] sm:$0xf]
      %v1446 = vld [vmem:[%s1436 + $0x24] sm:$0xf]
      %v1447 = vld [vmem:[%s1436 + $0x28] sm:$0xf]
      %v1448 = vld [vmem:[%s1436 + $0x2c] sm:$0xf]
      %v1449 = vld [vmem:[%s1436 + $0x30] sm:$0xf]
      %v1450 = vld [vmem:[%s1436 + $0x34] sm:$0xf]
      %v1451 = vld [vmem:[%s1436 + $0x38] sm:$0xf]
      %v1452 = vld [vmem:[%s1436 + $0x3c] sm:$0xf]
      %v1453 = vld [vmem:[%s1436 + $0x40] sm:$0xf]
      %v1454 = vld [vmem:[%s1436 + $0x44] sm:$0xf]
      %v1455 = vld [vmem:[%s1436 + $0x48] sm:$0xf]
      %v1456 = vld [vmem:[%s1436 + $0x4c] sm:$0xf]
      %v1457 = vld [vmem:[%s1436 + $0x50] sm:$0xf]
      %v1458 = vld [vmem:[%s1436 + $0x54] sm:$0xf]
      %v1459 = vld [vmem:[%s1436 + $0x58] sm:$0xf]
      %v1460 = vld [vmem:[%s1436 + $0x5c] sm:$0xf]
      %v1461 = vld [vmem:[%s1436 + $0x60] sm:$0x3]
      %v1487 = vunpack.c.l.b16 %v1437
      %v1488 = vunpack.c.l.b16 %v1438
      %v1489 = vunpack.c.l.b16 %v1439
      %v1490 = vunpack.c.l.b16 %v1440
      %v1491 = vunpack.c.l.b16 %v1441
      %v1492 = vunpack.c.l.b16 %v1442
      %v1493 = vunpack.c.l.b16 %v1443
      %v1494 = vunpack.c.l.b16 %v1444
      %v1495 = vunpack.c.l.b16 %v1445
      %v1496 = vunpack.c.l.b16 %v1446
      %v1497 = vunpack.c.l.b16 %v1447
      %v1498 = vunpack.c.l.b16 %v1448
      %v1499 = vunpack.c.l.b16 %v1449
      %v1500 = vunpack.c.l.b16 %v1450
      %v1501 = vunpack.c.l.b16 %v1451
      %v1502 = vunpack.c.l.b16 %v1452
      %v1503 = vunpack.c.l.b16 %v1453
      %v1504 = vunpack.c.l.b16 %v1454
      %v1505 = vunpack.c.l.b16 %v1455
      %v1506 = vunpack.c.l.b16 %v1456
      %v1507 = vunpack.c.l.b16 %v1457
      %v1508 = vunpack.c.l.b16 %v1458
      %v1509 = vunpack.c.l.b16 %v1459
      %v1510 = vunpack.c.l.b16 %v1460
      %v1511 = vunpack.c.l.b16 %v1461
      %v1512 = vpack.c.b16 %v1488, %v1487
      %v1513 = vpack.c.b16 %v1490, %v1489
      %v1514 = vpack.c.b16 %v1492, %v1491
      %v1515 = vpack.c.b16 %v1494, %v1493
      %v1516 = vpack.c.b16 %v1496, %v1495
      %v1517 = vpack.c.b16 %v1498, %v1497
      %v1518 = vpack.c.b16 %v1500, %v1499
      %v1519 = vpack.c.b16 %v1502, %v1501
      %v1520 = vpack.c.b16 %v1504, %v1503
      %v1521 = vpack.c.b16 %v1506, %v1505
      %v1522 = vpack.c.b16 %v1508, %v1507
      %v1523 = vpack.c.b16 %v1510, %v1509
      %v1524 = vpack.c.b16 %v1511, %v1511
      %v1538 = vsel %vm448, %v1524, 0
      %1540 = vmatprep.subr.bf16.mxu0 0
      %1541 = vmatpush1.bf16.msra.mxu0 %v1519
      %1542 = vmatprep.subr.bf16.mxu0 0
      %1543 = vmatpush1.bf16.msra.mxu0 %v1518
      %1544 = vmatprep.subr.bf16.mxu0 0
      %1545 = vmatpush1.bf16.msra.mxu0 %v1517
      %1546 = vmatprep.subr.bf16.mxu0 0
      %1547 = vmatpush1.bf16.msra.mxu0 %v1516
      %1548 = vmatprep.subr.bf16.mxu0 0
      %1549 = vmatpush1.bf16.msra.mxu0 %v1515
      %1550 = vmatprep.subr.bf16.mxu0 0
      %1551 = vmatpush1.bf16.msra.mxu0 %v1514
      %1552 = vmatprep.subr.bf16.mxu0 0
      %1553 = vmatpush1.bf16.msra.mxu0 %v1513
      %1554 = vmatprep.subr.bf16.mxu0 0
      %1555 = vmatpush1.bf16.msra.mxu0 %v1512
      %1556 = vmatprep.subr.bf16.mxu0 0
      %1557 = vmatpush2.bf16.msra.mxu0 0
      %1558 = vmatprep.subr.bf16.mxu0 0
      %1559 = vmatpush2.bf16.msra.mxu0 0
      %1560 = vmatprep.subr.bf16.mxu0 0
      %1561 = vmatpush2.bf16.msra.mxu0 0
      %1562 = vmatprep.subr.bf16.mxu0 0
      %1563 = vmatpush2.bf16.msra.mxu0 %v1538
      %1564 = vmatprep.subr.bf16.mxu0 0
      %1565 = vmatpush2.bf16.msra.mxu0 %v1523
      %1566 = vmatprep.subr.bf16.mxu0 0
      %1567 = vmatpush2.bf16.msra.mxu0 %v1522
      %1568 = vmatprep.subr.bf16.mxu0 0
      %1569 = vmatpush2.bf16.msra.mxu0 %v1521
      %1570 = vmatprep.subr.bf16.mxu0 0
      %1571 = vmatpush2.bf16.msra.mxu0 %v1520
      %1572 = vmatprep.mubr.bf16.mxu0 %v624
      %1573 = vmatmul.mubr.bf16.gmra.mxu0 %v518
      %v1574 = vpop.f32.mrf.mxu0
      %v1575 = vadd.f32 0.0, %v1574
      %v1576 = vpop.f32.mrf.mxu0
      %v1577 = vpop.f32.mrf.mxu0
      %v1578 = vadd.f32 0.0, %v1577
      %v1579 = vpop.f32.mrf.mxu0
      %1580 = vmatprep.mubr.bf16.mxu0 %v627
      %1581 = vmatmul.mubr.bf16.gmra.mxu0 %v520
      %v1582 = vpop.f32.mrf.mxu0
      %v1583 = vadd.f32 0.0, %v1582
      %v1584 = vpop.f32.mrf.mxu0
      %v1585 = vpop.f32.mrf.mxu0
      %v1586 = vadd.f32 0.0, %v1585
      %v1587 = vpop.f32.mrf.mxu0
      %1588 = vdwg.mxu0
      %s1589 = scalar_lea.vmem %s2, 64
      %v1590 = vld [vmem:[%s1589] sm:$0xf]
      %v1591 = vld [vmem:[%s1589 + $0x4] sm:$0xf]
      %v1592 = vld [vmem:[%s1589 + $0x8] sm:$0xf]
      %v1593 = vld [vmem:[%s1589 + $0xc] sm:$0xf]
      %v1594 = vpack.c.bf16 %v1578, %v1575
      %v1595 = vpack.c.bf16 %v1586, %v1583
      %v1600 = vunpack.c.l.b16 %v1590
      %v1601 = vunpack.c.l.b16 %v1591
      %v1602 = vunpack.c.l.b16 %v1592
      %v1603 = vunpack.c.l.b16 %v1593
      %v1604 = vpack.c.b16 %v1601, %v1600
      %v1605 = vpack.c.b16 %v1603, %v1602
      %v1607 = vsel %vm857, %v1604, 0
      %v1610 = vsel %vm857, %v1605, 0
      %1612 = vmatprep.subr.bf16.mxu0 0
      %1613 = vmatpush1.bf16.msra.mxu0 0
      %1614 = vmatprep.subr.bf16.mxu0 0
      %1615 = vmatpush1.bf16.msra.mxu0 0
      %1616 = vmatprep.subr.bf16.mxu0 0
      %1617 = vmatpush1.bf16.msra.mxu0 0
      %1618 = vmatprep.subr.bf16.mxu0 0
      %1619 = vmatpush1.bf16.msra.mxu0 0
      %1620 = vmatprep.subr.bf16.mxu0 0
      %1621 = vmatpush1.bf16.msra.mxu0 0
      %1622 = vmatprep.subr.bf16.mxu0 0
      %1623 = vmatpush1.bf16.msra.mxu0 0
      %1624 = vmatprep.subr.bf16.mxu0 0
      %1625 = vmatpush1.bf16.msra.mxu0 %v1595
      %1626 = vmatprep.subr.bf16.mxu0 0
      %1627 = vmatpush1.bf16.msra.mxu0 %v1594
      %1628 = vmatprep.subr.bf16.mxu0 0
      %1629 = vmatpush2.bf16.msra.mxu0 0
      %1630 = vmatprep.subr.bf16.mxu0 0
      %1631 = vmatpush2.bf16.msra.mxu0 0
      %1632 = vmatprep.subr.bf16.mxu0 0
      %1633 = vmatpush2.bf16.msra.mxu0 0
      %1634 = vmatprep.subr.bf16.mxu0 0
      %1635 = vmatpush2.bf16.msra.mxu0 0
      %1636 = vmatprep.subr.bf16.mxu0 0
      %1637 = vmatpush2.bf16.msra.mxu0 0
      %1638 = vmatprep.subr.bf16.mxu0 0
      %1639 = vmatpush2.bf16.msra.mxu0 0
      %1640 = vmatprep.subr.bf16.mxu0 0
      %1641 = vmatpush2.bf16.msra.mxu0 0
      %1642 = vmatprep.subr.bf16.mxu0 0
      %1643 = vmatpush2.bf16.msra.mxu0 0
      %1644 = vmatprep.mubr.bf16.mxu0 0
      %1645 = vmatmul.mubr.bf16.gmra.mxu0 %v1607
      %v1646 = vpop.f32.mrf.mxu0
      %v1647 = vadd.f32 0.0, %v1646
      %v1648 = vpop.f32.mrf.mxu0
      %v1649 = vpop.f32.mrf.mxu0
      %v1650 = vadd.f32 0.0, %v1649
      %v1651 = vpop.f32.mrf.mxu0
      %1652 = vmatprep.mubr.bf16.mxu0 0
      %1653 = vmatmul.mubr.bf16.gmra.mxu0 %v1610
      %v1654 = vpop.f32.mrf.mxu0
      %v1655 = vadd.f32 0.0, %v1654
      %v1656 = vpop.f32.mrf.mxu0
      %v1657 = vpop.f32.mrf.mxu0
      %v1658 = vadd.f32 0.0, %v1657
      %v1659 = vpop.f32.mrf.mxu0
      %1660 = vdwg.mxu0
      %v1661 = vadd.f32 %v1432, %v1647
      %v1662 = vadd.f32 %v1433, %v1650
      %v1663 = vadd.f32 %v1434, %v1655
      %v1664 = vadd.f32 %v1435, %v1658
      %s1665 = scalar_lea.vmem %s4, 500
      %v1666 = vld [vmem:[%s1665] sm:$0xf]
      %v1667 = vld [vmem:[%s1665 + $0x4] sm:$0xf]
      %v1668 = vld [vmem:[%s1665 + $0x8] sm:$0xf]
      %v1669 = vld [vmem:[%s1665 + $0xc] sm:$0xf]
      %v1670 = vld [vmem:[%s1665 + $0x10] sm:$0xf]
      %v1671 = vld [vmem:[%s1665 + $0x14] sm:$0xf]
      %v1672 = vld [vmem:[%s1665 + $0x18] sm:$0xf]
      %v1673 = vld [vmem:[%s1665 + $0x1c] sm:$0xf]
      %v1674 = vld [vmem:[%s1665 + $0x20] sm:$0xf]
      %v1675 = vld [vmem:[%s1665 + $0x24] sm:$0xf]
      %v1676 = vld [vmem:[%s1665 + $0x28] sm:$0xf]
      %v1677 = vld [vmem:[%s1665 + $0x2c] sm:$0xf]
      %v1678 = vld [vmem:[%s1665 + $0x30] sm:$0xf]
      %v1679 = vld [vmem:[%s1665 + $0x34] sm:$0xf]
      %v1680 = vld [vmem:[%s1665 + $0x38] sm:$0xf]
      %v1681 = vld [vmem:[%s1665 + $0x3c] sm:$0xf]
      %v1682 = vld [vmem:[%s1665 + $0x40] sm:$0xf]
      %v1683 = vld [vmem:[%s1665 + $0x44] sm:$0xf]
      %v1684 = vld [vmem:[%s1665 + $0x48] sm:$0xf]
      %v1685 = vld [vmem:[%s1665 + $0x4c] sm:$0xf]
      %v1686 = vld [vmem:[%s1665 + $0x50] sm:$0xf]
      %v1687 = vld [vmem:[%s1665 + $0x54] sm:$0xf]
      %v1688 = vld [vmem:[%s1665 + $0x58] sm:$0xf]
      %v1689 = vld [vmem:[%s1665 + $0x5c] sm:$0xf]
      %v1690 = vld [vmem:[%s1665 + $0x60] sm:$0x3]
      %v1716 = vunpack.c.l.b16 %v1666
      %v1717 = vunpack.c.l.b16 %v1667
      %v1718 = vunpack.c.l.b16 %v1668
      %v1719 = vunpack.c.l.b16 %v1669
      %v1720 = vunpack.c.l.b16 %v1670
      %v1721 = vunpack.c.l.b16 %v1671
      %v1722 = vunpack.c.l.b16 %v1672
      %v1723 = vunpack.c.l.b16 %v1673
      %v1724 = vunpack.c.l.b16 %v1674
      %v1725 = vunpack.c.l.b16 %v1675
      %v1726 = vunpack.c.l.b16 %v1676
      %v1727 = vunpack.c.l.b16 %v1677
      %v1728 = vunpack.c.l.b16 %v1678
      %v1729 = vunpack.c.l.b16 %v1679
      %v1730 = vunpack.c.l.b16 %v1680
      %v1731 = vunpack.c.l.b16 %v1681
      %v1732 = vunpack.c.l.b16 %v1682
      %v1733 = vunpack.c.l.b16 %v1683
      %v1734 = vunpack.c.l.b16 %v1684
      %v1735 = vunpack.c.l.b16 %v1685
      %v1736 = vunpack.c.l.b16 %v1686
      %v1737 = vunpack.c.l.b16 %v1687
      %v1738 = vunpack.c.l.b16 %v1688
      %v1739 = vunpack.c.l.b16 %v1689
      %v1740 = vunpack.c.l.b16 %v1690
      %v1741 = vpack.c.b16 %v1717, %v1716
      %v1742 = vpack.c.b16 %v1719, %v1718
      %v1743 = vpack.c.b16 %v1721, %v1720
      %v1744 = vpack.c.b16 %v1723, %v1722
      %v1745 = vpack.c.b16 %v1725, %v1724
      %v1746 = vpack.c.b16 %v1727, %v1726
      %v1747 = vpack.c.b16 %v1729, %v1728
      %v1748 = vpack.c.b16 %v1731, %v1730
      %v1749 = vpack.c.b16 %v1733, %v1732
      %v1750 = vpack.c.b16 %v1735, %v1734
      %v1751 = vpack.c.b16 %v1737, %v1736
      %v1752 = vpack.c.b16 %v1739, %v1738
      %v1753 = vpack.c.b16 %v1740, %v1740
      %v1767 = vsel %vm448, %v1753, 0
      %1769 = vmatprep.subr.bf16.mxu0 0
      %1770 = vmatpush1.bf16.msra.mxu0 %v1748
      %1771 = vmatprep.subr.bf16.mxu0 0
      %1772 = vmatpush1.bf16.msra.mxu0 %v1747
      %1773 = vmatprep.subr.bf16.mxu0 0
      %1774 = vmatpush1.bf16.msra.mxu0 %v1746
      %1775 = vmatprep.subr.bf16.mxu0 0
      %1776 = vmatpush1.bf16.msra.mxu0 %v1745
      %1777 = vmatprep.subr.bf16.mxu0 0
      %1778 = vmatpush1.bf16.msra.mxu0 %v1744
      %1779 = vmatprep.subr.bf16.mxu0 0
      %1780 = vmatpush1.bf16.msra.mxu0 %v1743
      %1781 = vmatprep.subr.bf16.mxu0 0
      %1782 = vmatpush1.bf16.msra.mxu0 %v1742
      %1783 = vmatprep.subr.bf16.mxu0 0
      %1784 = vmatpush1.bf16.msra.mxu0 %v1741
      %1785 = vmatprep.subr.bf16.mxu0 0
      %1786 = vmatpush2.bf16.msra.mxu0 0
      %1787 = vmatprep.subr.bf16.mxu0 0
      %1788 = vmatpush2.bf16.msra.mxu0 0
      %1789 = vmatprep.subr.bf16.mxu0 0
      %1790 = vmatpush2.bf16.msra.mxu0 0
      %1791 = vmatprep.subr.bf16.mxu0 0
      %1792 = vmatpush2.bf16.msra.mxu0 %v1767
      %1793 = vmatprep.subr.bf16.mxu0 0
      %1794 = vmatpush2.bf16.msra.mxu0 %v1752
      %1795 = vmatprep.subr.bf16.mxu0 0
      %1796 = vmatpush2.bf16.msra.mxu0 %v1751
      %1797 = vmatprep.subr.bf16.mxu0 0
      %1798 = vmatpush2.bf16.msra.mxu0 %v1750
      %1799 = vmatprep.subr.bf16.mxu0 0
      %1800 = vmatpush2.bf16.msra.mxu0 %v1749
      %1801 = vmatprep.mubr.bf16.mxu0 %v624
      %1802 = vmatmul.mubr.bf16.gmra.mxu0 %v518
      %v1803 = vpop.f32.mrf.mxu0
      %v1804 = vadd.f32 0.0, %v1803
      %v1805 = vpop.f32.mrf.mxu0
      %v1806 = vpop.f32.mrf.mxu0
      %v1807 = vadd.f32 0.0, %v1806
      %v1808 = vpop.f32.mrf.mxu0
      %1809 = vmatprep.mubr.bf16.mxu0 %v627
      %1810 = vmatmul.mubr.bf16.gmra.mxu0 %v520
      %v1811 = vpop.f32.mrf.mxu0
      %v1812 = vadd.f32 0.0, %v1811
      %v1813 = vpop.f32.mrf.mxu0
      %v1814 = vpop.f32.mrf.mxu0
      %v1815 = vadd.f32 0.0, %v1814
      %v1816 = vpop.f32.mrf.mxu0
      %1817 = vdwg.mxu0
      %s1818 = scalar_lea.vmem %s2, 80
      %v1819 = vld [vmem:[%s1818] sm:$0xf]
      %v1820 = vld [vmem:[%s1818 + $0x4] sm:$0xf]
      %v1821 = vld [vmem:[%s1818 + $0x8] sm:$0xf]
      %v1822 = vld [vmem:[%s1818 + $0xc] sm:$0xf]
      %v1823 = vpack.c.bf16 %v1807, %v1804
      %v1824 = vpack.c.bf16 %v1815, %v1812
      %v1829 = vunpack.c.l.b16 %v1819
      %v1830 = vunpack.c.l.b16 %v1820
      %v1831 = vunpack.c.l.b16 %v1821
      %v1832 = vunpack.c.l.b16 %v1822
      %v1833 = vpack.c.b16 %v1830, %v1829
      %v1834 = vpack.c.b16 %v1832, %v1831
      %v1836 = vsel %vm857, %v1833, 0
      %v1839 = vsel %vm857, %v1834, 0
      %1841 = vmatprep.subr.bf16.mxu0 0
      %1842 = vmatpush1.bf16.msra.mxu0 0
      %1843 = vmatprep.subr.bf16.mxu0 0
      %1844 = vmatpush1.bf16.msra.mxu0 0
      %1845 = vmatprep.subr.bf16.mxu0 0
      %1846 = vmatpush1.bf16.msra.mxu0 0
      %1847 = vmatprep.subr.bf16.mxu0 0
      %1848 = vmatpush1.bf16.msra.mxu0 0
      %1849 = vmatprep.subr.bf16.mxu0 0
      %1850 = vmatpush1.bf16.msra.mxu0 0
      %1851 = vmatprep.subr.bf16.mxu0 0
      %1852 = vmatpush1.bf16.msra.mxu0 0
      %1853 = vmatprep.subr.bf16.mxu0 0
      %1854 = vmatpush1.bf16.msra.mxu0 %v1824
      %1855 = vmatprep.subr.bf16.mxu0 0
      %1856 = vmatpush1.bf16.msra.mxu0 %v1823
      %1857 = vmatprep.subr.bf16.mxu0 0
      %1858 = vmatpush2.bf16.msra.mxu0 0
      %1859 = vmatprep.subr.bf16.mxu0 0
      %1860 = vmatpush2.bf16.msra.mxu0 0
      %1861 = vmatprep.subr.bf16.mxu0 0
      %1862 = vmatpush2.bf16.msra.mxu0 0
      %1863 = vmatprep.subr.bf16.mxu0 0
      %1864 = vmatpush2.bf16.msra.mxu0 0
      %1865 = vmatprep.subr.bf16.mxu0 0
      %1866 = vmatpush2.bf16.msra.mxu0 0
      %1867 = vmatprep.subr.bf16.mxu0 0
      %1868 = vmatpush2.bf16.msra.mxu0 0
      %1869 = vmatprep.subr.bf16.mxu0 0
      %1870 = vmatpush2.bf16.msra.mxu0 0
      %1871 = vmatprep.subr.bf16.mxu0 0
      %1872 = vmatpush2.bf16.msra.mxu0 0
      %1873 = vmatprep.mubr.bf16.mxu0 0
      %1874 = vmatmul.mubr.bf16.gmra.mxu0 %v1836
      %v1875 = vpop.f32.mrf.mxu0
      %v1876 = vadd.f32 0.0, %v1875
      %v1877 = vpop.f32.mrf.mxu0
      %v1878 = vpop.f32.mrf.mxu0
      %v1879 = vadd.f32 0.0, %v1878
      %v1880 = vpop.f32.mrf.mxu0
      %1881 = vmatprep.mubr.bf16.mxu0 0
      %1882 = vmatmul.mubr.bf16.gmra.mxu0 %v1839
      %v1883 = vpop.f32.mrf.mxu0
      %v1884 = vadd.f32 0.0, %v1883
      %v1885 = vpop.f32.mrf.mxu0
      %v1886 = vpop.f32.mrf.mxu0
      %v1887 = vadd.f32 0.0, %v1886
      %v1888 = vpop.f32.mrf.mxu0
      %1889 = vdwg.mxu0
      %v1890 = vadd.f32 %v1661, %v1876
      %v1891 = vadd.f32 %v1662, %v1879
      %v1892 = vadd.f32 %v1663, %v1884
      %v1893 = vadd.f32 %v1664, %v1887
      %s1894 = scalar_lea.vmem %s4, 600
      %v1895 = vld [vmem:[%s1894] sm:$0xf]
      %v1896 = vld [vmem:[%s1894 + $0x4] sm:$0xf]
      %v1897 = vld [vmem:[%s1894 + $0x8] sm:$0xf]
      %v1898 = vld [vmem:[%s1894 + $0xc] sm:$0xf]
      %v1899 = vld [vmem:[%s1894 + $0x10] sm:$0xf]
      %v1900 = vld [vmem:[%s1894 + $0x14] sm:$0xf]
      %v1901 = vld [vmem:[%s1894 + $0x18] sm:$0xf]
      %v1902 = vld [vmem:[%s1894 + $0x1c] sm:$0xf]
      %v1903 = vld [vmem:[%s1894 + $0x20] sm:$0xf]
      %v1904 = vld [vmem:[%s1894 + $0x24] sm:$0xf]
      %v1905 = vld [vmem:[%s1894 + $0x28] sm:$0xf]
      %v1906 = vld [vmem:[%s1894 + $0x2c] sm:$0xf]
      %v1907 = vld [vmem:[%s1894 + $0x30] sm:$0xf]
      %v1908 = vld [vmem:[%s1894 + $0x34] sm:$0xf]
      %v1909 = vld [vmem:[%s1894 + $0x38] sm:$0xf]
      %v1910 = vld [vmem:[%s1894 + $0x3c] sm:$0xf]
      %v1911 = vld [vmem:[%s1894 + $0x40] sm:$0xf]
      %v1912 = vld [vmem:[%s1894 + $0x44] sm:$0xf]
      %v1913 = vld [vmem:[%s1894 + $0x48] sm:$0xf]
      %v1914 = vld [vmem:[%s1894 + $0x4c] sm:$0xf]
      %v1915 = vld [vmem:[%s1894 + $0x50] sm:$0xf]
      %v1916 = vld [vmem:[%s1894 + $0x54] sm:$0xf]
      %v1917 = vld [vmem:[%s1894 + $0x58] sm:$0xf]
      %v1918 = vld [vmem:[%s1894 + $0x5c] sm:$0xf]
      %v1919 = vld [vmem:[%s1894 + $0x60] sm:$0x3]
      %v1945 = vunpack.c.l.b16 %v1895
      %v1946 = vunpack.c.l.b16 %v1896
      %v1947 = vunpack.c.l.b16 %v1897
      %v1948 = vunpack.c.l.b16 %v1898
      %v1949 = vunpack.c.l.b16 %v1899
      %v1950 = vunpack.c.l.b16 %v1900
      %v1951 = vunpack.c.l.b16 %v1901
      %v1952 = vunpack.c.l.b16 %v1902
      %v1953 = vunpack.c.l.b16 %v1903
      %v1954 = vunpack.c.l.b16 %v1904
      %v1955 = vunpack.c.l.b16 %v1905
      %v1956 = vunpack.c.l.b16 %v1906
      %v1957 = vunpack.c.l.b16 %v1907
      %v1958 = vunpack.c.l.b16 %v1908
      %v1959 = vunpack.c.l.b16 %v1909
      %v1960 = vunpack.c.l.b16 %v1910
      %v1961 = vunpack.c.l.b16 %v1911
      %v1962 = vunpack.c.l.b16 %v1912
      %v1963 = vunpack.c.l.b16 %v1913
      %v1964 = vunpack.c.l.b16 %v1914
      %v1965 = vunpack.c.l.b16 %v1915
      %v1966 = vunpack.c.l.b16 %v1916
      %v1967 = vunpack.c.l.b16 %v1917
      %v1968 = vunpack.c.l.b16 %v1918
      %v1969 = vunpack.c.l.b16 %v1919
      %v1970 = vpack.c.b16 %v1946, %v1945
      %v1971 = vpack.c.b16 %v1948, %v1947
      %v1972 = vpack.c.b16 %v1950, %v1949
      %v1973 = vpack.c.b16 %v1952, %v1951
      %v1974 = vpack.c.b16 %v1954, %v1953
      %v1975 = vpack.c.b16 %v1956, %v1955
      %v1976 = vpack.c.b16 %v1958, %v1957
      %v1977 = vpack.c.b16 %v1960, %v1959
      %v1978 = vpack.c.b16 %v1962, %v1961
      %v1979 = vpack.c.b16 %v1964, %v1963
      %v1980 = vpack.c.b16 %v1966, %v1965
      %v1981 = vpack.c.b16 %v1968, %v1967
      %v1982 = vpack.c.b16 %v1969, %v1969
      %v1996 = vsel %vm448, %v1982, 0
      %1998 = vmatprep.subr.bf16.mxu0 0
      %1999 = vmatpush1.bf16.msra.mxu0 %v1977
      %2000 = vmatprep.subr.bf16.mxu0 0
      %2001 = vmatpush1.bf16.msra.mxu0 %v1976
      %2002 = vmatprep.subr.bf16.mxu0 0
      %2003 = vmatpush1.bf16.msra.mxu0 %v1975
      %2004 = vmatprep.subr.bf16.mxu0 0
      %2005 = vmatpush1.bf16.msra.mxu0 %v1974
      %2006 = vmatprep.subr.bf16.mxu0 0
      %2007 = vmatpush1.bf16.msra.mxu0 %v1973
      %2008 = vmatprep.subr.bf16.mxu0 0
      %2009 = vmatpush1.bf16.msra.mxu0 %v1972
      %2010 = vmatprep.subr.bf16.mxu0 0
      %2011 = vmatpush1.bf16.msra.mxu0 %v1971
      %2012 = vmatprep.subr.bf16.mxu0 0
      %2013 = vmatpush1.bf16.msra.mxu0 %v1970
      %2014 = vmatprep.subr.bf16.mxu0 0
      %2015 = vmatpush2.bf16.msra.mxu0 0
      %2016 = vmatprep.subr.bf16.mxu0 0
      %2017 = vmatpush2.bf16.msra.mxu0 0
      %2018 = vmatprep.subr.bf16.mxu0 0
      %2019 = vmatpush2.bf16.msra.mxu0 0
      %2020 = vmatprep.subr.bf16.mxu0 0
      %2021 = vmatpush2.bf16.msra.mxu0 %v1996
      %2022 = vmatprep.subr.bf16.mxu0 0
      %2023 = vmatpush2.bf16.msra.mxu0 %v1981
      %2024 = vmatprep.subr.bf16.mxu0 0
      %2025 = vmatpush2.bf16.msra.mxu0 %v1980
      %2026 = vmatprep.subr.bf16.mxu0 0
      %2027 = vmatpush2.bf16.msra.mxu0 %v1979
      %2028 = vmatprep.subr.bf16.mxu0 0
      %2029 = vmatpush2.bf16.msra.mxu0 %v1978
      %2030 = vmatprep.mubr.bf16.mxu0 %v624
      %2031 = vmatmul.mubr.bf16.gmra.mxu0 %v518
      %v2032 = vpop.f32.mrf.mxu0
      %v2033 = vadd.f32 0.0, %v2032
      %v2034 = vpop.f32.mrf.mxu0
      %v2035 = vpop.f32.mrf.mxu0
      %v2036 = vadd.f32 0.0, %v2035
      %v2037 = vpop.f32.mrf.mxu0
      %2038 = vmatprep.mubr.bf16.mxu0 %v627
      %2039 = vmatmul.mubr.bf16.gmra.mxu0 %v520
      %v2040 = vpop.f32.mrf.mxu0
      %v2041 = vadd.f32 0.0, %v2040
      %v2042 = vpop.f32.mrf.mxu0
      %v2043 = vpop.f32.mrf.mxu0
      %v2044 = vadd.f32 0.0, %v2043
      %v2045 = vpop.f32.mrf.mxu0
      %2046 = vdwg.mxu0
      %s2047 = scalar_lea.vmem %s2, 96
      %v2048 = vld [vmem:[%s2047] sm:$0xf]
      %v2049 = vld [vmem:[%s2047 + $0x4] sm:$0xf]
      %v2050 = vld [vmem:[%s2047 + $0x8] sm:$0xf]
      %v2051 = vld [vmem:[%s2047 + $0xc] sm:$0xf]
      %v2052 = vpack.c.bf16 %v2036, %v2033
      %v2053 = vpack.c.bf16 %v2044, %v2041
      %v2058 = vunpack.c.l.b16 %v2048
      %v2059 = vunpack.c.l.b16 %v2049
      %v2060 = vunpack.c.l.b16 %v2050
      %v2061 = vunpack.c.l.b16 %v2051
      %v2062 = vpack.c.b16 %v2059, %v2058
      %v2063 = vpack.c.b16 %v2061, %v2060
      %v2065 = vsel %vm857, %v2062, 0
      %v2068 = vsel %vm857, %v2063, 0
      %2070 = vmatprep.subr.bf16.mxu0 0
      %2071 = vmatpush1.bf16.msra.mxu0 0
      %2072 = vmatprep.subr.bf16.mxu0 0
      %2073 = vmatpush1.bf16.msra.mxu0 0
      %2074 = vmatprep.subr.bf16.mxu0 0
      %2075 = vmatpush1.bf16.msra.mxu0 0
      %2076 = vmatprep.subr.bf16.mxu0 0
      %2077 = vmatpush1.bf16.msra.mxu0 0
      %2078 = vmatprep.subr.bf16.mxu0 0
      %2079 = vmatpush1.bf16.msra.mxu0 0
      %2080 = vmatprep.subr.bf16.mxu0 0
      %2081 = vmatpush1.bf16.msra.mxu0 0
      %2082 = vmatprep.subr.bf16.mxu0 0
      %2083 = vmatpush1.bf16.msra.mxu0 %v2053
      %2084 = vmatprep.subr.bf16.mxu0 0
      %2085 = vmatpush1.bf16.msra.mxu0 %v2052
      %2086 = vmatprep.subr.bf16.mxu0 0
      %2087 = vmatpush2.bf16.msra.mxu0 0
      %2088 = vmatprep.subr.bf16.mxu0 0
      %2089 = vmatpush2.bf16.msra.mxu0 0
      %2090 = vmatprep.subr.bf16.mxu0 0
      %2091 = vmatpush2.bf16.msra.mxu0 0
      %2092 = vmatprep.subr.bf16.mxu0 0
      %2093 = vmatpush2.bf16.msra.mxu0 0
      %2094 = vmatprep.subr.bf16.mxu0 0
      %2095 = vmatpush2.bf16.msra.mxu0 0
      %2096 = vmatprep.subr.bf16.mxu0 0
      %2097 = vmatpush2.bf16.msra.mxu0 0
      %2098 = vmatprep.subr.bf16.mxu0 0
      %2099 = vmatpush2.bf16.msra.mxu0 0
      %2100 = vmatprep.subr.bf16.mxu0 0
      %2101 = vmatpush2.bf16.msra.mxu0 0
      %2102 = vmatprep.mubr.bf16.mxu0 0
      %2103 = vmatmul.mubr.bf16.gmra.mxu0 %v2065
      %v2104 = vpop.f32.mrf.mxu0
      %v2105 = vadd.f32 0.0, %v2104
      %v2106 = vpop.f32.mrf.mxu0
      %v2107 = vpop.f32.mrf.mxu0
      %v2108 = vadd.f32 0.0, %v2107
      %v2109 = vpop.f32.mrf.mxu0
      %2110 = vmatprep.mubr.bf16.mxu0 0
      %2111 = vmatmul.mubr.bf16.gmra.mxu0 %v2068
      %v2112 = vpop.f32.mrf.mxu0
      %v2113 = vadd.f32 0.0, %v2112
      %v2114 = vpop.f32.mrf.mxu0
      %v2115 = vpop.f32.mrf.mxu0
      %v2116 = vadd.f32 0.0, %v2115
      %v2117 = vpop.f32.mrf.mxu0
      %2118 = vdwg.mxu0
      %v2119 = vadd.f32 %v1890, %v2105
      %v2120 = vadd.f32 %v1891, %v2108
      %v2121 = vadd.f32 %v1892, %v2113
      %v2122 = vadd.f32 %v1893, %v2116
      %s2123 = scalar_lea.vmem %s4, 700
      %v2124 = vld [vmem:[%s2123] sm:$0xf]
      %v2125 = vld [vmem:[%s2123 + $0x4] sm:$0xf]
      %v2126 = vld [vmem:[%s2123 + $0x8] sm:$0xf]
      %v2127 = vld [vmem:[%s2123 + $0xc] sm:$0xf]
      %v2128 = vld [vmem:[%s2123 + $0x10] sm:$0xf]
      %v2129 = vld [vmem:[%s2123 + $0x14] sm:$0xf]
      %v2130 = vld [vmem:[%s2123 + $0x18] sm:$0xf]
      %v2131 = vld [vmem:[%s2123 + $0x1c] sm:$0xf]
      %v2132 = vld [vmem:[%s2123 + $0x20] sm:$0xf]
      %v2133 = vld [vmem:[%s2123 + $0x24] sm:$0xf]
      %v2134 = vld [vmem:[%s2123 + $0x28] sm:$0xf]
      %v2135 = vld [vmem:[%s2123 + $0x2c] sm:$0xf]
      %v2136 = vld [vmem:[%s2123 + $0x30] sm:$0xf]
      %v2137 = vld [vmem:[%s2123 + $0x34] sm:$0xf]
      %v2138 = vld [vmem:[%s2123 + $0x38] sm:$0xf]
      %v2139 = vld [vmem:[%s2123 + $0x3c] sm:$0xf]
      %v2140 = vld [vmem:[%s2123 + $0x40] sm:$0xf]
      %v2141 = vld [vmem:[%s2123 + $0x44] sm:$0xf]
      %v2142 = vld [vmem:[%s2123 + $0x48] sm:$0xf]
      %v2143 = vld [vmem:[%s2123 + $0x4c] sm:$0xf]
      %v2144 = vld [vmem:[%s2123 + $0x50] sm:$0xf]
      %v2145 = vld [vmem:[%s2123 + $0x54] sm:$0xf]
      %v2146 = vld [vmem:[%s2123 + $0x58] sm:$0xf]
      %v2147 = vld [vmem:[%s2123 + $0x5c] sm:$0xf]
      %v2148 = vld [vmem:[%s2123 + $0x60] sm:$0x3]
      %v2174 = vunpack.c.l.b16 %v2124
      %v2175 = vunpack.c.l.b16 %v2125
      %v2176 = vunpack.c.l.b16 %v2126
      %v2177 = vunpack.c.l.b16 %v2127
      %v2178 = vunpack.c.l.b16 %v2128
      %v2179 = vunpack.c.l.b16 %v2129
      %v2180 = vunpack.c.l.b16 %v2130
      %v2181 = vunpack.c.l.b16 %v2131
      %v2182 = vunpack.c.l.b16 %v2132
      %v2183 = vunpack.c.l.b16 %v2133
      %v2184 = vunpack.c.l.b16 %v2134
      %v2185 = vunpack.c.l.b16 %v2135
      %v2186 = vunpack.c.l.b16 %v2136
      %v2187 = vunpack.c.l.b16 %v2137
      %v2188 = vunpack.c.l.b16 %v2138
      %v2189 = vunpack.c.l.b16 %v2139
      %v2190 = vunpack.c.l.b16 %v2140
      %v2191 = vunpack.c.l.b16 %v2141
      %v2192 = vunpack.c.l.b16 %v2142
      %v2193 = vunpack.c.l.b16 %v2143
      %v2194 = vunpack.c.l.b16 %v2144
      %v2195 = vunpack.c.l.b16 %v2145
      %v2196 = vunpack.c.l.b16 %v2146
      %v2197 = vunpack.c.l.b16 %v2147
      %v2198 = vunpack.c.l.b16 %v2148
      %v2199 = vpack.c.b16 %v2175, %v2174
      %v2200 = vpack.c.b16 %v2177, %v2176
      %v2201 = vpack.c.b16 %v2179, %v2178
      %v2202 = vpack.c.b16 %v2181, %v2180
      %v2203 = vpack.c.b16 %v2183, %v2182
      %v2204 = vpack.c.b16 %v2185, %v2184
      %v2205 = vpack.c.b16 %v2187, %v2186
      %v2206 = vpack.c.b16 %v2189, %v2188
      %v2207 = vpack.c.b16 %v2191, %v2190
      %v2208 = vpack.c.b16 %v2193, %v2192
      %v2209 = vpack.c.b16 %v2195, %v2194
      %v2210 = vpack.c.b16 %v2197, %v2196
      %v2211 = vpack.c.b16 %v2198, %v2198
      %v2225 = vsel %vm448, %v2211, 0
      %2227 = vmatprep.subr.bf16.mxu0 0
      %2228 = vmatpush1.bf16.msra.mxu0 %v2206
      %2229 = vmatprep.subr.bf16.mxu0 0
      %2230 = vmatpush1.bf16.msra.mxu0 %v2205
      %2231 = vmatprep.subr.bf16.mxu0 0
      %2232 = vmatpush1.bf16.msra.mxu0 %v2204
      %2233 = vmatprep.subr.bf16.mxu0 0
      %2234 = vmatpush1.bf16.msra.mxu0 %v2203
      %2235 = vmatprep.subr.bf16.mxu0 0
      %2236 = vmatpush1.bf16.msra.mxu0 %v2202
      %2237 = vmatprep.subr.bf16.mxu0 0
      %2238 = vmatpush1.bf16.msra.mxu0 %v2201
      %2239 = vmatprep.subr.bf16.mxu0 0
      %2240 = vmatpush1.bf16.msra.mxu0 %v2200
      %2241 = vmatprep.subr.bf16.mxu0 0
      %2242 = vmatpush1.bf16.msra.mxu0 %v2199
      %2243 = vmatprep.subr.bf16.mxu0 0
      %2244 = vmatpush2.bf16.msra.mxu0 0
      %2245 = vmatprep.subr.bf16.mxu0 0
      %2246 = vmatpush2.bf16.msra.mxu0 0
      %2247 = vmatprep.subr.bf16.mxu0 0
      %2248 = vmatpush2.bf16.msra.mxu0 0
      %2249 = vmatprep.subr.bf16.mxu0 0
      %2250 = vmatpush2.bf16.msra.mxu0 %v2225
      %2251 = vmatprep.subr.bf16.mxu0 0
      %2252 = vmatpush2.bf16.msra.mxu0 %v2210
      %2253 = vmatprep.subr.bf16.mxu0 0
      %2254 = vmatpush2.bf16.msra.mxu0 %v2209
      %2255 = vmatprep.subr.bf16.mxu0 0
      %2256 = vmatpush2.bf16.msra.mxu0 %v2208
      %2257 = vmatprep.subr.bf16.mxu0 0
      %2258 = vmatpush2.bf16.msra.mxu0 %v2207
      %2259 = vmatprep.mubr.bf16.mxu0 %v624
      %2260 = vmatmul.mubr.bf16.gmra.mxu0 %v518
      %v2261 = vpop.f32.mrf.mxu0
      %v2262 = vadd.f32 0.0, %v2261
      %v2263 = vpop.f32.mrf.mxu0
      %v2264 = vpop.f32.mrf.mxu0
      %v2265 = vadd.f32 0.0, %v2264
      %v2266 = vpop.f32.mrf.mxu0
      %2267 = vmatprep.mubr.bf16.mxu0 %v627
      %2268 = vmatmul.mubr.bf16.gmra.mxu0 %v520
      %v2269 = vpop.f32.mrf.mxu0
      %v2270 = vadd.f32 0.0, %v2269
      %v2271 = vpop.f32.mrf.mxu0
      %v2272 = vpop.f32.mrf.mxu0
      %v2273 = vadd.f32 0.0, %v2272
      %v2274 = vpop.f32.mrf.mxu0
      %2275 = vdwg.mxu0
      %s2276 = scalar_lea.vmem %s2, 112
      %v2277 = vld [vmem:[%s2276] sm:$0xf]
      %v2278 = vld [vmem:[%s2276 + $0x4] sm:$0xf]
      %v2279 = vld [vmem:[%s2276 + $0x8] sm:$0xf]
      %v2280 = vld [vmem:[%s2276 + $0xc] sm:$0xf]
      %v2281 = vpack.c.bf16 %v2265, %v2262
      %v2282 = vpack.c.bf16 %v2273, %v2270
      %v2287 = vunpack.c.l.b16 %v2277
      %v2288 = vunpack.c.l.b16 %v2278
      %v2289 = vunpack.c.l.b16 %v2279
      %v2290 = vunpack.c.l.b16 %v2280
      %v2291 = vpack.c.b16 %v2288, %v2287
      %v2292 = vpack.c.b16 %v2290, %v2289
      %v2294 = vsel %vm857, %v2291, 0
      %v2297 = vsel %vm857, %v2292, 0
      %2299 = vmatprep.subr.bf16.mxu0 0
      %2300 = vmatpush1.bf16.msra.mxu0 0
      %2301 = vmatprep.subr.bf16.mxu0 0
      %2302 = vmatpush1.bf16.msra.mxu0 0
      %2303 = vmatprep.subr.bf16.mxu0 0
      %2304 = vmatpush1.bf16.msra.mxu0 0
      %2305 = vmatprep.subr.bf16.mxu0 0
      %2306 = vmatpush1.bf16.msra.mxu0 0
      %2307 = vmatprep.subr.bf16.mxu0 0
      %2308 = vmatpush1.bf16.msra.mxu0 0
      %2309 = vmatprep.subr.bf16.mxu0 0
      %2310 = vmatpush1.bf16.msra.mxu0 0
      %2311 = vmatprep.subr.bf16.mxu0 0
      %2312 = vmatpush1.bf16.msra.mxu0 %v2282
      %2313 = vmatprep.subr.bf16.mxu0 0
      %2314 = vmatpush1.bf16.msra.mxu0 %v2281
      %2315 = vmatprep.subr.bf16.mxu0 0
      %2316 = vmatpush2.bf16.msra.mxu0 0
      %2317 = vmatprep.subr.bf16.mxu0 0
      %2318 = vmatpush2.bf16.msra.mxu0 0
      %2319 = vmatprep.subr.bf16.mxu0 0
      %2320 = vmatpush2.bf16.msra.mxu0 0
      %2321 = vmatprep.subr.bf16.mxu0 0
      %2322 = vmatpush2.bf16.msra.mxu0 0
      %2323 = vmatprep.subr.bf16.mxu0 0
      %2324 = vmatpush2.bf16.msra.mxu0 0
      %2325 = vmatprep.subr.bf16.mxu0 0
      %2326 = vmatpush2.bf16.msra.mxu0 0
      %2327 = vmatprep.subr.bf16.mxu0 0
      %2328 = vmatpush2.bf16.msra.mxu0 0
      %2329 = vmatprep.subr.bf16.mxu0 0
      %2330 = vmatpush2.bf16.msra.mxu0 0
      %2331 = vmatprep.mubr.bf16.mxu0 0
      %2332 = vmatmul.mubr.bf16.gmra.mxu0 %v2294
      %v2333 = vpop.f32.mrf.mxu0
      %v2334 = vadd.f32 0.0, %v2333
      %v2335 = vpop.f32.mrf.mxu0
      %v2336 = vpop.f32.mrf.mxu0
      %v2337 = vadd.f32 0.0, %v2336
      %v2338 = vpop.f32.mrf.mxu0
      %2339 = vmatprep.mubr.bf16.mxu0 0
      %2340 = vmatmul.mubr.bf16.gmra.mxu0 %v2297
      %v2341 = vpop.f32.mrf.mxu0
      %v2342 = vadd.f32 0.0, %v2341
      %v2343 = vpop.f32.mrf.mxu0
      %v2344 = vpop.f32.mrf.mxu0
      %v2345 = vadd.f32 0.0, %v2344
      %v2346 = vpop.f32.mrf.mxu0
      %2347 = vdwg.mxu0
      %v2348 = vadd.f32 %v2119, %v2334
      %v2349 = vadd.f32 %v2120, %v2337
      %v2350 = vadd.f32 %v2121, %v2342
      %v2351 = vadd.f32 %v2122, %v2345
      %s2352 = scalar_lea.vmem %s4, 800
      %v2353 = vld [vmem:[%s2352] sm:$0xf]
      %v2354 = vld [vmem:[%s2352 + $0x4] sm:$0xf]
      %v2355 = vld [vmem:[%s2352 + $0x8] sm:$0xf]
      %v2356 = vld [vmem:[%s2352 + $0xc] sm:$0xf]
      %v2357 = vld [vmem:[%s2352 + $0x10] sm:$0xf]
      %v2358 = vld [vmem:[%s2352 + $0x14] sm:$0xf]
      %v2359 = vld [vmem:[%s2352 + $0x18] sm:$0xf]
      %v2360 = vld [vmem:[%s2352 + $0x1c] sm:$0xf]
      %v2361 = vld [vmem:[%s2352 + $0x20] sm:$0xf]
      %v2362 = vld [vmem:[%s2352 + $0x24] sm:$0xf]
      %v2363 = vld [vmem:[%s2352 + $0x28] sm:$0xf]
      %v2364 = vld [vmem:[%s2352 + $0x2c] sm:$0xf]
      %v2365 = vld [vmem:[%s2352 + $0x30] sm:$0xf]
      %v2366 = vld [vmem:[%s2352 + $0x34] sm:$0xf]
      %v2367 = vld [vmem:[%s2352 + $0x38] sm:$0xf]
      %v2368 = vld [vmem:[%s2352 + $0x3c] sm:$0xf]
      %v2369 = vld [vmem:[%s2352 + $0x40] sm:$0xf]
      %v2370 = vld [vmem:[%s2352 + $0x44] sm:$0xf]
      %v2371 = vld [vmem:[%s2352 + $0x48] sm:$0xf]
      %v2372 = vld [vmem:[%s2352 + $0x4c] sm:$0xf]
      %v2373 = vld [vmem:[%s2352 + $0x50] sm:$0xf]
      %v2374 = vld [vmem:[%s2352 + $0x54] sm:$0xf]
      %v2375 = vld [vmem:[%s2352 + $0x58] sm:$0xf]
      %v2376 = vld [vmem:[%s2352 + $0x5c] sm:$0xf]
      %v2377 = vld [vmem:[%s2352 + $0x60] sm:$0x3]
      %v2403 = vunpack.c.l.b16 %v2353
      %v2404 = vunpack.c.l.b16 %v2354
      %v2405 = vunpack.c.l.b16 %v2355
      %v2406 = vunpack.c.l.b16 %v2356
      %v2407 = vunpack.c.l.b16 %v2357
      %v2408 = vunpack.c.l.b16 %v2358
      %v2409 = vunpack.c.l.b16 %v2359
      %v2410 = vunpack.c.l.b16 %v2360
      %v2411 = vunpack.c.l.b16 %v2361
      %v2412 = vunpack.c.l.b16 %v2362
      %v2413 = vunpack.c.l.b16 %v2363
      %v2414 = vunpack.c.l.b16 %v2364
      %v2415 = vunpack.c.l.b16 %v2365
      %v2416 = vunpack.c.l.b16 %v2366
      %v2417 = vunpack.c.l.b16 %v2367
      %v2418 = vunpack.c.l.b16 %v2368
      %v2419 = vunpack.c.l.b16 %v2369
      %v2420 = vunpack.c.l.b16 %v2370
      %v2421 = vunpack.c.l.b16 %v2371
      %v2422 = vunpack.c.l.b16 %v2372
      %v2423 = vunpack.c.l.b16 %v2373
      %v2424 = vunpack.c.l.b16 %v2374
      %v2425 = vunpack.c.l.b16 %v2375
      %v2426 = vunpack.c.l.b16 %v2376
      %v2427 = vunpack.c.l.b16 %v2377
      %v2428 = vpack.c.b16 %v2404, %v2403
      %v2429 = vpack.c.b16 %v2406, %v2405
      %v2430 = vpack.c.b16 %v2408, %v2407
      %v2431 = vpack.c.b16 %v2410, %v2409
      %v2432 = vpack.c.b16 %v2412, %v2411
      %v2433 = vpack.c.b16 %v2414, %v2413
      %v2434 = vpack.c.b16 %v2416, %v2415
      %v2435 = vpack.c.b16 %v2418, %v2417
      %v2436 = vpack.c.b16 %v2420, %v2419
      %v2437 = vpack.c.b16 %v2422, %v2421
      %v2438 = vpack.c.b16 %v2424, %v2423
      %v2439 = vpack.c.b16 %v2426, %v2425
      %v2440 = vpack.c.b16 %v2427, %v2427
      %v2454 = vsel %vm448, %v2440, 0
      %2456 = vmatprep.subr.bf16.mxu0 0
      %2457 = vmatpush1.bf16.msra.mxu0 %v2435
      %2458 = vmatprep.subr.bf16.mxu0 0
      %2459 = vmatpush1.bf16.msra.mxu0 %v2434
      %2460 = vmatprep.subr.bf16.mxu0 0
      %2461 = vmatpush1.bf16.msra.mxu0 %v2433
      %2462 = vmatprep.subr.bf16.mxu0 0
      %2463 = vmatpush1.bf16.msra.mxu0 %v2432
      %2464 = vmatprep.subr.bf16.mxu0 0
      %2465 = vmatpush1.bf16.msra.mxu0 %v2431
      %2466 = vmatprep.subr.bf16.mxu0 0
      %2467 = vmatpush1.bf16.msra.mxu0 %v2430
      %2468 = vmatprep.subr.bf16.mxu0 0
      %2469 = vmatpush1.bf16.msra.mxu0 %v2429
      %2470 = vmatprep.subr.bf16.mxu0 0
      %2471 = vmatpush1.bf16.msra.mxu0 %v2428
      %2472 = vmatprep.subr.bf16.mxu0 0
      %2473 = vmatpush2.bf16.msra.mxu0 0
      %2474 = vmatprep.subr.bf16.mxu0 0
      %2475 = vmatpush2.bf16.msra.mxu0 0
      %2476 = vmatprep.subr.bf16.mxu0 0
      %2477 = vmatpush2.bf16.msra.mxu0 0
      %2478 = vmatprep.subr.bf16.mxu0 0
      %2479 = vmatpush2.bf16.msra.mxu0 %v2454
      %2480 = vmatprep.subr.bf16.mxu0 0
      %2481 = vmatpush2.bf16.msra.mxu0 %v2439
      %2482 = vmatprep.subr.bf16.mxu0 0
      %2483 = vmatpush2.bf16.msra.mxu0 %v2438
      %2484 = vmatprep.subr.bf16.mxu0 0
      %2485 = vmatpush2.bf16.msra.mxu0 %v2437
      %2486 = vmatprep.subr.bf16.mxu0 0
      %2487 = vmatpush2.bf16.msra.mxu0 %v2436
      %2488 = vmatprep.mubr.bf16.mxu0 %v624
      %2489 = vmatmul.mubr.bf16.gmra.mxu0 %v518
      %v2490 = vpop.f32.mrf.mxu0
      %v2491 = vadd.f32 0.0, %v2490
      %v2492 = vpop.f32.mrf.mxu0
      %v2493 = vpop.f32.mrf.mxu0
      %v2494 = vadd.f32 0.0, %v2493
      %v2495 = vpop.f32.mrf.mxu0
      %2496 = vmatprep.mubr.bf16.mxu0 %v627
      %2497 = vmatmul.mubr.bf16.gmra.mxu0 %v520
      %v2498 = vpop.f32.mrf.mxu0
      %v2499 = vadd.f32 0.0, %v2498
      %v2500 = vpop.f32.mrf.mxu0
      %v2501 = vpop.f32.mrf.mxu0
      %v2502 = vadd.f32 0.0, %v2501
      %v2503 = vpop.f32.mrf.mxu0
      %2504 = vdwg.mxu0
      %s2505 = scalar_lea.vmem %s2, 128
      %v2506 = vld [vmem:[%s2505] sm:$0xf]
      %v2507 = vld [vmem:[%s2505 + $0x4] sm:$0xf]
      %v2508 = vld [vmem:[%s2505 + $0x8] sm:$0xf]
      %v2509 = vld [vmem:[%s2505 + $0xc] sm:$0xf]
      %v2510 = vpack.c.bf16 %v2494, %v2491
      %v2511 = vpack.c.bf16 %v2502, %v2499
      %v2516 = vunpack.c.l.b16 %v2506
      %v2517 = vunpack.c.l.b16 %v2507
      %v2518 = vunpack.c.l.b16 %v2508
      %v2519 = vunpack.c.l.b16 %v2509
      %v2520 = vpack.c.b16 %v2517, %v2516
      %v2521 = vpack.c.b16 %v2519, %v2518
      %v2523 = vsel %vm857, %v2520, 0
      %v2526 = vsel %vm857, %v2521, 0
      %2528 = vmatprep.subr.bf16.mxu0 0
      %2529 = vmatpush1.bf16.msra.mxu0 0
      %2530 = vmatprep.subr.bf16.mxu0 0
      %2531 = vmatpush1.bf16.msra.mxu0 0
      %2532 = vmatprep.subr.bf16.mxu0 0
      %2533 = vmatpush1.bf16.msra.mxu0 0
      %2534 = vmatprep.subr.bf16.mxu0 0
      %2535 = vmatpush1.bf16.msra.mxu0 0
      %2536 = vmatprep.subr.bf16.mxu0 0
      %2537 = vmatpush1.bf16.msra.mxu0 0
      %2538 = vmatprep.subr.bf16.mxu0 0
      %2539 = vmatpush1.bf16.msra.mxu0 0
      %2540 = vmatprep.subr.bf16.mxu0 0
      %2541 = vmatpush1.bf16.msra.mxu0 %v2511
      %2542 = vmatprep.subr.bf16.mxu0 0
      %2543 = vmatpush1.bf16.msra.mxu0 %v2510
      %2544 = vmatprep.subr.bf16.mxu0 0
      %2545 = vmatpush2.bf16.msra.mxu0 0
      %2546 = vmatprep.subr.bf16.mxu0 0
      %2547 = vmatpush2.bf16.msra.mxu0 0
      %2548 = vmatprep.subr.bf16.mxu0 0
      %2549 = vmatpush2.bf16.msra.mxu0 0
      %2550 = vmatprep.subr.bf16.mxu0 0
      %2551 = vmatpush2.bf16.msra.mxu0 0
      %2552 = vmatprep.subr.bf16.mxu0 0
      %2553 = vmatpush2.bf16.msra.mxu0 0
      %2554 = vmatprep.subr.bf16.mxu0 0
      %2555 = vmatpush2.bf16.msra.mxu0 0
      %2556 = vmatprep.subr.bf16.mxu0 0
      %2557 = vmatpush2.bf16.msra.mxu0 0
      %2558 = vmatprep.subr.bf16.mxu0 0
      %2559 = vmatpush2.bf16.msra.mxu0 0
      %2560 = vmatprep.mubr.bf16.mxu0 0
      %2561 = vmatmul.mubr.bf16.gmra.mxu0 %v2523
      %v2562 = vpop.f32.mrf.mxu0
      %v2563 = vadd.f32 0.0, %v2562
      %v2564 = vpop.f32.mrf.mxu0
      %v2565 = vpop.f32.mrf.mxu0
      %v2566 = vadd.f32 0.0, %v2565
      %v2567 = vpop.f32.mrf.mxu0
      %2568 = vmatprep.mubr.bf16.mxu0 0
      %2569 = vmatmul.mubr.bf16.gmra.mxu0 %v2526
      %v2570 = vpop.f32.mrf.mxu0
      %v2571 = vadd.f32 0.0, %v2570
      %v2572 = vpop.f32.mrf.mxu0
      %v2573 = vpop.f32.mrf.mxu0
      %v2574 = vadd.f32 0.0, %v2573
      %v2575 = vpop.f32.mrf.mxu0
      %2576 = vdwg.mxu0
      %v2577 = vadd.f32 %v2348, %v2563
      %v2578 = vadd.f32 %v2349, %v2566
      %v2579 = vadd.f32 %v2350, %v2571
      %v2580 = vadd.f32 %v2351, %v2574
      %s2581 = scalar_lea.vmem %s6, 32
      %v2582 = vld [vmem:[%s2581] sm:$0xff]
      %v2583 = vld [vmem:[%s2581 + $0x8] sm:$0xff]
      %v2584 = vld [vmem:[%s2581 + $0x10] sm:$0xff]
      %v2585 = vld [vmem:[%s2581 + $0x18] sm:$0xff]
      %2587 = vset.pattern.permute.xlu0 0
      %2588 = vperm.xlu0 %2587, %v2582
      %v2589 = vpop.permute.xlu0 %2588
      %2592 = vset.pattern.permute.xlu0 0
      %2593 = vperm.xlu0 %2592, %v2583
      %v2594 = vpop.permute.xlu0 %2593
      %2597 = vset.pattern.permute.xlu0 0
      %2598 = vperm.xlu0 %2597, %v2584
      %v2599 = vpop.permute.xlu0 %2598
      %2602 = vset.pattern.permute.xlu0 0
      %2603 = vperm.xlu0 %2602, %v2585
      %v2604 = vpop.permute.xlu0 %2603
      %v2606 = vadd.f32 %v2577, %v2589
      %v2607 = vadd.f32 %v2578, %v2594
      %v2608 = vadd.f32 %v2579, %v2599
      %v2609 = vadd.f32 %v2580, %v2604
      %v2610 = vmax.f32 %v2606, 0.0
      %v2611 = vmax.f32 %v2607, 0.0
      %v2612 = vmax.f32 %v2608, 0.0
      %v2613 = vmax.f32 %v2609, 0.0
      %v2614 = vpack.c.bf16 %v2611, %v2610
      %v2615 = vpack.c.bf16 %v2613, %v2612
      %v2616 = vld [vmem:[%s5] sm:$0xf]
      %v2617 = vld [vmem:[%s5 + $0x4] sm:$0xf]
      %v2618 = vld [vmem:[%s5 + $0x8] sm:$0xf]
      %v2619 = vld [vmem:[%s5 + $0xc] sm:$0xf]
      %v2620 = vld [vmem:[%s5 + $0x10] sm:$0xf]
      %v2621 = vld [vmem:[%s5 + $0x14] sm:$0xf]
      %v2622 = vld [vmem:[%s5 + $0x18] sm:$0x1]
      %v2630 = vunpack.c.l.b16 %v2616
      %v2631 = vunpack.c.l.b16 %v2617
      %v2632 = vunpack.c.l.b16 %v2618
      %v2633 = vunpack.c.l.b16 %v2619
      %v2634 = vunpack.c.l.b16 %v2620
      %v2635 = vunpack.c.l.b16 %v2621
      %v2636 = vunpack.c.l.b16 %v2622
      %v2637 = vpack.c.b16 %v2631, %v2630
      %v2638 = vpack.c.b16 %v2633, %v2632
      %v2639 = vpack.c.b16 %v2635, %v2634
      %v2640 = vpack.c.b16 %v2636, %v2636
      %vm2644 = vcmask 400384
      %v2646 = vsel %vm2644, %v2614, 0
      %v2649 = vsel %vm2644, %v2615, 0
      %v2651 = vsel 0, 4294967295, 65535
      %v2652 = vsel %vm447, %v2651, 0
      %v2654 = vand.u32 %v2640, %v2652
      %2656 = vmatprep.subr.bf16.mxu0 0
      %2657 = vmatpush1.bf16.msra.mxu0 0
      %2658 = vmatprep.subr.bf16.mxu0 0
      %2659 = vmatpush1.bf16.msra.mxu0 0
      %2660 = vmatprep.subr.bf16.mxu0 0
      %2661 = vmatpush1.bf16.msra.mxu0 0
      %2662 = vmatprep.subr.bf16.mxu0 0
      %2663 = vmatpush1.bf16.msra.mxu0 0
      %2664 = vmatprep.subr.bf16.mxu0 0
      %2665 = vmatpush1.bf16.msra.mxu0 %v2654
      %2666 = vmatprep.subr.bf16.mxu0 0
      %2667 = vmatpush1.bf16.msra.mxu0 %v2639
      %2668 = vmatprep.subr.bf16.mxu0 0
      %2669 = vmatpush1.bf16.msra.mxu0 %v2638
      %2670 = vmatprep.subr.bf16.mxu0 0
      %2671 = vmatpush1.bf16.msra.mxu0 %v2637
      %2672 = vmatprep.subr.bf16.mxu0 0
      %2673 = vmatpush2.bf16.msra.mxu0 0
      %2674 = vmatprep.subr.bf16.mxu0 0
      %2675 = vmatpush2.bf16.msra.mxu0 0
      %2676 = vmatprep.subr.bf16.mxu0 0
      %2677 = vmatpush2.bf16.msra.mxu0 0
      %2678 = vmatprep.subr.bf16.mxu0 0
      %2679 = vmatpush2.bf16.msra.mxu0 0
      %2680 = vmatprep.subr.bf16.mxu0 0
      %2681 = vmatpush2.bf16.msra.mxu0 0
      %2682 = vmatprep.subr.bf16.mxu0 0
      %2683 = vmatpush2.bf16.msra.mxu0 0
      %2684 = vmatprep.subr.bf16.mxu0 0
      %2685 = vmatpush2.bf16.msra.mxu0 0
      %2686 = vmatprep.subr.bf16.mxu0 0
      %2687 = vmatpush2.bf16.msra.mxu0 0
      %2688 = vmatprep.mubr.bf16.mxu0 0
      %2689 = vmatmul.mubr.bf16.gmra.mxu0 %v2646
      %v2690 = vpop.f32.mrf.mxu0
      %v2691 = vadd.f32 0.0, %v2690
      %v2692 = vpop.f32.mrf.mxu0
      %v2693 = vpop.f32.mrf.mxu0
      %v2694 = vadd.f32 0.0, %v2693
      %v2695 = vpop.f32.mrf.mxu0
      %2696 = vmatprep.mubr.bf16.mxu0 0
      %2697 = vmatmul.mubr.bf16.gmra.mxu0 %v2649
      %v2698 = vpop.f32.mrf.mxu0
      %v2699 = vadd.f32 0.0, %v2698
      %v2700 = vpop.f32.mrf.mxu0
      %v2701 = vpop.f32.mrf.mxu0
      %v2702 = vadd.f32 0.0, %v2701
      %v2703 = vpop.f32.mrf.mxu0
      %2704 = vdwg.mxu0
      %v2705 = vld [vmem:[%s3] sm:$0xf]
      %v2706 = vld [vmem:[%s3 + $0x4] sm:$0xf]
      %v2707 = vld [vmem:[%s3 + $0x8] sm:$0xf]
      %v2708 = vld [vmem:[%s3 + $0xc] sm:$0xf]
      %v2709 = vpack.c.bf16 %v2694, %v2691
      %v2710 = vpack.c.bf16 %v2702, %v2699
      %s2711 = scalar_lea.vmem %s5, 28
      %v2712 = vld [vmem:[%s2711] sm:$0xf]
      %v2713 = vld [vmem:[%s2711 + $0x4] sm:$0xf]
      %v2714 = vld [vmem:[%s2711 + $0x8] sm:$0xf]
      %v2715 = vld [vmem:[%s2711 + $0xc] sm:$0xf]
      %v2716 = vld [vmem:[%s2711 + $0x10] sm:$0xf]
      %v2717 = vld [vmem:[%s2711 + $0x14] sm:$0xf]
      %v2718 = vld [vmem:[%s2711 + $0x18] sm:$0x1]
      %v2726 = vunpack.c.l.b16 %v2712
      %v2727 = vunpack.c.l.b16 %v2713
      %v2728 = vunpack.c.l.b16 %v2714
      %v2729 = vunpack.c.l.b16 %v2715
      %v2730 = vunpack.c.l.b16 %v2716
      %v2731 = vunpack.c.l.b16 %v2717
      %v2732 = vunpack.c.l.b16 %v2718
      %v2733 = vpack.c.b16 %v2727, %v2726
      %v2734 = vpack.c.b16 %v2729, %v2728
      %v2735 = vpack.c.b16 %v2731, %v2730
      %v2736 = vpack.c.b16 %v2732, %v2732
      %v2741 = vand.u32 %v2736, %v2652
      %2743 = vmatprep.subr.bf16.mxu0 0
      %2744 = vmatpush1.bf16.msra.mxu0 0
      %2745 = vmatprep.subr.bf16.mxu0 0
      %2746 = vmatpush1.bf16.msra.mxu0 0
      %2747 = vmatprep.subr.bf16.mxu0 0
      %2748 = vmatpush1.bf16.msra.mxu0 0
      %2749 = vmatprep.subr.bf16.mxu0 0
      %2750 = vmatpush1.bf16.msra.mxu0 0
      %2751 = vmatprep.subr.bf16.mxu0 0
      %2752 = vmatpush1.bf16.msra.mxu0 %v2741
      %2753 = vmatprep.subr.bf16.mxu0 0
      %2754 = vmatpush1.bf16.msra.mxu0 %v2735
      %2755 = vmatprep.subr.bf16.mxu0 0
      %2756 = vmatpush1.bf16.msra.mxu0 %v2734
      %2757 = vmatprep.subr.bf16.mxu0 0
      %2758 = vmatpush1.bf16.msra.mxu0 %v2733
      %2759 = vmatprep.subr.bf16.mxu0 0
      %2760 = vmatpush2.bf16.msra.mxu0 0
      %2761 = vmatprep.subr.bf16.mxu0 0
      %2762 = vmatpush2.bf16.msra.mxu0 0
      %2763 = vmatprep.subr.bf16.mxu0 0
      %2764 = vmatpush2.bf16.msra.mxu0 0
      %2765 = vmatprep.subr.bf16.mxu0 0
      %2766 = vmatpush2.bf16.msra.mxu0 0
      %2767 = vmatprep.subr.bf16.mxu0 0
      %2768 = vmatpush2.bf16.msra.mxu0 0
      %2769 = vmatprep.subr.bf16.mxu0 0
      %2770 = vmatpush2.bf16.msra.mxu0 0
      %2771 = vmatprep.subr.bf16.mxu0 0
      %2772 = vmatpush2.bf16.msra.mxu0 0
      %2773 = vmatprep.subr.bf16.mxu0 0
      %2774 = vmatpush2.bf16.msra.mxu0 0
      %2775 = vmatprep.mubr.bf16.mxu0 0
      %2776 = vmatmul.mubr.bf16.gmra.mxu0 %v2646
      %v2777 = vpop.f32.mrf.mxu0
      %v2778 = vadd.f32 0.0, %v2777
      %v2779 = vpop.f32.mrf.mxu0
      %v2780 = vpop.f32.mrf.mxu0
      %v2781 = vadd.f32 0.0, %v2780
      %v2782 = vpop.f32.mrf.mxu0
      %2783 = vmatprep.mubr.bf16.mxu0 0
      %2784 = vmatmul.mubr.bf16.gmra.mxu0 %v2649
      %v2785 = vpop.f32.mrf.mxu0
      %v2786 = vadd.f32 0.0, %v2785
      %v2787 = vpop.f32.mrf.mxu0
      %v2788 = vpop.f32.mrf.mxu0
      %v2789 = vadd.f32 0.0, %v2788
      %v2790 = vpop.f32.mrf.mxu0
      %2791 = vdwg.mxu0
      %s2792 = scalar_lea.vmem %s3, 16
      %v2793 = vld [vmem:[%s2792] sm:$0xf]
      %v2794 = vld [vmem:[%s2792 + $0x4] sm:$0xf]
      %v2795 = vld [vmem:[%s2792 + $0x8] sm:$0xf]
      %v2796 = vld [vmem:[%s2792 + $0xc] sm:$0xf]
      %v2797 = vpack.c.bf16 %v2781, %v2778
      %v2798 = vpack.c.bf16 %v2789, %v2786
      %v2803 = vunpack.c.l.b16 %v2793
      %v2804 = vunpack.c.l.b16 %v2794
      %v2805 = vunpack.c.l.b16 %v2795
      %v2806 = vunpack.c.l.b16 %v2796
      %v2807 = vpack.c.b16 %v2804, %v2803
      %v2808 = vpack.c.b16 %v2806, %v2805
      %v2810 = vsel %vm857, %v2807, 0
      %v2813 = vsel %vm857, %v2808, 0
      %2815 = vmatprep.subr.bf16.mxu0 0
      %2816 = vmatpush1.bf16.msra.mxu0 0
      %2817 = vmatprep.subr.bf16.mxu0 0
      %2818 = vmatpush1.bf16.msra.mxu0 0
      %2819 = vmatprep.subr.bf16.mxu0 0
      %2820 = vmatpush1.bf16.msra.mxu0 0
      %2821 = vmatprep.subr.bf16.mxu0 0
      %2822 = vmatpush1.bf16.msra.mxu0 0
      %2823 = vmatprep.subr.bf16.mxu0 0
      %2824 = vmatpush1.bf16.msra.mxu0 0
      %2825 = vmatprep.subr.bf16.mxu0 0
      %2826 = vmatpush1.bf16.msra.mxu0 0
      %2827 = vmatprep.subr.bf16.mxu0 0
      %2828 = vmatpush1.bf16.msra.mxu0 %v2798
      %2829 = vmatprep.subr.bf16.mxu0 0
      %2830 = vmatpush1.bf16.msra.mxu0 %v2797
      %2831 = vmatprep.subr.bf16.mxu0 0
      %2832 = vmatpush2.bf16.msra.mxu0 0
      %2833 = vmatprep.subr.bf16.mxu0 0
      %2834 = vmatpush2.bf16.msra.mxu0 0
      %2835 = vmatprep.subr.bf16.mxu0 0
      %2836 = vmatpush2.bf16.msra.mxu0 0
      %2837 = vmatprep.subr.bf16.mxu0 0
      %2838 = vmatpush2.bf16.msra.mxu0 0
      %2839 = vmatprep.subr.bf16.mxu0 0
      %2840 = vmatpush2.bf16.msra.mxu0 0
      %2841 = vmatprep.subr.bf16.mxu0 0
      %2842 = vmatpush2.bf16.msra.mxu0 0
      %2843 = vmatprep.subr.bf16.mxu0 0
      %2844 = vmatpush2.bf16.msra.mxu0 0
      %2845 = vmatprep.subr.bf16.mxu0 0
      %2846 = vmatpush2.bf16.msra.mxu0 0
      %2847 = vmatprep.mubr.bf16.mxu0 0
      %2848 = vmatmul.mubr.bf16.gmra.mxu0 %v2810
      %v2849 = vpop.f32.mrf.mxu0
      %v2850 = vadd.f32 0.0, %v2849
      %v2851 = vpop.f32.mrf.mxu0
      %v2852 = vpop.f32.mrf.mxu0
      %v2853 = vadd.f32 0.0, %v2852
      %v2854 = vpop.f32.mrf.mxu0
      %2855 = vmatprep.mubr.bf16.mxu0 0
      %2856 = vmatmul.mubr.bf16.gmra.mxu0 %v2813
      %v2857 = vpop.f32.mrf.mxu0
      %v2858 = vadd.f32 0.0, %v2857
      %v2859 = vpop.f32.mrf.mxu0
      %v2860 = vpop.f32.mrf.mxu0
      %v2861 = vadd.f32 0.0, %v2860
      %v2862 = vpop.f32.mrf.mxu0
      %2863 = vdwg.mxu0
      %v2868 = vunpack.c.l.b16 %v2705
      %v2869 = vunpack.c.l.b16 %v2706
      %v2870 = vunpack.c.l.b16 %v2707
      %v2871 = vunpack.c.l.b16 %v2708
      %v2872 = vpack.c.b16 %v2869, %v2868
      %v2873 = vpack.c.b16 %v2871, %v2870
      %v2875 = vsel %vm857, %v2872, 0
      %v2878 = vsel %vm857, %v2873, 0
      %2880 = vmatprep.subr.bf16.mxu0 0
      %2881 = vmatpush1.bf16.msra.mxu0 0
      %2882 = vmatprep.subr.bf16.mxu0 0
      %2883 = vmatpush1.bf16.msra.mxu0 0
      %2884 = vmatprep.subr.bf16.mxu0 0
      %2885 = vmatpush1.bf16.msra.mxu0 0
      %2886 = vmatprep.subr.bf16.mxu0 0
      %2887 = vmatpush1.bf16.msra.mxu0 0
      %2888 = vmatprep.subr.bf16.mxu0 0
      %2889 = vmatpush1.bf16.msra.mxu0 0
      %2890 = vmatprep.subr.bf16.mxu0 0
      %2891 = vmatpush1.bf16.msra.mxu0 0
      %2892 = vmatprep.subr.bf16.mxu0 0
      %2893 = vmatpush1.bf16.msra.mxu0 %v2710
      %2894 = vmatprep.subr.bf16.mxu0 0
      %2895 = vmatpush1.bf16.msra.mxu0 %v2709
      %2896 = vmatprep.subr.bf16.mxu0 0
      %2897 = vmatpush2.bf16.msra.mxu0 0
      %2898 = vmatprep.subr.bf16.mxu0 0
      %2899 = vmatpush2.bf16.msra.mxu0 0
      %2900 = vmatprep.subr.bf16.mxu0 0
      %2901 = vmatpush2.bf16.msra.mxu0 0
      %2902 = vmatprep.subr.bf16.mxu0 0
      %2903 = vmatpush2.bf16.msra.mxu0 0
      %2904 = vmatprep.subr.bf16.mxu0 0
      %2905 = vmatpush2.bf16.msra.mxu0 0
      %2906 = vmatprep.subr.bf16.mxu0 0
      %2907 = vmatpush2.bf16.msra.mxu0 0
      %2908 = vmatprep.subr.bf16.mxu0 0
      %2909 = vmatpush2.bf16.msra.mxu0 0
      %2910 = vmatprep.subr.bf16.mxu0 0
      %2911 = vmatpush2.bf16.msra.mxu0 0
      %2912 = vmatprep.mubr.bf16.mxu0 0
      %2913 = vmatmul.mubr.bf16.gmra.mxu0 %v2875
      %v2914 = vpop.f32.mrf.mxu0
      %v2915 = vadd.f32 %v2850, %v2914
      %v2916 = vpop.f32.mrf.mxu0
      %v2917 = vpop.f32.mrf.mxu0
      %v2918 = vadd.f32 %v2853, %v2917
      %v2919 = vpop.f32.mrf.mxu0
      %2920 = vmatprep.mubr.bf16.mxu0 0
      %2921 = vmatmul.mubr.bf16.gmra.mxu0 %v2878
      %v2922 = vpop.f32.mrf.mxu0
      %v2923 = vadd.f32 %v2858, %v2922
      %v2924 = vpop.f32.mrf.mxu0
      %v2925 = vpop.f32.mrf.mxu0
      %v2926 = vadd.f32 %v2861, %v2925
      %v2927 = vpop.f32.mrf.mxu0
      %2928 = vdwg.mxu0
      %s2929 = scalar_lea.vmem %s5, 56
      %v2930 = vld [vmem:[%s2929] sm:$0xf]
      %v2931 = vld [vmem:[%s2929 + $0x4] sm:$0xf]
      %v2932 = vld [vmem:[%s2929 + $0x8] sm:$0xf]
      %v2933 = vld [vmem:[%s2929 + $0xc] sm:$0xf]
      %v2934 = vld [vmem:[%s2929 + $0x10] sm:$0xf]
      %v2935 = vld [vmem:[%s2929 + $0x14] sm:$0xf]
      %v2936 = vld [vmem:[%s2929 + $0x18] sm:$0x1]
      %v2944 = vunpack.c.l.b16 %v2930
      %v2945 = vunpack.c.l.b16 %v2931
      %v2946 = vunpack.c.l.b16 %v2932
      %v2947 = vunpack.c.l.b16 %v2933
      %v2948 = vunpack.c.l.b16 %v2934
      %v2949 = vunpack.c.l.b16 %v2935
      %v2950 = vunpack.c.l.b16 %v2936
      %v2951 = vpack.c.b16 %v2945, %v2944
      %v2952 = vpack.c.b16 %v2947, %v2946
      %v2953 = vpack.c.b16 %v2949, %v2948
      %v2954 = vpack.c.b16 %v2950, %v2950
      %v2959 = vand.u32 %v2954, %v2652
      %2961 = vmatprep.subr.bf16.mxu0 0
      %2962 = vmatpush1.bf16.msra.mxu0 0
      %2963 = vmatprep.subr.bf16.mxu0 0
      %2964 = vmatpush1.bf16.msra.mxu0 0
      %2965 = vmatprep.subr.bf16.mxu0 0
      %2966 = vmatpush1.bf16.msra.mxu0 0
      %2967 = vmatprep.subr.bf16.mxu0 0
      %2968 = vmatpush1.bf16.msra.mxu0 0
      %2969 = vmatprep.subr.bf16.mxu0 0
      %2970 = vmatpush1.bf16.msra.mxu0 %v2959
      %2971 = vmatprep.subr.bf16.mxu0 0
      %2972 = vmatpush1.bf16.msra.mxu0 %v2953
      %2973 = vmatprep.subr.bf16.mxu0 0
      %2974 = vmatpush1.bf16.msra.mxu0 %v2952
      %2975 = vmatprep.subr.bf16.mxu0 0
      %2976 = vmatpush1.bf16.msra.mxu0 %v2951
      %2977 = vmatprep.subr.bf16.mxu0 0
      %2978 = vmatpush2.bf16.msra.mxu0 0
      %2979 = vmatprep.subr.bf16.mxu0 0
      %2980 = vmatpush2.bf16.msra.mxu0 0
      %2981 = vmatprep.subr.bf16.mxu0 0
      %2982 = vmatpush2.bf16.msra.mxu0 0
      %2983 = vmatprep.subr.bf16.mxu0 0
      %2984 = vmatpush2.bf16.msra.mxu0 0
      %2985 = vmatprep.subr.bf16.mxu0 0
      %2986 = vmatpush2.bf16.msra.mxu0 0
      %2987 = vmatprep.subr.bf16.mxu0 0
      %2988 = vmatpush2.bf16.msra.mxu0 0
      %2989 = vmatprep.subr.bf16.mxu0 0
      %2990 = vmatpush2.bf16.msra.mxu0 0
      %2991 = vmatprep.subr.bf16.mxu0 0
      %2992 = vmatpush2.bf16.msra.mxu0 0
      %2993 = vmatprep.mubr.bf16.mxu0 0
      %2994 = vmatmul.mubr.bf16.gmra.mxu0 %v2646
      %v2995 = vpop.f32.mrf.mxu0
      %v2996 = vadd.f32 0.0, %v2995
      %v2997 = vpop.f32.mrf.mxu0
      %v2998 = vpop.f32.mrf.mxu0
      %v2999 = vadd.f32 0.0, %v2998
      %v3000 = vpop.f32.mrf.mxu0
      %3001 = vmatprep.mubr.bf16.mxu0 0
      %3002 = vmatmul.mubr.bf16.gmra.mxu0 %v2649
      %v3003 = vpop.f32.mrf.mxu0
      %v3004 = vadd.f32 0.0, %v3003
      %v3005 = vpop.f32.mrf.mxu0
      %v3006 = vpop.f32.mrf.mxu0
      %v3007 = vadd.f32 0.0, %v3006
      %v3008 = vpop.f32.mrf.mxu0
      %3009 = vdwg.mxu0
      %s3010 = scalar_lea.vmem %s3, 32
      %v3011 = vld [vmem:[%s3010] sm:$0xf]
      %v3012 = vld [vmem:[%s3010 + $0x4] sm:$0xf]
      %v3013 = vld [vmem:[%s3010 + $0x8] sm:$0xf]
      %v3014 = vld [vmem:[%s3010 + $0xc] sm:$0xf]
      %v3015 = vpack.c.bf16 %v2999, %v2996
      %v3016 = vpack.c.bf16 %v3007, %v3004
      %v3021 = vunpack.c.l.b16 %v3011
      %v3022 = vunpack.c.l.b16 %v3012
      %v3023 = vunpack.c.l.b16 %v3013
      %v3024 = vunpack.c.l.b16 %v3014
      %v3025 = vpack.c.b16 %v3022, %v3021
      %v3026 = vpack.c.b16 %v3024, %v3023
      %v3028 = vsel %vm857, %v3025, 0
      %v3031 = vsel %vm857, %v3026, 0
      %3033 = vmatprep.subr.bf16.mxu0 0
      %3034 = vmatpush1.bf16.msra.mxu0 0
      %3035 = vmatprep.subr.bf16.mxu0 0
      %3036 = vmatpush1.bf16.msra.mxu0 0
      %3037 = vmatprep.subr.bf16.mxu0 0
      %3038 = vmatpush1.bf16.msra.mxu0 0
      %3039 = vmatprep.subr.bf16.mxu0 0
      %3040 = vmatpush1.bf16.msra.mxu0 0
      %3041 = vmatprep.subr.bf16.mxu0 0
      %3042 = vmatpush1.bf16.msra.mxu0 0
      %3043 = vmatprep.subr.bf16.mxu0 0
      %3044 = vmatpush1.bf16.msra.mxu0 0
      %3045 = vmatprep.subr.bf16.mxu0 0
      %3046 = vmatpush1.bf16.msra.mxu0 %v3016
      %3047 = vmatprep.subr.bf16.mxu0 0
      %3048 = vmatpush1.bf16.msra.mxu0 %v3015
      %3049 = vmatprep.subr.bf16.mxu0 0
      %3050 = vmatpush2.bf16.msra.mxu0 0
      %3051 = vmatprep.subr.bf16.mxu0 0
      %3052 = vmatpush2.bf16.msra.mxu0 0
      %3053 = vmatprep.subr.bf16.mxu0 0
      %3054 = vmatpush2.bf16.msra.mxu0 0
      %3055 = vmatprep.subr.bf16.mxu0 0
      %3056 = vmatpush2.bf16.msra.mxu0 0
      %3057 = vmatprep.subr.bf16.mxu0 0
      %3058 = vmatpush2.bf16.msra.mxu0 0
      %3059 = vmatprep.subr.bf16.mxu0 0
      %3060 = vmatpush2.bf16.msra.mxu0 0
      %3061 = vmatprep.subr.bf16.mxu0 0
      %3062 = vmatpush2.bf16.msra.mxu0 0
      %3063 = vmatprep.subr.bf16.mxu0 0
      %3064 = vmatpush2.bf16.msra.mxu0 0
      %3065 = vmatprep.mubr.bf16.mxu0 0
      %3066 = vmatmul.mubr.bf16.gmra.mxu0 %v3028
      %v3067 = vpop.f32.mrf.mxu0
      %v3068 = vadd.f32 0.0, %v3067
      %v3069 = vpop.f32.mrf.mxu0
      %v3070 = vpop.f32.mrf.mxu0
      %v3071 = vadd.f32 0.0, %v3070
      %v3072 = vpop.f32.mrf.mxu0
      %3073 = vmatprep.mubr.bf16.mxu0 0
      %3074 = vmatmul.mubr.bf16.gmra.mxu0 %v3031
      %v3075 = vpop.f32.mrf.mxu0
      %v3076 = vadd.f32 0.0, %v3075
      %v3077 = vpop.f32.mrf.mxu0
      %v3078 = vpop.f32.mrf.mxu0
      %v3079 = vadd.f32 0.0, %v3078
      %v3080 = vpop.f32.mrf.mxu0
      %3081 = vdwg.mxu0
      %v3082 = vadd.f32 %v2915, %v3068
      %v3083 = vadd.f32 %v2918, %v3071
      %v3084 = vadd.f32 %v2923, %v3076
      %v3085 = vadd.f32 %v2926, %v3079
      %s3086 = scalar_lea.vmem %s5, 84
      %v3087 = vld [vmem:[%s3086] sm:$0xf]
      %v3088 = vld [vmem:[%s3086 + $0x4] sm:$0xf]
      %v3089 = vld [vmem:[%s3086 + $0x8] sm:$0xf]
      %v3090 = vld [vmem:[%s3086 + $0xc] sm:$0xf]
      %v3091 = vld [vmem:[%s3086 + $0x10] sm:$0xf]
      %v3092 = vld [vmem:[%s3086 + $0x14] sm:$0xf]
      %v3093 = vld [vmem:[%s3086 + $0x18] sm:$0x1]
      %v3101 = vunpack.c.l.b16 %v3087
      %v3102 = vunpack.c.l.b16 %v3088
      %v3103 = vunpack.c.l.b16 %v3089
      %v3104 = vunpack.c.l.b16 %v3090
      %v3105 = vunpack.c.l.b16 %v3091
      %v3106 = vunpack.c.l.b16 %v3092
      %v3107 = vunpack.c.l.b16 %v3093
      %v3108 = vpack.c.b16 %v3102, %v3101
      %v3109 = vpack.c.b16 %v3104, %v3103
      %v3110 = vpack.c.b16 %v3106, %v3105
      %v3111 = vpack.c.b16 %v3107, %v3107
      %v3116 = vand.u32 %v3111, %v2652
      %3118 = vmatprep.subr.bf16.mxu0 0
      %3119 = vmatpush1.bf16.msra.mxu0 0
      %3120 = vmatprep.subr.bf16.mxu0 0
      %3121 = vmatpush1.bf16.msra.mxu0 0
      %3122 = vmatprep.subr.bf16.mxu0 0
      %3123 = vmatpush1.bf16.msra.mxu0 0
      %3124 = vmatprep.subr.bf16.mxu0 0
      %3125 = vmatpush1.bf16.msra.mxu0 0
      %3126 = vmatprep.subr.bf16.mxu0 0
      %3127 = vmatpush1.bf16.msra.mxu0 %v3116
      %3128 = vmatprep.subr.bf16.mxu0 0
      %3129 = vmatpush1.bf16.msra.mxu0 %v3110
      %3130 = vmatprep.subr.bf16.mxu0 0
      %3131 = vmatpush1.bf16.msra.mxu0 %v3109
      %3132 = vmatprep.subr.bf16.mxu0 0
      %3133 = vmatpush1.bf16.msra.mxu0 %v3108
      %3134 = vmatprep.subr.bf16.mxu0 0
      %3135 = vmatpush2.bf16.msra.mxu0 0
      %3136 = vmatprep.subr.bf16.mxu0 0
      %3137 = vmatpush2.bf16.msra.mxu0 0
      %3138 = vmatprep.subr.bf16.mxu0 0
      %3139 = vmatpush2.bf16.msra.mxu0 0
      %3140 = vmatprep.subr.bf16.mxu0 0
      %3141 = vmatpush2.bf16.msra.mxu0 0
      %3142 = vmatprep.subr.bf16.mxu0 0
      %3143 = vmatpush2.bf16.msra.mxu0 0
      %3144 = vmatprep.subr.bf16.mxu0 0
      %3145 = vmatpush2.bf16.msra.mxu0 0
      %3146 = vmatprep.subr.bf16.mxu0 0
      %3147 = vmatpush2.bf16.msra.mxu0 0
      %3148 = vmatprep.subr.bf16.mxu0 0
      %3149 = vmatpush2.bf16.msra.mxu0 0
      %3150 = vmatprep.mubr.bf16.mxu0 0
      %3151 = vmatmul.mubr.bf16.gmra.mxu0 %v2646
      %v3152 = vpop.f32.mrf.mxu0
      %v3153 = vadd.f32 0.0, %v3152
      %v3154 = vpop.f32.mrf.mxu0
      %v3155 = vpop.f32.mrf.mxu0
      %v3156 = vadd.f32 0.0, %v3155
      %v3157 = vpop.f32.mrf.mxu0
      %3158 = vmatprep.mubr.bf16.mxu0 0
      %3159 = vmatmul.mubr.bf16.gmra.mxu0 %v2649
      %v3160 = vpop.f32.mrf.mxu0
      %v3161 = vadd.f32 0.0, %v3160
      %v3162 = vpop.f32.mrf.mxu0
      %v3163 = vpop.f32.mrf.mxu0
      %v3164 = vadd.f32 0.0, %v3163
      %v3165 = vpop.f32.mrf.mxu0
      %3166 = vdwg.mxu0
      %s3167 = scalar_lea.vmem %s3, 48
      %v3168 = vld [vmem:[%s3167] sm:$0xf]
      %v3169 = vld [vmem:[%s3167 + $0x4] sm:$0xf]
      %v3170 = vld [vmem:[%s3167 + $0x8] sm:$0xf]
      %v3171 = vld [vmem:[%s3167 + $0xc] sm:$0xf]
      %v3172 = vpack.c.bf16 %v3156, %v3153
      %v3173 = vpack.c.bf16 %v3164, %v3161
      %v3178 = vunpack.c.l.b16 %v3168
      %v3179 = vunpack.c.l.b16 %v3169
      %v3180 = vunpack.c.l.b16 %v3170
      %v3181 = vunpack.c.l.b16 %v3171
      %v3182 = vpack.c.b16 %v3179, %v3178
      %v3183 = vpack.c.b16 %v3181, %v3180
      %v3185 = vsel %vm857, %v3182, 0
      %v3188 = vsel %vm857, %v3183, 0
      %3190 = vmatprep.subr.bf16.mxu0 0
      %3191 = vmatpush1.bf16.msra.mxu0 0
      %3192 = vmatprep.subr.bf16.mxu0 0
      %3193 = vmatpush1.bf16.msra.mxu0 0
      %3194 = vmatprep.subr.bf16.mxu0 0
      %3195 = vmatpush1.bf16.msra.mxu0 0
      %3196 = vmatprep.subr.bf16.mxu0 0
      %3197 = vmatpush1.bf16.msra.mxu0 0
      %3198 = vmatprep.subr.bf16.mxu0 0
      %3199 = vmatpush1.bf16.msra.mxu0 0
      %3200 = vmatprep.subr.bf16.mxu0 0
      %3201 = vmatpush1.bf16.msra.mxu0 0
      %3202 = vmatprep.subr.bf16.mxu0 0
      %3203 = vmatpush1.bf16.msra.mxu0 %v3173
      %3204 = vmatprep.subr.bf16.mxu0 0
      %3205 = vmatpush1.bf16.msra.mxu0 %v3172
      %3206 = vmatprep.subr.bf16.mxu0 0
      %3207 = vmatpush2.bf16.msra.mxu0 0
      %3208 = vmatprep.subr.bf16.mxu0 0
      %3209 = vmatpush2.bf16.msra.mxu0 0
      %3210 = vmatprep.subr.bf16.mxu0 0
      %3211 = vmatpush2.bf16.msra.mxu0 0
      %3212 = vmatprep.subr.bf16.mxu0 0
      %3213 = vmatpush2.bf16.msra.mxu0 0
      %3214 = vmatprep.subr.bf16.mxu0 0
      %3215 = vmatpush2.bf16.msra.mxu0 0
      %3216 = vmatprep.subr.bf16.mxu0 0
      %3217 = vmatpush2.bf16.msra.mxu0 0
      %3218 = vmatprep.subr.bf16.mxu0 0
      %3219 = vmatpush2.bf16.msra.mxu0 0
      %3220 = vmatprep.subr.bf16.mxu0 0
      %3221 = vmatpush2.bf16.msra.mxu0 0
      %3222 = vmatprep.mubr.bf16.mxu0 0
      %3223 = vmatmul.mubr.bf16.gmra.mxu0 %v3185
      %v3224 = vpop.f32.mrf.mxu0
      %v3225 = vadd.f32 0.0, %v3224
      %v3226 = vpop.f32.mrf.mxu0
      %v3227 = vpop.f32.mrf.mxu0
      %v3228 = vadd.f32 0.0, %v3227
      %v3229 = vpop.f32.mrf.mxu0
      %3230 = vmatprep.mubr.bf16.mxu0 0
      %3231 = vmatmul.mubr.bf16.gmra.mxu0 %v3188
      %v3232 = vpop.f32.mrf.mxu0
      %v3233 = vadd.f32 0.0, %v3232
      %v3234 = vpop.f32.mrf.mxu0
      %v3235 = vpop.f32.mrf.mxu0
      %v3236 = vadd.f32 0.0, %v3235
      %v3237 = vpop.f32.mrf.mxu0
      %3238 = vdwg.mxu0
      %v3239 = vadd.f32 %v3082, %v3225
      %v3240 = vadd.f32 %v3083, %v3228
      %v3241 = vadd.f32 %v3084, %v3233
      %v3242 = vadd.f32 %v3085, %v3236
      %s3243 = scalar_lea.vmem %s5, 112
      %v3244 = vld [vmem:[%s3243] sm:$0xf]
      %v3245 = vld [vmem:[%s3243 + $0x4] sm:$0xf]
      %v3246 = vld [vmem:[%s3243 + $0x8] sm:$0xf]
      %v3247 = vld [vmem:[%s3243 + $0xc] sm:$0xf]
      %v3248 = vld [vmem:[%s3243 + $0x10] sm:$0xf]
      %v3249 = vld [vmem:[%s3243 + $0x14] sm:$0xf]
      %v3250 = vld [vmem:[%s3243 + $0x18] sm:$0x1]
      %v3258 = vunpack.c.l.b16 %v3244
      %v3259 = vunpack.c.l.b16 %v3245
      %v3260 = vunpack.c.l.b16 %v3246
      %v3261 = vunpack.c.l.b16 %v3247
      %v3262 = vunpack.c.l.b16 %v3248
      %v3263 = vunpack.c.l.b16 %v3249
      %v3264 = vunpack.c.l.b16 %v3250
      %v3265 = vpack.c.b16 %v3259, %v3258
      %v3266 = vpack.c.b16 %v3261, %v3260
      %v3267 = vpack.c.b16 %v3263, %v3262
      %v3268 = vpack.c.b16 %v3264, %v3264
      %v3273 = vand.u32 %v3268, %v2652
      %3275 = vmatprep.subr.bf16.mxu0 0
      %3276 = vmatpush1.bf16.msra.mxu0 0
      %3277 = vmatprep.subr.bf16.mxu0 0
      %3278 = vmatpush1.bf16.msra.mxu0 0
      %3279 = vmatprep.subr.bf16.mxu0 0
      %3280 = vmatpush1.bf16.msra.mxu0 0
      %3281 = vmatprep.subr.bf16.mxu0 0
      %3282 = vmatpush1.bf16.msra.mxu0 0
      %3283 = vmatprep.subr.bf16.mxu0 0
      %3284 = vmatpush1.bf16.msra.mxu0 %v3273
      %3285 = vmatprep.subr.bf16.mxu0 0
      %3286 = vmatpush1.bf16.msra.mxu0 %v3267
      %3287 = vmatprep.subr.bf16.mxu0 0
      %3288 = vmatpush1.bf16.msra.mxu0 %v3266
      %3289 = vmatprep.subr.bf16.mxu0 0
      %3290 = vmatpush1.bf16.msra.mxu0 %v3265
      %3291 = vmatprep.subr.bf16.mxu0 0
      %3292 = vmatpush2.bf16.msra.mxu0 0
      %3293 = vmatprep.subr.bf16.mxu0 0
      %3294 = vmatpush2.bf16.msra.mxu0 0
      %3295 = vmatprep.subr.bf16.mxu0 0
      %3296 = vmatpush2.bf16.msra.mxu0 0
      %3297 = vmatprep.subr.bf16.mxu0 0
      %3298 = vmatpush2.bf16.msra.mxu0 0
      %3299 = vmatprep.subr.bf16.mxu0 0
      %3300 = vmatpush2.bf16.msra.mxu0 0
      %3301 = vmatprep.subr.bf16.mxu0 0
      %3302 = vmatpush2.bf16.msra.mxu0 0
      %3303 = vmatprep.subr.bf16.mxu0 0
      %3304 = vmatpush2.bf16.msra.mxu0 0
      %3305 = vmatprep.subr.bf16.mxu0 0
      %3306 = vmatpush2.bf16.msra.mxu0 0
      %3307 = vmatprep.mubr.bf16.mxu0 0
      %3308 = vmatmul.mubr.bf16.gmra.mxu0 %v2646
      %v3309 = vpop.f32.mrf.mxu0
      %v3310 = vadd.f32 0.0, %v3309
      %v3311 = vpop.f32.mrf.mxu0
      %v3312 = vpop.f32.mrf.mxu0
      %v3313 = vadd.f32 0.0, %v3312
      %v3314 = vpop.f32.mrf.mxu0
      %3315 = vmatprep.mubr.bf16.mxu0 0
      %3316 = vmatmul.mubr.bf16.gmra.mxu0 %v2649
      %v3317 = vpop.f32.mrf.mxu0
      %v3318 = vadd.f32 0.0, %v3317
      %v3319 = vpop.f32.mrf.mxu0
      %v3320 = vpop.f32.mrf.mxu0
      %v3321 = vadd.f32 0.0, %v3320
      %v3322 = vpop.f32.mrf.mxu0
      %3323 = vdwg.mxu0
      %s3324 = scalar_lea.vmem %s3, 64
      %v3325 = vld [vmem:[%s3324] sm:$0xf]
      %v3326 = vld [vmem:[%s3324 + $0x4] sm:$0xf]
      %v3327 = vld [vmem:[%s3324 + $0x8] sm:$0xf]
      %v3328 = vld [vmem:[%s3324 + $0xc] sm:$0xf]
      %v3329 = vpack.c.bf16 %v3313, %v3310
      %v3330 = vpack.c.bf16 %v3321, %v3318
      %v3335 = vunpack.c.l.b16 %v3325
      %v3336 = vunpack.c.l.b16 %v3326
      %v3337 = vunpack.c.l.b16 %v3327
      %v3338 = vunpack.c.l.b16 %v3328
      %v3339 = vpack.c.b16 %v3336, %v3335
      %v3340 = vpack.c.b16 %v3338, %v3337
      %v3342 = vsel %vm857, %v3339, 0
      %v3345 = vsel %vm857, %v3340, 0
      %3347 = vmatprep.subr.bf16.mxu0 0
      %3348 = vmatpush1.bf16.msra.mxu0 0
      %3349 = vmatprep.subr.bf16.mxu0 0
      %3350 = vmatpush1.bf16.msra.mxu0 0
      %3351 = vmatprep.subr.bf16.mxu0 0
      %3352 = vmatpush1.bf16.msra.mxu0 0
      %3353 = vmatprep.subr.bf16.mxu0 0
      %3354 = vmatpush1.bf16.msra.mxu0 0
      %3355 = vmatprep.subr.bf16.mxu0 0
      %3356 = vmatpush1.bf16.msra.mxu0 0
      %3357 = vmatprep.subr.bf16.mxu0 0
      %3358 = vmatpush1.bf16.msra.mxu0 0
      %3359 = vmatprep.subr.bf16.mxu0 0
      %3360 = vmatpush1.bf16.msra.mxu0 %v3330
      %3361 = vmatprep.subr.bf16.mxu0 0
      %3362 = vmatpush1.bf16.msra.mxu0 %v3329
      %3363 = vmatprep.subr.bf16.mxu0 0
      %3364 = vmatpush2.bf16.msra.mxu0 0
      %3365 = vmatprep.subr.bf16.mxu0 0
      %3366 = vmatpush2.bf16.msra.mxu0 0
      %3367 = vmatprep.subr.bf16.mxu0 0
      %3368 = vmatpush2.bf16.msra.mxu0 0
      %3369 = vmatprep.subr.bf16.mxu0 0
      %3370 = vmatpush2.bf16.msra.mxu0 0
      %3371 = vmatprep.subr.bf16.mxu0 0
      %3372 = vmatpush2.bf16.msra.mxu0 0
      %3373 = vmatprep.subr.bf16.mxu0 0
      %3374 = vmatpush2.bf16.msra.mxu0 0
      %3375 = vmatprep.subr.bf16.mxu0 0
      %3376 = vmatpush2.bf16.msra.mxu0 0
      %3377 = vmatprep.subr.bf16.mxu0 0
      %3378 = vmatpush2.bf16.msra.mxu0 0
      %3379 = vmatprep.mubr.bf16.mxu0 0
      %3380 = vmatmul.mubr.bf16.gmra.mxu0 %v3342
      %v3381 = vpop.f32.mrf.mxu0
      %v3382 = vadd.f32 0.0, %v3381
      %v3383 = vpop.f32.mrf.mxu0
      %v3384 = vpop.f32.mrf.mxu0
      %v3385 = vadd.f32 0.0, %v3384
      %v3386 = vpop.f32.mrf.mxu0
      %3387 = vmatprep.mubr.bf16.mxu0 0
      %3388 = vmatmul.mubr.bf16.gmra.mxu0 %v3345
      %v3389 = vpop.f32.mrf.mxu0
      %v3390 = vadd.f32 0.0, %v3389
      %v3391 = vpop.f32.mrf.mxu0
      %v3392 = vpop.f32.mrf.mxu0
      %v3393 = vadd.f32 0.0, %v3392
      %v3394 = vpop.f32.mrf.mxu0
      %3395 = vdwg.mxu0
      %v3396 = vadd.f32 %v3239, %v3382
      %v3397 = vadd.f32 %v3240, %v3385
      %v3398 = vadd.f32 %v3241, %v3390
      %v3399 = vadd.f32 %v3242, %v3393
      %s3400 = scalar_lea.vmem %s5, 140
      %v3401 = vld [vmem:[%s3400] sm:$0xf]
      %v3402 = vld [vmem:[%s3400 + $0x4] sm:$0xf]
      %v3403 = vld [vmem:[%s3400 + $0x8] sm:$0xf]
      %v3404 = vld [vmem:[%s3400 + $0xc] sm:$0xf]
      %v3405 = vld [vmem:[%s3400 + $0x10] sm:$0xf]
      %v3406 = vld [vmem:[%s3400 + $0x14] sm:$0xf]
      %v3407 = vld [vmem:[%s3400 + $0x18] sm:$0x1]
      %v3415 = vunpack.c.l.b16 %v3401
      %v3416 = vunpack.c.l.b16 %v3402
      %v3417 = vunpack.c.l.b16 %v3403
      %v3418 = vunpack.c.l.b16 %v3404
      %v3419 = vunpack.c.l.b16 %v3405
      %v3420 = vunpack.c.l.b16 %v3406
      %v3421 = vunpack.c.l.b16 %v3407
      %v3422 = vpack.c.b16 %v3416, %v3415
      %v3423 = vpack.c.b16 %v3418, %v3417
      %v3424 = vpack.c.b16 %v3420, %v3419
      %v3425 = vpack.c.b16 %v3421, %v3421
      %v3430 = vand.u32 %v3425, %v2652
      %3432 = vmatprep.subr.bf16.mxu0 0
      %3433 = vmatpush1.bf16.msra.mxu0 0
      %3434 = vmatprep.subr.bf16.mxu0 0
      %3435 = vmatpush1.bf16.msra.mxu0 0
      %3436 = vmatprep.subr.bf16.mxu0 0
      %3437 = vmatpush1.bf16.msra.mxu0 0
      %3438 = vmatprep.subr.bf16.mxu0 0
      %3439 = vmatpush1.bf16.msra.mxu0 0
      %3440 = vmatprep.subr.bf16.mxu0 0
      %3441 = vmatpush1.bf16.msra.mxu0 %v3430
      %3442 = vmatprep.subr.bf16.mxu0 0
      %3443 = vmatpush1.bf16.msra.mxu0 %v3424
      %3444 = vmatprep.subr.bf16.mxu0 0
      %3445 = vmatpush1.bf16.msra.mxu0 %v3423
      %3446 = vmatprep.subr.bf16.mxu0 0
      %3447 = vmatpush1.bf16.msra.mxu0 %v3422
      %3448 = vmatprep.subr.bf16.mxu0 0
      %3449 = vmatpush2.bf16.msra.mxu0 0
      %3450 = vmatprep.subr.bf16.mxu0 0
      %3451 = vmatpush2.bf16.msra.mxu0 0
      %3452 = vmatprep.subr.bf16.mxu0 0
      %3453 = vmatpush2.bf16.msra.mxu0 0
      %3454 = vmatprep.subr.bf16.mxu0 0
      %3455 = vmatpush2.bf16.msra.mxu0 0
      %3456 = vmatprep.subr.bf16.mxu0 0
      %3457 = vmatpush2.bf16.msra.mxu0 0
      %3458 = vmatprep.subr.bf16.mxu0 0
      %3459 = vmatpush2.bf16.msra.mxu0 0
      %3460 = vmatprep.subr.bf16.mxu0 0
      %3461 = vmatpush2.bf16.msra.mxu0 0
      %3462 = vmatprep.subr.bf16.mxu0 0
      %3463 = vmatpush2.bf16.msra.mxu0 0
      %3464 = vmatprep.mubr.bf16.mxu0 0
      %3465 = vmatmul.mubr.bf16.gmra.mxu0 %v2646
      %v3466 = vpop.f32.mrf.mxu0
      %v3467 = vadd.f32 0.0, %v3466
      %v3468 = vpop.f32.mrf.mxu0
      %v3469 = vpop.f32.mrf.mxu0
      %v3470 = vadd.f32 0.0, %v3469
      %v3471 = vpop.f32.mrf.mxu0
      %3472 = vmatprep.mubr.bf16.mxu0 0
      %3473 = vmatmul.mubr.bf16.gmra.mxu0 %v2649
      %v3474 = vpop.f32.mrf.mxu0
      %v3475 = vadd.f32 0.0, %v3474
      %v3476 = vpop.f32.mrf.mxu0
      %v3477 = vpop.f32.mrf.mxu0
      %v3478 = vadd.f32 0.0, %v3477
      %v3479 = vpop.f32.mrf.mxu0
      %3480 = vdwg.mxu0
      %s3481 = scalar_lea.vmem %s3, 80
      %v3482 = vld [vmem:[%s3481] sm:$0xf]
      %v3483 = vld [vmem:[%s3481 + $0x4] sm:$0xf]
      %v3484 = vld [vmem:[%s3481 + $0x8] sm:$0xf]
      %v3485 = vld [vmem:[%s3481 + $0xc] sm:$0xf]
      %v3486 = vpack.c.bf16 %v3470, %v3467
      %v3487 = vpack.c.bf16 %v3478, %v3475
      %v3492 = vunpack.c.l.b16 %v3482
      %v3493 = vunpack.c.l.b16 %v3483
      %v3494 = vunpack.c.l.b16 %v3484
      %v3495 = vunpack.c.l.b16 %v3485
      %v3496 = vpack.c.b16 %v3493, %v3492
      %v3497 = vpack.c.b16 %v3495, %v3494
      %v3499 = vsel %vm857, %v3496, 0
      %v3502 = vsel %vm857, %v3497, 0
      %3504 = vmatprep.subr.bf16.mxu0 0
      %3505 = vmatpush1.bf16.msra.mxu0 0
      %3506 = vmatprep.subr.bf16.mxu0 0
      %3507 = vmatpush1.bf16.msra.mxu0 0
      %3508 = vmatprep.subr.bf16.mxu0 0
      %3509 = vmatpush1.bf16.msra.mxu0 0
      %3510 = vmatprep.subr.bf16.mxu0 0
      %3511 = vmatpush1.bf16.msra.mxu0 0
      %3512 = vmatprep.subr.bf16.mxu0 0
      %3513 = vmatpush1.bf16.msra.mxu0 0
      %3514 = vmatprep.subr.bf16.mxu0 0
      %3515 = vmatpush1.bf16.msra.mxu0 0
      %3516 = vmatprep.subr.bf16.mxu0 0
      %3517 = vmatpush1.bf16.msra.mxu0 %v3487
      %3518 = vmatprep.subr.bf16.mxu0 0
      %3519 = vmatpush1.bf16.msra.mxu0 %v3486
      %3520 = vmatprep.subr.bf16.mxu0 0
      %3521 = vmatpush2.bf16.msra.mxu0 0
      %3522 = vmatprep.subr.bf16.mxu0 0
      %3523 = vmatpush2.bf16.msra.mxu0 0
      %3524 = vmatprep.subr.bf16.mxu0 0
      %3525 = vmatpush2.bf16.msra.mxu0 0
      %3526 = vmatprep.subr.bf16.mxu0 0
      %3527 = vmatpush2.bf16.msra.mxu0 0
      %3528 = vmatprep.subr.bf16.mxu0 0
      %3529 = vmatpush2.bf16.msra.mxu0 0
      %3530 = vmatprep.subr.bf16.mxu0 0
      %3531 = vmatpush2.bf16.msra.mxu0 0
      %3532 = vmatprep.subr.bf16.mxu0 0
      %3533 = vmatpush2.bf16.msra.mxu0 0
      %3534 = vmatprep.subr.bf16.mxu0 0
      %3535 = vmatpush2.bf16.msra.mxu0 0
      %3536 = vmatprep.mubr.bf16.mxu0 0
      %3537 = vmatmul.mubr.bf16.gmra.mxu0 %v3499
      %v3538 = vpop.f32.mrf.mxu0
      %v3539 = vadd.f32 0.0, %v3538
      %v3540 = vpop.f32.mrf.mxu0
      %v3541 = vpop.f32.mrf.mxu0
      %v3542 = vadd.f32 0.0, %v3541
      %v3543 = vpop.f32.mrf.mxu0
      %3544 = vmatprep.mubr.bf16.mxu0 0
      %3545 = vmatmul.mubr.bf16.gmra.mxu0 %v3502
      %v3546 = vpop.f32.mrf.mxu0
      %v3547 = vadd.f32 0.0, %v3546
      %v3548 = vpop.f32.mrf.mxu0
      %v3549 = vpop.f32.mrf.mxu0
      %v3550 = vadd.f32 0.0, %v3549
      %v3551 = vpop.f32.mrf.mxu0
      %3552 = vdwg.mxu0
      %v3553 = vadd.f32 %v3396, %v3539
      %v3554 = vadd.f32 %v3397, %v3542
      %v3555 = vadd.f32 %v3398, %v3547
      %v3556 = vadd.f32 %v3399, %v3550
      %s3557 = scalar_lea.vmem %s5, 168
      %v3558 = vld [vmem:[%s3557] sm:$0xf]
      %v3559 = vld [vmem:[%s3557 + $0x4] sm:$0xf]
      %v3560 = vld [vmem:[%s3557 + $0x8] sm:$0xf]
      %v3561 = vld [vmem:[%s3557 + $0xc] sm:$0xf]
      %v3562 = vld [vmem:[%s3557 + $0x10] sm:$0xf]
      %v3563 = vld [vmem:[%s3557 + $0x14] sm:$0xf]
      %v3564 = vld [vmem:[%s3557 + $0x18] sm:$0x1]
      %v3572 = vunpack.c.l.b16 %v3558
      %v3573 = vunpack.c.l.b16 %v3559
      %v3574 = vunpack.c.l.b16 %v3560
      %v3575 = vunpack.c.l.b16 %v3561
      %v3576 = vunpack.c.l.b16 %v3562
      %v3577 = vunpack.c.l.b16 %v3563
      %v3578 = vunpack.c.l.b16 %v3564
      %v3579 = vpack.c.b16 %v3573, %v3572
      %v3580 = vpack.c.b16 %v3575, %v3574
      %v3581 = vpack.c.b16 %v3577, %v3576
      %v3582 = vpack.c.b16 %v3578, %v3578
      %v3587 = vand.u32 %v3582, %v2652
      %3589 = vmatprep.subr.bf16.mxu0 0
      %3590 = vmatpush1.bf16.msra.mxu0 0
      %3591 = vmatprep.subr.bf16.mxu0 0
      %3592 = vmatpush1.bf16.msra.mxu0 0
      %3593 = vmatprep.subr.bf16.mxu0 0
      %3594 = vmatpush1.bf16.msra.mxu0 0
      %3595 = vmatprep.subr.bf16.mxu0 0
      %3596 = vmatpush1.bf16.msra.mxu0 0
      %3597 = vmatprep.subr.bf16.mxu0 0
      %3598 = vmatpush1.bf16.msra.mxu0 %v3587
      %3599 = vmatprep.subr.bf16.mxu0 0
      %3600 = vmatpush1.bf16.msra.mxu0 %v3581
      %3601 = vmatprep.subr.bf16.mxu0 0
      %3602 = vmatpush1.bf16.msra.mxu0 %v3580
      %3603 = vmatprep.subr.bf16.mxu0 0
      %3604 = vmatpush1.bf16.msra.mxu0 %v3579
      %3605 = vmatprep.subr.bf16.mxu0 0
      %3606 = vmatpush2.bf16.msra.mxu0 0
      %3607 = vmatprep.subr.bf16.mxu0 0
      %3608 = vmatpush2.bf16.msra.mxu0 0
      %3609 = vmatprep.subr.bf16.mxu0 0
      %3610 = vmatpush2.bf16.msra.mxu0 0
      %3611 = vmatprep.subr.bf16.mxu0 0
      %3612 = vmatpush2.bf16.msra.mxu0 0
      %3613 = vmatprep.subr.bf16.mxu0 0
      %3614 = vmatpush2.bf16.msra.mxu0 0
      %3615 = vmatprep.subr.bf16.mxu0 0
      %3616 = vmatpush2.bf16.msra.mxu0 0
      %3617 = vmatprep.subr.bf16.mxu0 0
      %3618 = vmatpush2.bf16.msra.mxu0 0
      %3619 = vmatprep.subr.bf16.mxu0 0
      %3620 = vmatpush2.bf16.msra.mxu0 0
      %3621 = vmatprep.mubr.bf16.mxu0 0
      %3622 = vmatmul.mubr.bf16.gmra.mxu0 %v2646
      %v3623 = vpop.f32.mrf.mxu0
      %v3624 = vadd.f32 0.0, %v3623
      %v3625 = vpop.f32.mrf.mxu0
      %v3626 = vpop.f32.mrf.mxu0
      %v3627 = vadd.f32 0.0, %v3626
      %v3628 = vpop.f32.mrf.mxu0
      %3629 = vmatprep.mubr.bf16.mxu0 0
      %3630 = vmatmul.mubr.bf16.gmra.mxu0 %v2649
      %v3631 = vpop.f32.mrf.mxu0
      %v3632 = vadd.f32 0.0, %v3631
      %v3633 = vpop.f32.mrf.mxu0
      %v3634 = vpop.f32.mrf.mxu0
      %v3635 = vadd.f32 0.0, %v3634
      %v3636 = vpop.f32.mrf.mxu0
      %3637 = vdwg.mxu0
      %s3638 = scalar_lea.vmem %s3, 96
      %v3639 = vld [vmem:[%s3638] sm:$0xf]
      %v3640 = vld [vmem:[%s3638 + $0x4] sm:$0xf]
      %v3641 = vld [vmem:[%s3638 + $0x8] sm:$0xf]
      %v3642 = vld [vmem:[%s3638 + $0xc] sm:$0xf]
      %v3643 = vpack.c.bf16 %v3627, %v3624
      %v3644 = vpack.c.bf16 %v3635, %v3632
      %v3649 = vunpack.c.l.b16 %v3639
      %v3650 = vunpack.c.l.b16 %v3640
      %v3651 = vunpack.c.l.b16 %v3641
      %v3652 = vunpack.c.l.b16 %v3642
      %v3653 = vpack.c.b16 %v3650, %v3649
      %v3654 = vpack.c.b16 %v3652, %v3651
      %v3656 = vsel %vm857, %v3653, 0
      %v3659 = vsel %vm857, %v3654, 0
      %3661 = vmatprep.subr.bf16.mxu0 0
      %3662 = vmatpush1.bf16.msra.mxu0 0
      %3663 = vmatprep.subr.bf16.mxu0 0
      %3664 = vmatpush1.bf16.msra.mxu0 0
      %3665 = vmatprep.subr.bf16.mxu0 0
      %3666 = vmatpush1.bf16.msra.mxu0 0
      %3667 = vmatprep.subr.bf16.mxu0 0
      %3668 = vmatpush1.bf16.msra.mxu0 0
      %3669 = vmatprep.subr.bf16.mxu0 0
      %3670 = vmatpush1.bf16.msra.mxu0 0
      %3671 = vmatprep.subr.bf16.mxu0 0
      %3672 = vmatpush1.bf16.msra.mxu0 0
      %3673 = vmatprep.subr.bf16.mxu0 0
      %3674 = vmatpush1.bf16.msra.mxu0 %v3644
      %3675 = vmatprep.subr.bf16.mxu0 0
      %3676 = vmatpush1.bf16.msra.mxu0 %v3643
      %3677 = vmatprep.subr.bf16.mxu0 0
      %3678 = vmatpush2.bf16.msra.mxu0 0
      %3679 = vmatprep.subr.bf16.mxu0 0
      %3680 = vmatpush2.bf16.msra.mxu0 0
      %3681 = vmatprep.subr.bf16.mxu0 0
      %3682 = vmatpush2.bf16.msra.mxu0 0
      %3683 = vmatprep.subr.bf16.mxu0 0
      %3684 = vmatpush2.bf16.msra.mxu0 0
      %3685 = vmatprep.subr.bf16.mxu0 0
      %3686 = vmatpush2.bf16.msra.mxu0 0
      %3687 = vmatprep.subr.bf16.mxu0 0
      %3688 = vmatpush2.bf16.msra.mxu0 0
      %3689 = vmatprep.subr.bf16.mxu0 0
      %3690 = vmatpush2.bf16.msra.mxu0 0
      %3691 = vmatprep.subr.bf16.mxu0 0
      %3692 = vmatpush2.bf16.msra.mxu0 0
      %3693 = vmatprep.mubr.bf16.mxu0 0
      %3694 = vmatmul.mubr.bf16.gmra.mxu0 %v3656
      %v3695 = vpop.f32.mrf.mxu0
      %v3696 = vadd.f32 0.0, %v3695
      %v3697 = vpop.f32.mrf.mxu0
      %v3698 = vpop.f32.mrf.mxu0
      %v3699 = vadd.f32 0.0, %v3698
      %v3700 = vpop.f32.mrf.mxu0
      %3701 = vmatprep.mubr.bf16.mxu0 0
      %3702 = vmatmul.mubr.bf16.gmra.mxu0 %v3659
      %v3703 = vpop.f32.mrf.mxu0
      %v3704 = vadd.f32 0.0, %v3703
      %v3705 = vpop.f32.mrf.mxu0
      %v3706 = vpop.f32.mrf.mxu0
      %v3707 = vadd.f32 0.0, %v3706
      %v3708 = vpop.f32.mrf.mxu0
      %3709 = vdwg.mxu0
      %v3710 = vadd.f32 %v3553, %v3696
      %v3711 = vadd.f32 %v3554, %v3699
      %v3712 = vadd.f32 %v3555, %v3704
      %v3713 = vadd.f32 %v3556, %v3707
      %s3714 = scalar_lea.vmem %s5, 196
      %v3715 = vld [vmem:[%s3714] sm:$0xf]
      %v3716 = vld [vmem:[%s3714 + $0x4] sm:$0xf]
      %v3717 = vld [vmem:[%s3714 + $0x8] sm:$0xf]
      %v3718 = vld [vmem:[%s3714 + $0xc] sm:$0xf]
      %v3719 = vld [vmem:[%s3714 + $0x10] sm:$0xf]
      %v3720 = vld [vmem:[%s3714 + $0x14] sm:$0xf]
      %v3721 = vld [vmem:[%s3714 + $0x18] sm:$0x1]
      %v3729 = vunpack.c.l.b16 %v3715
      %v3730 = vunpack.c.l.b16 %v3716
      %v3731 = vunpack.c.l.b16 %v3717
      %v3732 = vunpack.c.l.b16 %v3718
      %v3733 = vunpack.c.l.b16 %v3719
      %v3734 = vunpack.c.l.b16 %v3720
      %v3735 = vunpack.c.l.b16 %v3721
      %v3736 = vpack.c.b16 %v3730, %v3729
      %v3737 = vpack.c.b16 %v3732, %v3731
      %v3738 = vpack.c.b16 %v3734, %v3733
      %v3739 = vpack.c.b16 %v3735, %v3735
      %v3744 = vand.u32 %v3739, %v2652
      %3746 = vmatprep.subr.bf16.mxu0 0
      %3747 = vmatpush1.bf16.msra.mxu0 0
      %3748 = vmatprep.subr.bf16.mxu0 0
      %3749 = vmatpush1.bf16.msra.mxu0 0
      %3750 = vmatprep.subr.bf16.mxu0 0
      %3751 = vmatpush1.bf16.msra.mxu0 0
      %3752 = vmatprep.subr.bf16.mxu0 0
      %3753 = vmatpush1.bf16.msra.mxu0 0
      %3754 = vmatprep.subr.bf16.mxu0 0
      %3755 = vmatpush1.bf16.msra.mxu0 %v3744
      %3756 = vmatprep.subr.bf16.mxu0 0
      %3757 = vmatpush1.bf16.msra.mxu0 %v3738
      %3758 = vmatprep.subr.bf16.mxu0 0
      %3759 = vmatpush1.bf16.msra.mxu0 %v3737
      %3760 = vmatprep.subr.bf16.mxu0 0
      %3761 = vmatpush1.bf16.msra.mxu0 %v3736
      %3762 = vmatprep.subr.bf16.mxu0 0
      %3763 = vmatpush2.bf16.msra.mxu0 0
      %3764 = vmatprep.subr.bf16.mxu0 0
      %3765 = vmatpush2.bf16.msra.mxu0 0
      %3766 = vmatprep.subr.bf16.mxu0 0
      %3767 = vmatpush2.bf16.msra.mxu0 0
      %3768 = vmatprep.subr.bf16.mxu0 0
      %3769 = vmatpush2.bf16.msra.mxu0 0
      %3770 = vmatprep.subr.bf16.mxu0 0
      %3771 = vmatpush2.bf16.msra.mxu0 0
      %3772 = vmatprep.subr.bf16.mxu0 0
      %3773 = vmatpush2.bf16.msra.mxu0 0
      %3774 = vmatprep.subr.bf16.mxu0 0
      %3775 = vmatpush2.bf16.msra.mxu0 0
      %3776 = vmatprep.subr.bf16.mxu0 0
      %3777 = vmatpush2.bf16.msra.mxu0 0
      %3778 = vmatprep.mubr.bf16.mxu0 0
      %3779 = vmatmul.mubr.bf16.gmra.mxu0 %v2646
      %v3780 = vpop.f32.mrf.mxu0
      %v3781 = vadd.f32 0.0, %v3780
      %v3782 = vpop.f32.mrf.mxu0
      %v3783 = vpop.f32.mrf.mxu0
      %v3784 = vadd.f32 0.0, %v3783
      %v3785 = vpop.f32.mrf.mxu0
      %3786 = vmatprep.mubr.bf16.mxu0 0
      %3787 = vmatmul.mubr.bf16.gmra.mxu0 %v2649
      %v3788 = vpop.f32.mrf.mxu0
      %v3789 = vadd.f32 0.0, %v3788
      %v3790 = vpop.f32.mrf.mxu0
      %v3791 = vpop.f32.mrf.mxu0
      %v3792 = vadd.f32 0.0, %v3791
      %v3793 = vpop.f32.mrf.mxu0
      %3794 = vdwg.mxu0
      %s3795 = scalar_lea.vmem %s3, 112
      %v3796 = vld [vmem:[%s3795] sm:$0xf]
      %v3797 = vld [vmem:[%s3795 + $0x4] sm:$0xf]
      %v3798 = vld [vmem:[%s3795 + $0x8] sm:$0xf]
      %v3799 = vld [vmem:[%s3795 + $0xc] sm:$0xf]
      %v3800 = vpack.c.bf16 %v3784, %v3781
      %v3801 = vpack.c.bf16 %v3792, %v3789
      %v3806 = vunpack.c.l.b16 %v3796
      %v3807 = vunpack.c.l.b16 %v3797
      %v3808 = vunpack.c.l.b16 %v3798
      %v3809 = vunpack.c.l.b16 %v3799
      %v3810 = vpack.c.b16 %v3807, %v3806
      %v3811 = vpack.c.b16 %v3809, %v3808
      %v3813 = vsel %vm857, %v3810, 0
      %v3816 = vsel %vm857, %v3811, 0
      %3818 = vmatprep.subr.bf16.mxu0 0
      %3819 = vmatpush1.bf16.msra.mxu0 0
      %3820 = vmatprep.subr.bf16.mxu0 0
      %3821 = vmatpush1.bf16.msra.mxu0 0
      %3822 = vmatprep.subr.bf16.mxu0 0
      %3823 = vmatpush1.bf16.msra.mxu0 0
      %3824 = vmatprep.subr.bf16.mxu0 0
      %3825 = vmatpush1.bf16.msra.mxu0 0
      %3826 = vmatprep.subr.bf16.mxu0 0
      %3827 = vmatpush1.bf16.msra.mxu0 0
      %3828 = vmatprep.subr.bf16.mxu0 0
      %3829 = vmatpush1.bf16.msra.mxu0 0
      %3830 = vmatprep.subr.bf16.mxu0 0
      %3831 = vmatpush1.bf16.msra.mxu0 %v3801
      %3832 = vmatprep.subr.bf16.mxu0 0
      %3833 = vmatpush1.bf16.msra.mxu0 %v3800
      %3834 = vmatprep.subr.bf16.mxu0 0
      %3835 = vmatpush2.bf16.msra.mxu0 0
      %3836 = vmatprep.subr.bf16.mxu0 0
      %3837 = vmatpush2.bf16.msra.mxu0 0
      %3838 = vmatprep.subr.bf16.mxu0 0
      %3839 = vmatpush2.bf16.msra.mxu0 0
      %3840 = vmatprep.subr.bf16.mxu0 0
      %3841 = vmatpush2.bf16.msra.mxu0 0
      %3842 = vmatprep.subr.bf16.mxu0 0
      %3843 = vmatpush2.bf16.msra.mxu0 0
      %3844 = vmatprep.subr.bf16.mxu0 0
      %3845 = vmatpush2.bf16.msra.mxu0 0
      %3846 = vmatprep.subr.bf16.mxu0 0
      %3847 = vmatpush2.bf16.msra.mxu0 0
      %3848 = vmatprep.subr.bf16.mxu0 0
      %3849 = vmatpush2.bf16.msra.mxu0 0
      %3850 = vmatprep.mubr.bf16.mxu0 0
      %3851 = vmatmul.mubr.bf16.gmra.mxu0 %v3813
      %v3852 = vpop.f32.mrf.mxu0
      %v3853 = vadd.f32 0.0, %v3852
      %v3854 = vpop.f32.mrf.mxu0
      %v3855 = vpop.f32.mrf.mxu0
      %v3856 = vadd.f32 0.0, %v3855
      %v3857 = vpop.f32.mrf.mxu0
      %3858 = vmatprep.mubr.bf16.mxu0 0
      %3859 = vmatmul.mubr.bf16.gmra.mxu0 %v3816
      %v3860 = vpop.f32.mrf.mxu0
      %v3861 = vadd.f32 0.0, %v3860
      %v3862 = vpop.f32.mrf.mxu0
      %v3863 = vpop.f32.mrf.mxu0
      %v3864 = vadd.f32 0.0, %v3863
      %v3865 = vpop.f32.mrf.mxu0
      %3866 = vdwg.mxu0
      %v3867 = vadd.f32 %v3710, %v3853
      %v3868 = vadd.f32 %v3711, %v3856
      %v3869 = vadd.f32 %v3712, %v3861
      %v3870 = vadd.f32 %v3713, %v3864
      %s3871 = scalar_lea.vmem %s5, 224
      %v3872 = vld [vmem:[%s3871] sm:$0xf]
      %v3873 = vld [vmem:[%s3871 + $0x4] sm:$0xf]
      %v3874 = vld [vmem:[%s3871 + $0x8] sm:$0xf]
      %v3875 = vld [vmem:[%s3871 + $0xc] sm:$0xf]
      %v3876 = vld [vmem:[%s3871 + $0x10] sm:$0xf]
      %v3877 = vld [vmem:[%s3871 + $0x14] sm:$0xf]
      %v3878 = vld [vmem:[%s3871 + $0x18] sm:$0x1]
      %v3886 = vunpack.c.l.b16 %v3872
      %v3887 = vunpack.c.l.b16 %v3873
      %v3888 = vunpack.c.l.b16 %v3874
      %v3889 = vunpack.c.l.b16 %v3875
      %v3890 = vunpack.c.l.b16 %v3876
      %v3891 = vunpack.c.l.b16 %v3877
      %v3892 = vunpack.c.l.b16 %v3878
      %v3893 = vpack.c.b16 %v3887, %v3886
      %v3894 = vpack.c.b16 %v3889, %v3888
      %v3895 = vpack.c.b16 %v3891, %v3890
      %v3896 = vpack.c.b16 %v3892, %v3892
      %v3901 = vand.u32 %v3896, %v2652
      %3903 = vmatprep.subr.bf16.mxu0 0
      %3904 = vmatpush1.bf16.msra.mxu0 0
      %3905 = vmatprep.subr.bf16.mxu0 0
      %3906 = vmatpush1.bf16.msra.mxu0 0
      %3907 = vmatprep.subr.bf16.mxu0 0
      %3908 = vmatpush1.bf16.msra.mxu0 0
      %3909 = vmatprep.subr.bf16.mxu0 0
      %3910 = vmatpush1.bf16.msra.mxu0 0
      %3911 = vmatprep.subr.bf16.mxu0 0
      %3912 = vmatpush1.bf16.msra.mxu0 %v3901
      %3913 = vmatprep.subr.bf16.mxu0 0
      %3914 = vmatpush1.bf16.msra.mxu0 %v3895
      %3915 = vmatprep.subr.bf16.mxu0 0
      %3916 = vmatpush1.bf16.msra.mxu0 %v3894
      %3917 = vmatprep.subr.bf16.mxu0 0
      %3918 = vmatpush1.bf16.msra.mxu0 %v3893
      %3919 = vmatprep.subr.bf16.mxu0 0
      %3920 = vmatpush2.bf16.msra.mxu0 0
      %3921 = vmatprep.subr.bf16.mxu0 0
      %3922 = vmatpush2.bf16.msra.mxu0 0
      %3923 = vmatprep.subr.bf16.mxu0 0
      %3924 = vmatpush2.bf16.msra.mxu0 0
      %3925 = vmatprep.subr.bf16.mxu0 0
      %3926 = vmatpush2.bf16.msra.mxu0 0
      %3927 = vmatprep.subr.bf16.mxu0 0
      %3928 = vmatpush2.bf16.msra.mxu0 0
      %3929 = vmatprep.subr.bf16.mxu0 0
      %3930 = vmatpush2.bf16.msra.mxu0 0
      %3931 = vmatprep.subr.bf16.mxu0 0
      %3932 = vmatpush2.bf16.msra.mxu0 0
      %3933 = vmatprep.subr.bf16.mxu0 0
      %3934 = vmatpush2.bf16.msra.mxu0 0
      %3935 = vmatprep.mubr.bf16.mxu0 0
      %3936 = vmatmul.mubr.bf16.gmra.mxu0 %v2646
      %v3937 = vpop.f32.mrf.mxu0
      %v3938 = vadd.f32 0.0, %v3937
      %v3939 = vpop.f32.mrf.mxu0
      %v3940 = vpop.f32.mrf.mxu0
      %v3941 = vadd.f32 0.0, %v3940
      %v3942 = vpop.f32.mrf.mxu0
      %3943 = vmatprep.mubr.bf16.mxu0 0
      %3944 = vmatmul.mubr.bf16.gmra.mxu0 %v2649
      %v3945 = vpop.f32.mrf.mxu0
      %v3946 = vadd.f32 0.0, %v3945
      %v3947 = vpop.f32.mrf.mxu0
      %v3948 = vpop.f32.mrf.mxu0
      %v3949 = vadd.f32 0.0, %v3948
      %v3950 = vpop.f32.mrf.mxu0
      %3951 = vdwg.mxu0
      %s3952 = scalar_lea.vmem %s3, 128
      %v3953 = vld [vmem:[%s3952] sm:$0xf]
      %v3954 = vld [vmem:[%s3952 + $0x4] sm:$0xf]
      %v3955 = vld [vmem:[%s3952 + $0x8] sm:$0xf]
      %v3956 = vld [vmem:[%s3952 + $0xc] sm:$0xf]
      %v3957 = vpack.c.bf16 %v3941, %v3938
      %v3958 = vpack.c.bf16 %v3949, %v3946
      %v3963 = vunpack.c.l.b16 %v3953
      %v3964 = vunpack.c.l.b16 %v3954
      %v3965 = vunpack.c.l.b16 %v3955
      %v3966 = vunpack.c.l.b16 %v3956
      %v3967 = vpack.c.b16 %v3964, %v3963
      %v3968 = vpack.c.b16 %v3966, %v3965
      %v3970 = vsel %vm857, %v3967, 0
      %v3973 = vsel %vm857, %v3968, 0
      %3975 = vmatprep.subr.bf16.mxu0 0
      %3976 = vmatpush1.bf16.msra.mxu0 0
      %3977 = vmatprep.subr.bf16.mxu0 0
      %3978 = vmatpush1.bf16.msra.mxu0 0
      %3979 = vmatprep.subr.bf16.mxu0 0
      %3980 = vmatpush1.bf16.msra.mxu0 0
      %3981 = vmatprep.subr.bf16.mxu0 0
      %3982 = vmatpush1.bf16.msra.mxu0 0
      %3983 = vmatprep.subr.bf16.mxu0 0
      %3984 = vmatpush1.bf16.msra.mxu0 0
      %3985 = vmatprep.subr.bf16.mxu0 0
      %3986 = vmatpush1.bf16.msra.mxu0 0
      %3987 = vmatprep.subr.bf16.mxu0 0
      %3988 = vmatpush1.bf16.msra.mxu0 %v3958
      %3989 = vmatprep.subr.bf16.mxu0 0
      %3990 = vmatpush1.bf16.msra.mxu0 %v3957
      %3991 = vmatprep.subr.bf16.mxu0 0
      %3992 = vmatpush2.bf16.msra.mxu0 0
      %3993 = vmatprep.subr.bf16.mxu0 0
      %3994 = vmatpush2.bf16.msra.mxu0 0
      %3995 = vmatprep.subr.bf16.mxu0 0
      %3996 = vmatpush2.bf16.msra.mxu0 0
      %3997 = vmatprep.subr.bf16.mxu0 0
      %3998 = vmatpush2.bf16.msra.mxu0 0
      %3999 = vmatprep.subr.bf16.mxu0 0
      %4000 = vmatpush2.bf16.msra.mxu0 0
      %4001 = vmatprep.subr.bf16.mxu0 0
      %4002 = vmatpush2.bf16.msra.mxu0 0
      %4003 = vmatprep.subr.bf16.mxu0 0
      %4004 = vmatpush2.bf16.msra.mxu0 0
      %4005 = vmatprep.subr.bf16.mxu0 0
      %4006 = vmatpush2.bf16.msra.mxu0 0
      %4007 = vmatprep.mubr.bf16.mxu0 0
      %4008 = vmatmul.mubr.bf16.gmra.mxu0 %v3970
      %v4009 = vpop.f32.mrf.mxu0
      %v4010 = vadd.f32 0.0, %v4009
      %v4011 = vpop.f32.mrf.mxu0
      %v4012 = vpop.f32.mrf.mxu0
      %v4013 = vadd.f32 0.0, %v4012
      %v4014 = vpop.f32.mrf.mxu0
      %4015 = vmatprep.mubr.bf16.mxu0 0
      %4016 = vmatmul.mubr.bf16.gmra.mxu0 %v3973
      %v4017 = vpop.f32.mrf.mxu0
      %v4018 = vadd.f32 0.0, %v4017
      %v4019 = vpop.f32.mrf.mxu0
      %v4020 = vpop.f32.mrf.mxu0
      %v4021 = vadd.f32 0.0, %v4020
      %v4022 = vpop.f32.mrf.mxu0
      %4023 = vdwg.mxu0
      %v4024 = vadd.f32 %v3867, %v4010
      %v4025 = vadd.f32 %v3868, %v4013
      %v4026 = vadd.f32 %v3869, %v4018
      %v4027 = vadd.f32 %v3870, %v4021
      %s4028 = scalar_lea.vmem %s6, 64
      %v4029 = vld [vmem:[%s4028] sm:$0xff]
      %v4030 = vld [vmem:[%s4028 + $0x8] sm:$0xff]
      %v4031 = vld [vmem:[%s4028 + $0x10] sm:$0xff]
      %v4032 = vld [vmem:[%s4028 + $0x18] sm:$0xff]
      %4034 = vset.pattern.permute.xlu0 0
      %4035 = vperm.xlu0 %4034, %v4029
      %v4036 = vpop.permute.xlu0 %4035
      %4039 = vset.pattern.permute.xlu0 0
      %4040 = vperm.xlu0 %4039, %v4030
      %v4041 = vpop.permute.xlu0 %4040
      %4044 = vset.pattern.permute.xlu0 0
      %4045 = vperm.xlu0 %4044, %v4031
      %v4046 = vpop.permute.xlu0 %4045
      %4049 = vset.pattern.permute.xlu0 0
      %4050 = vperm.xlu0 %4049, %v4032
      %v4051 = vpop.permute.xlu0 %4050
      %v4053 = vadd.f32 %v4024, %v4036
      %v4054 = vadd.f32 %v4025, %v4041
      %v4055 = vadd.f32 %v4026, %v4046
      %v4056 = vadd.f32 %v4027, %v4051
      %v4057 = vmax.f32 %v4053, 0.0
      %v4058 = vmax.f32 %v4054, 0.0
      %v4059 = vmax.f32 %v4055, 0.0
      %v4060 = vmax.f32 %v4056, 0.0
      %vm4061 = vcmask 130048
      %v4062 = vsel %vm4061, %v4057, 0.0
      %4063 = vadd.xlane.f32.xlu0 %v4062
      %v4064 = vpop.xlane.xlu0 %4063
      %v4065 = vsel %vm4061, %v4058, 0.0
      %4066 = vadd.xlane.f32.xlu0 %v4065
      %v4067 = vpop.xlane.xlu0 %4066
      %v4068 = vsel %vm4061, %v4059, 0.0
      %4069 = vadd.xlane.f32.xlu0 %v4068
      %v4070 = vpop.xlane.xlu0 %4069
      %v4071 = vsel %vm4061, %v4060, 0.0
      %4072 = vadd.xlane.f32.xlu0 %v4071
      %v4073 = vpop.xlane.xlu0 %4072
      %v4074 = vrcp.pop 16.0
      %v4075 = vmul.f32 %v4064, %v4074
      %v4076 = vmul.f32 %v4067, %v4074
      %v4077 = vmul.f32 %v4070, %v4074
      %v4078 = vmul.f32 %v4073, %v4074
      %vm4079 = vcmask 7168
      %4080 = vst.msk [vmem:[%s278] sm:$0xff] %vm4079, %v4075
      %4081 = vst.msk [vmem:[%s278 + $0x8] sm:$0xff] %vm4079, %v4076
      %4082 = vst.msk [vmem:[%s278 + $0x10] sm:$0xff] %vm4079, %v4077
      %4083 = vst.msk [vmem:[%s278 + $0x18] sm:$0xff] %vm4079, %v4078
      %p4084 = scmp.lt.s32.totalorder %s18, 1
      %s4085 = scalar_select %p4084, %s18, 1
      %s4086 = smul.addr %s4085, 4
      %s4087 = smul.addr %s4086, 8
      %s4088 = scalar_lea.vmem %s7, %s4087
      // Predicated region
      $region49: #{condition_net_forward.1} parent=47 // pred_check
        %p4089 = pneg %p188
      $region50: #{condition_net_forward.1} parent=47 // pred_check_branch
        %4091 = sbr.rel (%p4089) target = $region52
      $region51: #{condition_net_forward.1} parent=47 // pred_region
        _
      $region52: #{condition_net_forward.1} parent=47 // pred_fallthru
        _
    $region48: #{condition_net_forward.1} parent=5 // pred_fallthru
      _
    %p4092 = scmp.le.s32.totalorder 2, %s13
    // Predicated region
    $region53: #{condition_net_forward.1} parent=5 // pred_check
      %p4093 = pneg %p4092
    $region54: #{condition_net_forward.1} parent=5 // pred_check_branch
      %4095 = sbr.rel (%p4093) target = $region56
    $region55: #{condition_net_forward.1} parent=5 // pred_region
      %s4096 = ssub.s32 %s13, 2
      // Predicated region
      $region57: #{condition_net_forward.1} parent=55 // pred_check
        %p4097 = pneg %p194
      $region58: #{condition_net_forward.1} parent=55 // pred_check_branch
        %4099 = sbr.rel (%p4097) target = $region60
      $region59: #{condition_net_forward.1} parent=55 // pred_region
        %p4100 = scmp.lt.s32.totalorder %s19, 1
        %s4101 = scalar_select %p4100, %s19, 1
        %s4102 = smul.addr %s4101, 4
        %s4103 = smul.addr %s4102, 8
        %s4104 = scalar_lea.vmem %s7, %s4103
      $region60: #{condition_net_forward.1} parent=55 // pred_fallthru
        _
    $region56: #{condition_net_forward.1} parent=5 // pred_fallthru
      _
  $region6: #{condition_net_forward.1} parent=0 // loop_footer
    %s17 = sadd.s32 1, %s13
  $region7: #{condition_net_forward.1} parent=0 // loop_footer_branch
    %12 = sbr.rel target = $region3
  $region8: #{condition_net_forward.1} parent=0 // loop_exit
    _

</llo_original>
